<compile_context>
chip_gen: v7x
topology: tpu7x:2x2x1
jax: 0.10.0
libtpu: 0.0.40
codegen_flags: <defaults>
</compile_context>

<pallas_src>
import math
from functools import partial

import jax
import jax.numpy as jnp
from jax import lax
from jax.experimental import pallas as pl
from jax.experimental.pallas import tpu as pltpu

_MASK_VALUE = -0.7 * float(jnp.finfo(jnp.float32).max)   # finite "-inf" for masking
_CONTRACT_LAST = (((1,), (1,)), ((), ()))                 # contract dim 1 of lhs with dim 1 of rhs


# --------------------------------------------------------------------------- #
# Fused QKV-projection + PCL attention kernel (one grid step per batch)
# --------------------------------------------------------------------------- #
def pcl_fused_kernel(x_ref, wq_ref, wk_ref, wv_ref, bq_ref, bk_ref, bv_ref,
                     cid_col_ref, cid_row_ref, o_ref,
                     q_s, k_s, v_s, *,
                     G, C, nc, num_heads, head_dim, scale, compute_dtype):
    # ---- fused Q/K/V projection: y = x @ W^T + b (W resident, (out, in) layout) ----
    x = x_ref[...].astype(compute_dtype)                                    # (S, H)

    def proj(w_ref, b_ref):
        y = lax.dot_general(x, w_ref[...], _CONTRACT_LAST,
                            preferred_element_type=jnp.float32)
        return (y + b_ref[...]).astype(compute_dtype)

    q_s[...] = proj(wq_ref, bq_ref)
    k_s[...] = proj(wk_ref, bk_ref)
    v_s[...] = proj(wv_ref, bv_ref)

    # ---- cluster masks: built ONCE per chunk (hoisted out of the head loop) ----
    mask_own = []
    mask_nxt = []
    for c in range(nc):
        nxt = (c + 1) % nc                    # torch .roll(-1) over chunks
        qi = cid_col_ref[c]                   # (C, 1) int32
        mask_own.append(qi != cid_row_ref[c])     # (C, C) bool
        mask_nxt.append(qi != cid_row_ref[nxt])   # (C, C) bool

    # ---- attention: heads sliced along the lane dim from VMEM scratch refs ----
    # TODO(synk): for production num_heads / S, replace the static Python loops
    # with lax.fori_loop(..., unroll=True) or extra (parallel) grid axes, and
    # tile the (S, H) per-batch block over query-row chunks to bound VMEM
    # (size for v7x's 64 MiB; roughly half the v6e tile).
    g_parts = []                              # per-head (G, d) global context
    blk_parts = [[] for _ in range(nc)]       # per-chunk list of per-head (C, d)
    for h in range(num_heads):                # static -> unrolled (toy head count)
        lo = h * head_dim
        q_h = q_s[:, lo:lo + head_dim]        # (S, d) ref-slice load
        k_h = k_s[:, lo:lo + head_dim]
        v_h = v_s[:, lo:lo + head_dim]

        # -- global rows: first G queries attend over every token --
        gs = lax.dot_general(q_h[:G], k_h, _CONTRACT_LAST,
                             preferred_element_type=jnp.float32) * scale     # (G, S)
        gs = gs - jnp.max(gs, axis=-1, keepdims=True)
        ge = jnp.exp(gs)
        gp = ge * pl.reciprocal(jnp.sum(ge, axis=-1, keepdims=True), approx=True)
        g_parts.append(jnp.dot(gp.astype(compute_dtype), v_h,
                               preferred_element_type=jnp.float32))           # (G, d)

        k_g = k_h[:G]
        v_g = v_h[:G]
        # batched global-key scores for ALL local queries: one (P, G) dot per head
        s_gl = lax.dot_general(q_h[G:], k_g, _CONTRACT_LAST,
                               preferred_element_type=jnp.float32) * scale    # (P, G)

        # -- local chunked rows: keys = {global, next chunk, own chunk} --
        for c in range(nc):                   # static -> unrolled (toy chunk count)
            nxt = (c + 1) % nc
            r0 = G + c * C
            rn = G + nxt * C
            q_c = q_h[r0:r0 + C]              # (C, d)
            k_o = k_h[r0:r0 + C]
            v_o = v_h[r0:r0 + C]
            k_n = k_h[rn:rn + C]
            v_n = v_h[rn:rn + C]

            s_g = s_gl[c * C:(c + 1) * C]                                     # (C, G)
            s_n = lax.dot_general(q_c, k_n, _CONTRACT_LAST,
                                  preferred_element_type=jnp.float32) * scale  # (C, C)
            s_o = lax.dot_general(q_c, k_o, _CONTRACT_LAST,
                                  preferred_element_type=jnp.float32) * scale  # (C, C)

            s_n = jnp.where(mask_nxt[c], _MASK_VALUE, s_n)
            s_o = jnp.where(mask_own[c], _MASK_VALUE, s_o)

            # 3-block softmax (no concatenated scores / keys / values)
            m = jnp.maximum(jnp.max(s_g, axis=-1, keepdims=True),
                            jnp.maximum(jnp.max(s_n, axis=-1, keepdims=True),
                                        jnp.max(s_o, axis=-1, keepdims=True)))
            e_g = jnp.exp(s_g - m)
            e_n = jnp.exp(s_n - m)
            e_o = jnp.exp(s_o - m)
            denom = (jnp.sum(e_g, axis=-1, keepdims=True)
                     + jnp.sum(e_n, axis=-1, keepdims=True)
                     + jnp.sum(e_o, axis=-1, keepdims=True))
            inv = pl.reciprocal(denom, approx=True)
            ctx = (jnp.dot(e_g.astype(compute_dtype), v_g, preferred_element_type=jnp.float32)
                   + jnp.dot(e_n.astype(compute_dtype), v_n, preferred_element_type=jnp.float32)
                   + jnp.dot(e_o.astype(compute_dtype), v_o, preferred_element_type=jnp.float32))
            blk_parts[c].append(ctx * inv)                                    # (C, d)

    # ---- lane-dense writeback: assemble all heads / row blocks, ONE full store ----
    rows = [jnp.concatenate(g_parts, axis=-1)]                                # (G, H)
    for c in range(nc):
        rows.append(jnp.concatenate(blk_parts[c], axis=-1))                   # (C, H)
    o_ref[...] = jnp.concatenate(rows, axis=0).astype(o_ref.dtype)            # (S, H)


# --------------------------------------------------------------------------- #
# Wrapper (pure plumbing: no transposes, no mask materialization, one call)
# --------------------------------------------------------------------------- #
def pcl_self_attention(hidden_states, cluster_ids, params, *,
                       num_heads, global_attention, chunk_size,
                       compute_dtype=jnp.float32):
    # compute_dtype=jnp.bfloat16 doubles MXU throughput and halves HBM/VMEM
    # traffic for the projected q/k/v (f32 accumulation + f32 softmax kept).
    B, S, H = hidden_states.shape
    assert H % num_heads == 0
    d = H // num_heads
    G, C = global_attention, chunk_size
    P = S - G
    assert P % C == 0, "local token count must be a multiple of chunk_size"
    nc = P // C
    scale = 1.0 / math.sqrt(d)

    wq, bq = params["query"]
    wk, bk = params["key"]
    wv, bv = params["value"]

    # Weights cast ONCE in the wrapper (no per-grid-step casts in-kernel);
    # consumed in (out, in) layout -> no transposes anywhere.
    wq_c = wq.astype(compute_dtype)
    wk_c = wk.astype(compute_dtype)
    wv_c = wv.astype(compute_dtype)

    # cluster ids in two tiny int32 layouts (pure reshapes; masks built in-kernel)
    cid = cluster_ids.astype(jnp.int32)
    cid_col = cid.reshape(B, nc, C, 1)
    cid_row = cid.reshape(B, nc, 1, C)

    seq_spec = pl.BlockSpec((None, S, H), lambda b: (b, 0, 0))
    w_spec = pl.BlockSpec((H, H), lambda b: (0, 0))      # resident across grid steps
    b_spec = pl.BlockSpec((1, H), lambda b: (0, 0))

    # TODO(synk): at production sizes, tile over query-row blocks / heads (extra
    # parallel grid axes) and set vmem_limit_bytes explicitly so resident
    # weights + double-buffered tiles fit v5e's 16 MiB / v7x's 64 MiB budgets.
    ctx = pl.pallas_call(
        partial(pcl_fused_kernel, G=G, C=C, nc=nc, num_heads=num_heads,
                head_dim=d, scale=scale, compute_dtype=compute_dtype),
        grid=(B,),
        in_specs=[
            seq_spec, w_spec, w_spec, w_spec, b_spec, b_spec, b_spec,
            pl.BlockSpec((None, nc, C, 1), lambda b: (b, 0, 0, 0)),
            pl.BlockSpec((None, nc, 1, C), lambda b: (b, 0, 0, 0)),
        ],
        out_specs=seq_spec,
        out_shape=jax.ShapeDtypeStruct((B, S, H), jnp.float32),
        scratch_shapes=[pltpu.VMEM((S, H), compute_dtype)] * 3,   # q / k / v
        compiler_params=pltpu.CompilerParams(dimension_semantics=("parallel",)),
    )(hidden_states, wq_c, wk_c, wv_c,
      bq.reshape(1, H), bk.reshape(1, H), bv.reshape(1, H),
      cid_col, cid_row)
    return ctx


# --------------------------------------------------------------------------- #
# Pure-JAX reference (mirrors the PyTorch forward) for validation
# --------------------------------------------------------------------------- #
def reference_forward(hidden, cluster_ids, params, *, num_heads, global_attention, chunk_size):
    B, S, H = hidden.shape
    d = H // num_heads
    G, C = global_attention, chunk_size
    P = S - G
    nc = P // C
    scale = 1.0 / math.sqrt(d)

    def proj(w, b):
        return hidden @ w.T + b

    def split_heads(x):
        return x.reshape(B, S, num_heads, d).transpose(0, 2, 1, 3)

    qL = split_heads(proj(*params["query"]))
    kL = split_heads(proj(*params["key"]))
    vL = split_heads(proj(*params["value"]))

    gq, lq = qL[:, :, :G], qL[:, :, G:]
    gk, lk = kL[:, :, :G], kL[:, :, G:]
    gv, lv = vL[:, :, :G], vL[:, :, G:]

    gscore = jnp.einsum('bhgd,bhsd->bhgs', gq, kL) * scale
    gctx = jnp.einsum('bhgs,bhsd->bhgd', jax.nn.softmax(gscore, axis=-1), vL)

    lq = lq.reshape(B, num_heads, nc, C, d)
    lk = lk.reshape(B, num_heads, nc, C, d)
    lv = lv.reshape(B, num_heads, nc, C, d)
    gk_e = jnp.broadcast_to(gk[:, :, None], (B, num_heads, nc, G, d))
    gv_e = jnp.broadcast_to(gv[:, :, None], (B, num_heads, nc, G, d))
    lk_cat = jnp.concatenate([gk_e, jnp.roll(lk, -1, axis=2), lk], axis=-2)
    lv_cat = jnp.concatenate([gv_e, jnp.roll(lv, -1, axis=2), lv], axis=-2)

    ls = jnp.einsum('bhncd,bhnkd->bhnck', lq, lk_cat) * scale
    q_ids = cluster_ids.reshape(B, nc, C)
    k_ids = jnp.concatenate([jnp.roll(q_ids, -1, axis=1), q_ids], axis=-1)
    mask = q_ids[..., None] != k_ids[..., None, :]
    ls = ls.at[..., G:].set(jnp.where(mask[:, None], -jnp.inf, ls[..., G:]))
    lp = jax.nn.softmax(ls, axis=-1)
    lctx = jnp.einsum('bhnck,bhnkd->bhncd', lp, lv_cat).reshape(B, num_heads, P, d)

    ctx = jnp.concatenate([gctx, lctx], axis=-2)
    return ctx.transpose(0, 2, 1, 3).reshape(B, S, H)


# --------------------------------------------------------------------------- #
# Main
# --------------------------------------------------------------------------- #
if __name__ == "__main__":
    # Small config implied by the module: hidden=32, heads=4, head_dim=8,
    # global_attention=4, chunk_size=4, local tokens P=8 -> seq S = 12.
    B, H, num_heads = 2, 32, 4
    G, C, P = 4, 4, 8
    S = G + P

    key = jax.random.PRNGKey(0)
    ks = jax.random.split(key, 8)
    init = 0.02
    wq = init * jax.random.normal(ks[0], (H, H), jnp.float32)
    bq = init * jax.random.normal(ks[1], (H,), jnp.float32)
    wk = init * jax.random.normal(ks[2], (H, H), jnp.float32)
    bk = init * jax.random.normal(ks[3], (H,), jnp.float32)
    wv = init * jax.random.normal(ks[4], (H, H), jnp.float32)
    bv = init * jax.random.normal(ks[5], (H,), jnp.float32)
    params = {"query": (wq, bq), "key": (wk, bk), "value": (wv, bv)}

    hidden_states = jax.random.normal(ks[6], (B, S, H), jnp.float32)
    cluster_ids = jax.random.randint(ks[7], (B, P), 0, 3, jnp.int32)

    ref = reference_forward(hidden_states, cluster_ids, params,
                            num_heads=num_heads, global_attention=G, chunk_size=C)
    ref = jax.block_until_ready(ref)

    # f32 compute path: bit-tight validation (tolerance absorbs approx reciprocal)
    out = pcl_self_attention(hidden_states, cluster_ids, params,
                             num_heads=num_heads, global_attention=G, chunk_size=C,
                             compute_dtype=jnp.float32)
    out = jax.block_until_ready(out)
    assert out.shape == (B, S, H), f"bad output shape {out.shape}"
    if not bool(jnp.allclose(out, ref, atol=1e-3, rtol=1e-3)):
        raise AssertionError(
            f"f32 mismatch vs reference: max abs err {float(jnp.max(jnp.abs(out - ref)))}")

    # bf16 MXU path (production setting): looser tolerance for the reduced precision
    out_bf16 = pcl_self_attention(hidden_states, cluster_ids, params,
                                  num_heads=num_heads, global_attention=G, chunk_size=C,
                                  compute_dtype=jnp.bfloat16)
    out_bf16 = jax.block_until_ready(out_bf16)
    if not bool(jnp.allclose(out_bf16, ref, atol=5e-2, rtol=5e-2)):
        raise AssertionError(
            f"bf16 mismatch vs reference: max abs err {float(jnp.max(jnp.abs(out_bf16 - ref)))}")

    # TODO(synk): output_attentions=True path is not implemented (the PyTorch
    # code references an undefined `attention_probs` there anyway).
    print("KERNEL_OK")
</pallas_src>

<mosaic_0001>
module attributes {stable_mosaic.version = 11 : i64} {
  func.func @pcl_fused_kernel(%arg0: i32, %arg1: memref<1x12x32xf32, #tpu.memory_space<vmem>>, %arg2: memref<32x32xf32, #tpu.memory_space<vmem>>, %arg3: memref<32x32xf32, #tpu.memory_space<vmem>>, %arg4: memref<32x32xf32, #tpu.memory_space<vmem>>, %arg5: memref<1x32xf32, #tpu.memory_space<vmem>>, %arg6: memref<1x32xf32, #tpu.memory_space<vmem>>, %arg7: memref<1x32xf32, #tpu.memory_space<vmem>>, %arg8: memref<1x2x4x1xi32, #tpu.memory_space<vmem>>, %arg9: memref<1x2x1x4xi32, #tpu.memory_space<vmem>>, %arg10: memref<1x12x32xf32, #tpu.memory_space<vmem>>, %arg11: memref<12x32xf32, #tpu.memory_space<vmem>>, %arg12: memref<12x32xf32, #tpu.memory_space<vmem>>, %arg13: memref<12x32xf32, #tpu.memory_space<vmem>>) attributes {dimension_semantics = [#tpu.dimension_semantics<parallel>], iteration_bounds = array<i64: 2>, scalar_prefetch = 0 : i64, scratch_operands = 3 : i64, tpu.core_type = #tpu.core_type<tc>, window_params = [{transform_indices = @transform_0, window_bounds = array<i64: 1, 12, 32>}, {pipeline_mode = #tpu.pipeline_mode<synchronous>, transform_indices = @transform_1, window_bounds = array<i64: 32, 32>}, {pipeline_mode = #tpu.pipeline_mode<synchronous>, transform_indices = @transform_2, window_bounds = array<i64: 32, 32>}, {pipeline_mode = #tpu.pipeline_mode<synchronous>, transform_indices = @transform_3, window_bounds = array<i64: 32, 32>}, {pipeline_mode = #tpu.pipeline_mode<synchronous>, transform_indices = @transform_4, window_bounds = array<i64: 1, 32>}, {pipeline_mode = #tpu.pipeline_mode<synchronous>, transform_indices = @transform_5, window_bounds = array<i64: 1, 32>}, {pipeline_mode = #tpu.pipeline_mode<synchronous>, transform_indices = @transform_6, window_bounds = array<i64: 1, 32>}, {transform_indices = @transform_7, window_bounds = array<i64: 1, 2, 4, 1>}, {transform_indices = @transform_8, window_bounds = array<i64: 1, 2, 1, 4>}, {transform_indices = @transform_9, window_bounds = array<i64: 1, 12, 32>}]} {
    %c0 = arith.constant 0 : index
    %c0_0 = arith.constant 0 : index
    %c0_1 = arith.constant 0 : index
    %0 = vector.load %arg1[%c0, %c0_0, %c0_1] : memref<1x12x32xf32, #tpu.memory_space<vmem>>, vector<1x12x32xf32>
    %1 = vector.shape_cast %0 : vector<1x12x32xf32> to vector<12x32xf32>
    %c0_2 = arith.constant 0 : index
    %c0_3 = arith.constant 0 : index
    %2 = vector.load %arg2[%c0_2, %c0_3] : memref<32x32xf32, #tpu.memory_space<vmem>>, vector<32x32xf32>
    %cst = arith.constant dense<0.000000e+00> : vector<12x32xf32>
    %3 = tpu.matmul %1, %2, %cst {dimension_numbers = #tpu.dot_dimension_numbers<[1], [1], [0], [0], [0, 0, 1, 0], [], []>} : vector<12x32xf32>, vector<32x32xf32>, vector<12x32xf32> -> vector<12x32xf32>
    %c0_4 = arith.constant 0 : index
    %c0_5 = arith.constant 0 : index
    %4 = vector.load %arg5[%c0_4, %c0_5] : memref<1x32xf32, #tpu.memory_space<vmem>>, vector<1x32xf32>
    %5 = vector.broadcast %4 : vector<1x32xf32> to vector<12x32xf32>
    %6 = arith.addf %3, %5 : vector<12x32xf32>
    %c0_6 = arith.constant 0 : index
    %c0_7 = arith.constant 0 : index
    %7 = vector.load %arg11[%c0_6, %c0_7] : memref<12x32xf32, #tpu.memory_space<vmem>>, vector<12x32xf32>
    tpu.vector_store %arg11[%c0_6, %c0_7], %6 {strides = array<i32>} : memref<12x32xf32, #tpu.memory_space<vmem>>, vector<12x32xf32>,
    %c0_8 = arith.constant 0 : index
    %c0_9 = arith.constant 0 : index
    %8 = vector.load %arg3[%c0_8, %c0_9] : memref<32x32xf32, #tpu.memory_space<vmem>>, vector<32x32xf32>
    %cst_10 = arith.constant dense<0.000000e+00> : vector<12x32xf32>
    %9 = tpu.matmul %1, %8, %cst_10 {dimension_numbers = #tpu.dot_dimension_numbers<[1], [1], [0], [0], [0, 0, 1, 0], [], []>} : vector<12x32xf32>, vector<32x32xf32>, vector<12x32xf32> -> vector<12x32xf32>
    %c0_11 = arith.constant 0 : index
    %c0_12 = arith.constant 0 : index
    %10 = vector.load %arg6[%c0_11, %c0_12] : memref<1x32xf32, #tpu.memory_space<vmem>>, vector<1x32xf32>
    %11 = vector.broadcast %10 : vector<1x32xf32> to vector<12x32xf32>
    %12 = arith.addf %9, %11 : vector<12x32xf32>
    %c0_13 = arith.constant 0 : index
    %c0_14 = arith.constant 0 : index
    %13 = vector.load %arg12[%c0_13, %c0_14] : memref<12x32xf32, #tpu.memory_space<vmem>>, vector<12x32xf32>
    tpu.vector_store %arg12[%c0_13, %c0_14], %12 {strides = array<i32>} : memref<12x32xf32, #tpu.memory_space<vmem>>, vector<12x32xf32>,
    %c0_15 = arith.constant 0 : index
    %c0_16 = arith.constant 0 : index
    %14 = vector.load %arg4[%c0_15, %c0_16] : memref<32x32xf32, #tpu.memory_space<vmem>>, vector<32x32xf32>
    %cst_17 = arith.constant dense<0.000000e+00> : vector<12x32xf32>
    %15 = tpu.matmul %1, %14, %cst_17 {dimension_numbers = #tpu.dot_dimension_numbers<[1], [1], [0], [0], [0, 0, 1, 0], [], []>} : vector<12x32xf32>, vector<32x32xf32>, vector<12x32xf32> -> vector<12x32xf32>
    %c0_18 = arith.constant 0 : index
    %c0_19 = arith.constant 0 : index
    %16 = vector.load %arg7[%c0_18, %c0_19] : memref<1x32xf32, #tpu.memory_space<vmem>>, vector<1x32xf32>
    %17 = vector.broadcast %16 : vector<1x32xf32> to vector<12x32xf32>
    %18 = arith.addf %15, %17 : vector<12x32xf32>
    %c0_20 = arith.constant 0 : index
    %c0_21 = arith.constant 0 : index
    %19 = vector.load %arg13[%c0_20, %c0_21] : memref<12x32xf32, #tpu.memory_space<vmem>>, vector<12x32xf32>
    tpu.vector_store %arg13[%c0_20, %c0_21], %18 {strides = array<i32>} : memref<12x32xf32, #tpu.memory_space<vmem>>, vector<12x32xf32>,
    %c0_22 = arith.constant 0 : index
    %c0_23 = arith.constant 0 : index
    %c0_24 = arith.constant 0 : index
    %c0_25 = arith.constant 0 : index
    %20 = vector.load %arg8[%c0_22, %c0_23, %c0_24, %c0_25] : memref<1x2x4x1xi32, #tpu.memory_space<vmem>>, vector<1x1x4x1xi32>
    %21 = vector.shape_cast %20 : vector<1x1x4x1xi32> to vector<4x1xi32>
    %c0_26 = arith.constant 0 : index
    %c0_27 = arith.constant 0 : index
    %c0_28 = arith.constant 0 : index
    %c0_29 = arith.constant 0 : index
    %22 = vector.load %arg9[%c0_26, %c0_27, %c0_28, %c0_29] : memref<1x2x1x4xi32, #tpu.memory_space<vmem>>, vector<1x1x1x4xi32>
    %23 = vector.shape_cast %22 : vector<1x1x1x4xi32> to vector<1x4xi32>
    %24 = vector.broadcast %21 : vector<4x1xi32> to vector<4x4xi32>
    %25 = vector.broadcast %23 : vector<1x4xi32> to vector<4x4xi32>
    %26 = arith.cmpi ne, %24, %25 : vector<4x4xi32>
    %c0_30 = arith.constant 0 : index
    %c1 = arith.constant 1 : index
    %c0_31 = arith.constant 0 : index
    %c0_32 = arith.constant 0 : index
    %27 = vector.load %arg9[%c0_30, %c1, %c0_31, %c0_32] : memref<1x2x1x4xi32, #tpu.memory_space<vmem>>, vector<1x1x1x4xi32>
    %28 = vector.shape_cast %27 : vector<1x1x1x4xi32> to vector<1x4xi32>
    %29 = vector.broadcast %21 : vector<4x1xi32> to vector<4x4xi32>
    %30 = vector.broadcast %28 : vector<1x4xi32> to vector<4x4xi32>
    %31 = arith.cmpi ne, %29, %30 : vector<4x4xi32>
    %c0_33 = arith.constant 0 : index
    %c1_34 = arith.constant 1 : index
    %c0_35 = arith.constant 0 : index
    %c0_36 = arith.constant 0 : index
    %32 = vector.load %arg8[%c0_33, %c1_34, %c0_35, %c0_36] : memref<1x2x4x1xi32, #tpu.memory_space<vmem>>, vector<1x1x4x1xi32>
    %33 = vector.shape_cast %32 : vector<1x1x4x1xi32> to vector<4x1xi32>
    %c0_37 = arith.constant 0 : index
    %c1_38 = arith.constant 1 : index
    %c0_39 = arith.constant 0 : index
    %c0_40 = arith.constant 0 : index
    %34 = vector.load %arg9[%c0_37, %c1_38, %c0_39, %c0_40] : memref<1x2x1x4xi32, #tpu.memory_space<vmem>>, vector<1x1x1x4xi32>
    %35 = vector.shape_cast %34 : vector<1x1x1x4xi32> to vector<1x4xi32>
    %36 = vector.broadcast %33 : vector<4x1xi32> to vector<4x4xi32>
    %37 = vector.broadcast %35 : vector<1x4xi32> to vector<4x4xi32>
    %38 = arith.cmpi ne, %36, %37 : vector<4x4xi32>
    %c0_41 = arith.constant 0 : index
    %c0_42 = arith.constant 0 : index
    %c0_43 = arith.constant 0 : index
    %c0_44 = arith.constant 0 : index
    %39 = vector.load %arg9[%c0_41, %c0_42, %c0_43, %c0_44] : memref<1x2x1x4xi32, #tpu.memory_space<vmem>>, vector<1x1x1x4xi32>
    %40 = vector.shape_cast %39 : vector<1x1x1x4xi32> to vector<1x4xi32>
    %41 = vector.broadcast %33 : vector<4x1xi32> to vector<4x4xi32>
    %42 = vector.broadcast %40 : vector<1x4xi32> to vector<4x4xi32>
    %43 = arith.cmpi ne, %41, %42 : vector<4x4xi32>
    %c0_45 = arith.constant 0 : index
    %c0_46 = arith.constant 0 : index
    %44 = vector.load %arg11[%c0_45, %c0_46] : memref<12x32xf32, #tpu.memory_space<vmem>>, vector<12x8xf32>
    %c0_47 = arith.constant 0 : index
    %c0_48 = arith.constant 0 : index
    %45 = vector.load %arg12[%c0_47, %c0_48] : memref<12x32xf32, #tpu.memory_space<vmem>>, vector<12x8xf32>
    %c0_49 = arith.constant 0 : index
    %c0_50 = arith.constant 0 : index
    %46 = vector.load %arg13[%c0_49, %c0_50] : memref<12x32xf32, #tpu.memory_space<vmem>>, vector<12x8xf32>
    %47 = vector.extract_strided_slice %44 {offsets = [0, 0], sizes = [4, 8], strides = [1, 1]} : vector<12x8xf32> to vector<4x8xf32>
    %cst_51 = arith.constant dense<0.000000e+00> : vector<4x12xf32>
    %48 = tpu.matmul %47, %45, %cst_51 {dimension_numbers = #tpu.dot_dimension_numbers<[1], [1], [0], [0], [0, 0, 1, 0], [], []>} : vector<4x8xf32>, vector<12x8xf32>, vector<4x12xf32> -> vector<4x12xf32>
    %cst_52 = arith.constant 0.353553385 : f32
    %49 = vector.broadcast %cst_52 : f32 to vector<4x12xf32>
    %50 = arith.mulf %48, %49 : vector<4x12xf32>
    %cst_53 = arith.constant dense<0xFF800000> : vector<4xf32>
    %51 = vector.multi_reduction <maximumf>, %50, %cst_53 [1] : vector<4x12xf32> to vector<4xf32>
    %52 = vector.shape_cast %51 : vector<4xf32> to vector<4x1xf32>
    %53 = vector.broadcast %52 : vector<4x1xf32> to vector<4x12xf32>
    %54 = arith.subf %50, %53 : vector<4x12xf32>
    %55 = math.exp %54 : vector<4x12xf32>
    %cst_54 = arith.constant dense<0.000000e+00> : vector<4xf32>
    %56 = vector.multi_reduction <add>, %55, %cst_54 [1] : vector<4x12xf32> to vector<4xf32>
    %57 = vector.shape_cast %56 : vector<4xf32> to vector<4x1xf32>
    %58 = tpu.reciprocal %57 {approx = true} : vector<4x1xf32> -> vector<4x1xf32>
    %59 = vector.broadcast %58 : vector<4x1xf32> to vector<4x12xf32>
    %60 = arith.mulf %55, %59 : vector<4x12xf32>
    %cst_55 = arith.constant dense<0.000000e+00> : vector<4x8xf32>
    %61 = tpu.matmul %60, %46, %cst_55 {dimension_numbers = #tpu.dot_dimension_numbers<[1], [0], [0], [1], [0, 0, 1, 1], [], []>} : vector<4x12xf32>, vector<12x8xf32>, vector<4x8xf32> -> vector<4x8xf32>
    %62 = vector.extract_strided_slice %45 {offsets = [0, 0], sizes = [4, 8], strides = [1, 1]} : vector<12x8xf32> to vector<4x8xf32>
    %63 = vector.extract_strided_slice %46 {offsets = [0, 0], sizes = [4, 8], strides = [1, 1]} : vector<12x8xf32> to vector<4x8xf32>
    %64 = vector.extract_strided_slice %44 {offsets = [4, 0], sizes = [8, 8], strides = [1, 1]} : vector<12x8xf32> to vector<8x8xf32>
    %cst_56 = arith.constant dense<0.000000e+00> : vector<8x4xf32>
    %65 = tpu.matmul %64, %62, %cst_56 {dimension_numbers = #tpu.dot_dimension_numbers<[1], [1], [0], [0], [0, 0, 1, 0], [], []>} : vector<8x8xf32>, vector<4x8xf32>, vector<8x4xf32> -> vector<8x4xf32>
    %cst_57 = arith.constant 0.353553385 : f32
    %66 = vector.broadcast %cst_57 : f32 to vector<8x4xf32>
    %67 = arith.mulf %65, %66 : vector<8x4xf32>
    %68 = vector.extract_strided_slice %44 {offsets = [4, 0], sizes = [4, 8], strides = [1, 1]} : vector<12x8xf32> to vector<4x8xf32>
    %69 = vector.extract_strided_slice %45 {offsets = [4, 0], sizes = [4, 8], strides = [1, 1]} : vector<12x8xf32> to vector<4x8xf32>
    %70 = vector.extract_strided_slice %46 {offsets = [4, 0], sizes = [4, 8], strides = [1, 1]} : vector<12x8xf32> to vector<4x8xf32>
    %71 = vector.extract_strided_slice %45 {offsets = [8, 0], sizes = [4, 8], strides = [1, 1]} : vector<12x8xf32> to vector<4x8xf32>
    %72 = vector.extract_strided_slice %46 {offsets = [8, 0], sizes = [4, 8], strides = [1, 1]} : vector<12x8xf32> to vector<4x8xf32>
    %73 = vector.extract_strided_slice %67 {offsets = [0, 0], sizes = [4, 4], strides = [1, 1]} : vector<8x4xf32> to vector<4x4xf32>
    %cst_58 = arith.constant dense<0.000000e+00> : vector<4x4xf32>
    %74 = tpu.matmul %68, %71, %cst_58 {dimension_numbers = #tpu.dot_dimension_numbers<[1], [1], [0], [0], [0, 0, 1, 0], [], []>} : vector<4x8xf32>, vector<4x8xf32>, vector<4x4xf32> -> vector<4x4xf32>
    %cst_59 = arith.constant 0.353553385 : f32
    %75 = vector.broadcast %cst_59 : f32 to vector<4x4xf32>
    %76 = arith.mulf %74, %75 : vector<4x4xf32>
    %cst_60 = arith.constant dense<0.000000e+00> : vector<4x4xf32>
    %77 = tpu.matmul %68, %69, %cst_60 {dimension_numbers = #tpu.dot_dimension_numbers<[1], [1], [0], [0], [0, 0, 1, 0], [], []>} : vector<4x8xf32>, vector<4x8xf32>, vector<4x4xf32> -> vector<4x4xf32>
    %cst_61 = arith.constant 0.353553385 : f32
    %78 = vector.broadcast %cst_61 : f32 to vector<4x4xf32>
    %79 = arith.mulf %77, %78 : vector<4x4xf32>
    %cst_62 = arith.constant -2.38197633E+38 : f32
    %80 = vector.broadcast %cst_62 : f32 to vector<4x4xf32>
    %81 = arith.select %31, %80, %76 : vector<4x4xi1>, vector<4x4xf32>
    %cst_63 = arith.constant -2.38197633E+38 : f32
    %82 = vector.broadcast %cst_63 : f32 to vector<4x4xf32>
    %83 = arith.select %26, %82, %79 : vector<4x4xi1>, vector<4x4xf32>
    %cst_64 = arith.constant dense<0xFF800000> : vector<4xf32>
    %84 = vector.multi_reduction <maximumf>, %73, %cst_64 [1] : vector<4x4xf32> to vector<4xf32>
    %85 = vector.shape_cast %84 : vector<4xf32> to vector<4x1xf32>
    %cst_65 = arith.constant dense<0xFF800000> : vector<4xf32>
    %86 = vector.multi_reduction <maximumf>, %81, %cst_65 [1] : vector<4x4xf32> to vector<4xf32>
    %87 = vector.shape_cast %86 : vector<4xf32> to vector<4x1xf32>
    %cst_66 = arith.constant dense<0xFF800000> : vector<4xf32>
    %88 = vector.multi_reduction <maximumf>, %83, %cst_66 [1] : vector<4x4xf32> to vector<4xf32>
    %89 = vector.shape_cast %88 : vector<4xf32> to vector<4x1xf32>
    %90 = arith.maximumf %87, %89 : vector<4x1xf32>
    %91 = arith.maximumf %85, %90 : vector<4x1xf32>
    %92 = vector.broadcast %91 : vector<4x1xf32> to vector<4x4xf32>
    %93 = arith.subf %73, %92 : vector<4x4xf32>
    %94 = math.exp %93 : vector<4x4xf32>
    %95 = vector.broadcast %91 : vector<4x1xf32> to vector<4x4xf32>
    %96 = arith.subf %81, %95 : vector<4x4xf32>
    %97 = math.exp %96 : vector<4x4xf32>
    %98 = vector.broadcast %91 : vector<4x1xf32> to vector<4x4xf32>
    %99 = arith.subf %83, %98 : vector<4x4xf32>
    %100 = math.exp %99 : vector<4x4xf32>
    %cst_67 = arith.constant dense<0.000000e+00> : vector<4xf32>
    %101 = vector.multi_reduction <add>, %94, %cst_67 [1] : vector<4x4xf32> to vector<4xf32>
    %102 = vector.shape_cast %101 : vector<4xf32> to vector<4x1xf32>
    %cst_68 = arith.constant dense<0.000000e+00> : vector<4xf32>
    %103 = vector.multi_reduction <add>, %97, %cst_68 [1] : vector<4x4xf32> to vector<4xf32>
    %104 = vector.shape_cast %103 : vector<4xf32> to vector<4x1xf32>
    %105 = arith.addf %102, %104 : vector<4x1xf32>
    %cst_69 = arith.constant dense<0.000000e+00> : vector<4xf32>
    %106 = vector.multi_reduction <add>, %100, %cst_69 [1] : vector<4x4xf32> to vector<4xf32>
    %107 = vector.shape_cast %106 : vector<4xf32> to vector<4x1xf32>
    %108 = arith.addf %105, %107 : vector<4x1xf32>
    %109 = tpu.reciprocal %108 {approx = true} : vector<4x1xf32> -> vector<4x1xf32>
    %cst_70 = arith.constant dense<0.000000e+00> : vector<4x8xf32>
    %110 = tpu.matmul %94, %63, %cst_70 {dimension_numbers = #tpu.dot_dimension_numbers<[1], [0], [0], [1], [0, 0, 1, 1], [], []>} : vector<4x4xf32>, vector<4x8xf32>, vector<4x8xf32> -> vector<4x8xf32>
    %cst_71 = arith.constant dense<0.000000e+00> : vector<4x8xf32>
    %111 = tpu.matmul %97, %72, %cst_71 {dimension_numbers = #tpu.dot_dimension_numbers<[1], [0], [0], [1], [0, 0, 1, 1], [], []>} : vector<4x4xf32>, vector<4x8xf32>, vector<4x8xf32> -> vector<4x8xf32>
    %112 = arith.addf %110, %111 : vector<4x8xf32>
    %cst_72 = arith.constant dense<0.000000e+00> : vector<4x8xf32>
    %113 = tpu.matmul %100, %70, %cst_72 {dimension_numbers = #tpu.dot_dimension_numbers<[1], [0], [0], [1], [0, 0, 1, 1], [], []>} : vector<4x4xf32>, vector<4x8xf32>, vector<4x8xf32> -> vector<4x8xf32>
    %114 = arith.addf %112, %113 : vector<4x8xf32>
    %115 = vector.broadcast %109 : vector<4x1xf32> to vector<4x8xf32>
    %116 = arith.mulf %114, %115 : vector<4x8xf32>
    %117 = vector.extract_strided_slice %44 {offsets = [8, 0], sizes = [4, 8], strides = [1, 1]} : vector<12x8xf32> to vector<4x8xf32>
    %118 = vector.extract_strided_slice %45 {offsets = [8, 0], sizes = [4, 8], strides = [1, 1]} : vector<12x8xf32> to vector<4x8xf32>
    %119 = vector.extract_strided_slice %46 {offsets = [8, 0], sizes = [4, 8], strides = [1, 1]} : vector<12x8xf32> to vector<4x8xf32>
    %120 = vector.extract_strided_slice %45 {offsets = [4, 0], sizes = [4, 8], strides = [1, 1]} : vector<12x8xf32> to vector<4x8xf32>
    %121 = vector.extract_strided_slice %46 {offsets = [4, 0], sizes = [4, 8], strides = [1, 1]} : vector<12x8xf32> to vector<4x8xf32>
    %122 = vector.extract_strided_slice %67 {offsets = [4, 0], sizes = [4, 4], strides = [1, 1]} : vector<8x4xf32> to vector<4x4xf32>
    %cst_73 = arith.constant dense<0.000000e+00> : vector<4x4xf32>
    %123 = tpu.matmul %117, %120, %cst_73 {dimension_numbers = #tpu.dot_dimension_numbers<[1], [1], [0], [0], [0, 0, 1, 0], [], []>} : vector<4x8xf32>, vector<4x8xf32>, vector<4x4xf32> -> vector<4x4xf32>
    %cst_74 = arith.constant 0.353553385 : f32
    %124 = vector.broadcast %cst_74 : f32 to vector<4x4xf32>
    %125 = arith.mulf %123, %124 : vector<4x4xf32>
    %cst_75 = arith.constant dense<0.000000e+00> : vector<4x4xf32>
    %126 = tpu.matmul %117, %118, %cst_75 {dimension_numbers = #tpu.dot_dimension_numbers<[1], [1], [0], [0], [0, 0, 1, 0], [], []>} : vector<4x8xf32>, vector<4x8xf32>, vector<4x4xf32> -> vector<4x4xf32>
    %cst_76 = arith.constant 0.353553385 : f32
    %127 = vector.broadcast %cst_76 : f32 to vector<4x4xf32>
    %128 = arith.mulf %126, %127 : vector<4x4xf32>
    %cst_77 = arith.constant -2.38197633E+38 : f32
    %129 = vector.broadcast %cst_77 : f32 to vector<4x4xf32>
    %130 = arith.select %43, %129, %125 : vector<4x4xi1>, vector<4x4xf32>
    %cst_78 = arith.constant -2.38197633E+38 : f32
    %131 = vector.broadcast %cst_78 : f32 to vector<4x4xf32>
    %132 = arith.select %38, %131, %128 : vector<4x4xi1>, vector<4x4xf32>
    %cst_79 = arith.constant dense<0xFF800000> : vector<4xf32>
    %133 = vector.multi_reduction <maximumf>, %122, %cst_79 [1] : vector<4x4xf32> to vector<4xf32>
    %134 = vector.shape_cast %133 : vector<4xf32> to vector<4x1xf32>
    %cst_80 = arith.constant dense<0xFF800000> : vector<4xf32>
    %135 = vector.multi_reduction <maximumf>, %130, %cst_80 [1] : vector<4x4xf32> to vector<4xf32>
    %136 = vector.shape_cast %135 : vector<4xf32> to vector<4x1xf32>
    %cst_81 = arith.constant dense<0xFF800000> : vector<4xf32>
    %137 = vector.multi_reduction <maximumf>, %132, %cst_81 [1] : vector<4x4xf32> to vector<4xf32>
    %138 = vector.shape_cast %137 : vector<4xf32> to vector<4x1xf32>
    %139 = arith.maximumf %136, %138 : vector<4x1xf32>
    %140 = arith.maximumf %134, %139 : vector<4x1xf32>
    %141 = vector.broadcast %140 : vector<4x1xf32> to vector<4x4xf32>
    %142 = arith.subf %122, %141 : vector<4x4xf32>
    %143 = math.exp %142 : vector<4x4xf32>
    %144 = vector.broadcast %140 : vector<4x1xf32> to vector<4x4xf32>
    %145 = arith.subf %130, %144 : vector<4x4xf32>
    %146 = math.exp %145 : vector<4x4xf32>
    %147 = vector.broadcast %140 : vector<4x1xf32> to vector<4x4xf32>
    %148 = arith.subf %132, %147 : vector<4x4xf32>
    %149 = math.exp %148 : vector<4x4xf32>
    %cst_82 = arith.constant dense<0.000000e+00> : vector<4xf32>
    %150 = vector.multi_reduction <add>, %143, %cst_82 [1] : vector<4x4xf32> to vector<4xf32>
    %151 = vector.shape_cast %150 : vector<4xf32> to vector<4x1xf32>
    %cst_83 = arith.constant dense<0.000000e+00> : vector<4xf32>
    %152 = vector.multi_reduction <add>, %146, %cst_83 [1] : vector<4x4xf32> to vector<4xf32>
    %153 = vector.shape_cast %152 : vector<4xf32> to vector<4x1xf32>
    %154 = arith.addf %151, %153 : vector<4x1xf32>
    %cst_84 = arith.constant dense<0.000000e+00> : vector<4xf32>
    %155 = vector.multi_reduction <add>, %149, %cst_84 [1] : vector<4x4xf32> to vector<4xf32>
    %156 = vector.shape_cast %155 : vector<4xf32> to vector<4x1xf32>
    %157 = arith.addf %154, %156 : vector<4x1xf32>
    %158 = tpu.reciprocal %157 {approx = true} : vector<4x1xf32> -> vector<4x1xf32>
    %cst_85 = arith.constant dense<0.000000e+00> : vector<4x8xf32>
    %159 = tpu.matmul %143, %63, %cst_85 {dimension_numbers = #tpu.dot_dimension_numbers<[1], [0], [0], [1], [0, 0, 1, 1], [], []>} : vector<4x4xf32>, vector<4x8xf32>, vector<4x8xf32> -> vector<4x8xf32>
    %cst_86 = arith.constant dense<0.000000e+00> : vector<4x8xf32>
    %160 = tpu.matmul %146, %121, %cst_86 {dimension_numbers = #tpu.dot_dimension_numbers<[1], [0], [0], [1], [0, 0, 1, 1], [], []>} : vector<4x4xf32>, vector<4x8xf32>, vector<4x8xf32> -> vector<4x8xf32>
    %161 = arith.addf %159, %160 : vector<4x8xf32>
    %cst_87 = arith.constant dense<0.000000e+00> : vector<4x8xf32>
    %162 = tpu.matmul %149, %119, %cst_87 {dimension_numbers = #tpu.dot_dimension_numbers<[1], [0], [0], [1], [0, 0, 1, 1], [], []>} : vector<4x4xf32>, vector<4x8xf32>, vector<4x8xf32> -> vector<4x8xf32>
    %163 = arith.addf %161, %162 : vector<4x8xf32>
    %164 = vector.broadcast %158 : vector<4x1xf32> to vector<4x8xf32>
    %165 = arith.mulf %163, %164 : vector<4x8xf32>
    %c0_88 = arith.constant 0 : index
    %c8 = arith.constant 8 : index
    %166 = vector.load %arg11[%c0_88, %c8] : memref<12x32xf32, #tpu.memory_space<vmem>>, vector<12x8xf32>
    %c0_89 = arith.constant 0 : index
    %c8_90 = arith.constant 8 : index
    %167 = vector.load %arg12[%c0_89, %c8_90] : memref<12x32xf32, #tpu.memory_space<vmem>>, vector<12x8xf32>
    %c0_91 = arith.constant 0 : index
    %c8_92 = arith.constant 8 : index
    %168 = vector.load %arg13[%c0_91, %c8_92] : memref<12x32xf32, #tpu.memory_space<vmem>>, vector<12x8xf32>
    %169 = vector.extract_strided_slice %166 {offsets = [0, 0], sizes = [4, 8], strides = [1, 1]} : vector<12x8xf32> to vector<4x8xf32>
    %cst_93 = arith.constant dense<0.000000e+00> : vector<4x12xf32>
    %170 = tpu.matmul %169, %167, %cst_93 {dimension_numbers = #tpu.dot_dimension_numbers<[1], [1], [0], [0], [0, 0, 1, 0], [], []>} : vector<4x8xf32>, vector<12x8xf32>, vector<4x12xf32> -> vector<4x12xf32>
    %cst_94 = arith.constant 0.353553385 : f32
    %171 = vector.broadcast %cst_94 : f32 to vector<4x12xf32>
    %172 = arith.mulf %170, %171 : vector<4x12xf32>
    %cst_95 = arith.constant dense<0xFF800000> : vector<4xf32>
    %173 = vector.multi_reduction <maximumf>, %172, %cst_95 [1] : vector<4x12xf32> to vector<4xf32>
    %174 = vector.shape_cast %173 : vector<4xf32> to vector<4x1xf32>
    %175 = vector.broadcast %174 : vector<4x1xf32> to vector<4x12xf32>
    %176 = arith.subf %172, %175 : vector<4x12xf32>
    %177 = math.exp %176 : vector<4x12xf32>
    %cst_96 = arith.constant dense<0.000000e+00> : vector<4xf32>
    %178 = vector.multi_reduction <add>, %177, %cst_96 [1] : vector<4x12xf32> to vector<4xf32>
    %179 = vector.shape_cast %178 : vector<4xf32> to vector<4x1xf32>
    %180 = tpu.reciprocal %179 {approx = true} : vector<4x1xf32> -> vector<4x1xf32>
    %181 = vector.broadcast %180 : vector<4x1xf32> to vector<4x12xf32>
    %182 = arith.mulf %177, %181 : vector<4x12xf32>
    %cst_97 = arith.constant dense<0.000000e+00> : vector<4x8xf32>
    %183 = tpu.matmul %182, %168, %cst_97 {dimension_numbers = #tpu.dot_dimension_numbers<[1], [0], [0], [1], [0, 0, 1, 1], [], []>} : vector<4x12xf32>, vector<12x8xf32>, vector<4x8xf32> -> vector<4x8xf32>
    %184 = vector.extract_strided_slice %167 {offsets = [0, 0], sizes = [4, 8], strides = [1, 1]} : vector<12x8xf32> to vector<4x8xf32>
    %185 = vector.extract_strided_slice %168 {offsets = [0, 0], sizes = [4, 8], strides = [1, 1]} : vector<12x8xf32> to vector<4x8xf32>
    %186 = vector.extract_strided_slice %166 {offsets = [4, 0], sizes = [8, 8], strides = [1, 1]} : vector<12x8xf32> to vector<8x8xf32>
    %cst_98 = arith.constant dense<0.000000e+00> : vector<8x4xf32>
    %187 = tpu.matmul %186, %184, %cst_98 {dimension_numbers = #tpu.dot_dimension_numbers<[1], [1], [0], [0], [0, 0, 1, 0], [], []>} : vector<8x8xf32>, vector<4x8xf32>, vector<8x4xf32> -> vector<8x4xf32>
    %cst_99 = arith.constant 0.353553385 : f32
    %188 = vector.broadcast %cst_99 : f32 to vector<8x4xf32>
    %189 = arith.mulf %187, %188 : vector<8x4xf32>
    %190 = vector.extract_strided_slice %166 {offsets = [4, 0], sizes = [4, 8], strides = [1, 1]} : vector<12x8xf32> to vector<4x8xf32>
    %191 = vector.extract_strided_slice %167 {offsets = [4, 0], sizes = [4, 8], strides = [1, 1]} : vector<12x8xf32> to vector<4x8xf32>
    %192 = vector.extract_strided_slice %168 {offsets = [4, 0], sizes = [4, 8], strides = [1, 1]} : vector<12x8xf32> to vector<4x8xf32>
    %193 = vector.extract_strided_slice %167 {offsets = [8, 0], sizes = [4, 8], strides = [1, 1]} : vector<12x8xf32> to vector<4x8xf32>
    %194 = vector.extract_strided_slice %168 {offsets = [8, 0], sizes = [4, 8], strides = [1, 1]} : vector<12x8xf32> to vector<4x8xf32>
    %195 = vector.extract_strided_slice %189 {offsets = [0, 0], sizes = [4, 4], strides = [1, 1]} : vector<8x4xf32> to vector<4x4xf32>
    %cst_100 = arith.constant dense<0.000000e+00> : vector<4x4xf32>
    %196 = tpu.matmul %190, %193, %cst_100 {dimension_numbers = #tpu.dot_dimension_numbers<[1], [1], [0], [0], [0, 0, 1, 0], [], []>} : vector<4x8xf32>, vector<4x8xf32>, vector<4x4xf32> -> vector<4x4xf32>
    %cst_101 = arith.constant 0.353553385 : f32
    %197 = vector.broadcast %cst_101 : f32 to vector<4x4xf32>
    %198 = arith.mulf %196, %197 : vector<4x4xf32>
    %cst_102 = arith.constant dense<0.000000e+00> : vector<4x4xf32>
    %199 = tpu.matmul %190, %191, %cst_102 {dimension_numbers = #tpu.dot_dimension_numbers<[1], [1], [0], [0], [0, 0, 1, 0], [], []>} : vector<4x8xf32>, vector<4x8xf32>, vector<4x4xf32> -> vector<4x4xf32>
    %cst_103 = arith.constant 0.353553385 : f32
    %200 = vector.broadcast %cst_103 : f32 to vector<4x4xf32>
    %201 = arith.mulf %199, %200 : vector<4x4xf32>
    %cst_104 = arith.constant -2.38197633E+38 : f32
    %202 = vector.broadcast %cst_104 : f32 to vector<4x4xf32>
    %203 = arith.select %31, %202, %198 : vector<4x4xi1>, vector<4x4xf32>
    %cst_105 = arith.constant -2.38197633E+38 : f32
    %204 = vector.broadcast %cst_105 : f32 to vector<4x4xf32>
    %205 = arith.select %26, %204, %201 : vector<4x4xi1>, vector<4x4xf32>
    %cst_106 = arith.constant dense<0xFF800000> : vector<4xf32>
    %206 = vector.multi_reduction <maximumf>, %195, %cst_106 [1] : vector<4x4xf32> to vector<4xf32>
    %207 = vector.shape_cast %206 : vector<4xf32> to vector<4x1xf32>
    %cst_107 = arith.constant dense<0xFF800000> : vector<4xf32>
    %208 = vector.multi_reduction <maximumf>, %203, %cst_107 [1] : vector<4x4xf32> to vector<4xf32>
    %209 = vector.shape_cast %208 : vector<4xf32> to vector<4x1xf32>
    %cst_108 = arith.constant dense<0xFF800000> : vector<4xf32>
    %210 = vector.multi_reduction <maximumf>, %205, %cst_108 [1] : vector<4x4xf32> to vector<4xf32>
    %211 = vector.shape_cast %210 : vector<4xf32> to vector<4x1xf32>
    %212 = arith.maximumf %209, %211 : vector<4x1xf32>
    %213 = arith.maximumf %207, %212 : vector<4x1xf32>
    %214 = vector.broadcast %213 : vector<4x1xf32> to vector<4x4xf32>
    %215 = arith.subf %195, %214 : vector<4x4xf32>
    %216 = math.exp %215 : vector<4x4xf32>
    %217 = vector.broadcast %213 : vector<4x1xf32> to vector<4x4xf32>
    %218 = arith.subf %203, %217 : vector<4x4xf32>
    %219 = math.exp %218 : vector<4x4xf32>
    %220 = vector.broadcast %213 : vector<4x1xf32> to vector<4x4xf32>
    %221 = arith.subf %205, %220 : vector<4x4xf32>
    %222 = math.exp %221 : vector<4x4xf32>
    %cst_109 = arith.constant dense<0.000000e+00> : vector<4xf32>
    %223 = vector.multi_reduction <add>, %216, %cst_109 [1] : vector<4x4xf32> to vector<4xf32>
    %224 = vector.shape_cast %223 : vector<4xf32> to vector<4x1xf32>
    %cst_110 = arith.constant dense<0.000000e+00> : vector<4xf32>
    %225 = vector.multi_reduction <add>, %219, %cst_110 [1] : vector<4x4xf32> to vector<4xf32>
    %226 = vector.shape_cast %225 : vector<4xf32> to vector<4x1xf32>
    %227 = arith.addf %224, %226 : vector<4x1xf32>
    %cst_111 = arith.constant dense<0.000000e+00> : vector<4xf32>
    %228 = vector.multi_reduction <add>, %222, %cst_111 [1] : vector<4x4xf32> to vector<4xf32>
    %229 = vector.shape_cast %228 : vector<4xf32> to vector<4x1xf32>
    %230 = arith.addf %227, %229 : vector<4x1xf32>
    %231 = tpu.reciprocal %230 {approx = true} : vector<4x1xf32> -> vector<4x1xf32>
    %cst_112 = arith.constant dense<0.000000e+00> : vector<4x8xf32>
    %232 = tpu.matmul %216, %185, %cst_112 {dimension_numbers = #tpu.dot_dimension_numbers<[1], [0], [0], [1], [0, 0, 1, 1], [], []>} : vector<4x4xf32>, vector<4x8xf32>, vector<4x8xf32> -> vector<4x8xf32>
    %cst_113 = arith.constant dense<0.000000e+00> : vector<4x8xf32>
    %233 = tpu.matmul %219, %194, %cst_113 {dimension_numbers = #tpu.dot_dimension_numbers<[1], [0], [0], [1], [0, 0, 1, 1], [], []>} : vector<4x4xf32>, vector<4x8xf32>, vector<4x8xf32> -> vector<4x8xf32>
    %234 = arith.addf %232, %233 : vector<4x8xf32>
    %cst_114 = arith.constant dense<0.000000e+00> : vector<4x8xf32>
    %235 = tpu.matmul %222, %192, %cst_114 {dimension_numbers = #tpu.dot_dimension_numbers<[1], [0], [0], [1], [0, 0, 1, 1], [], []>} : vector<4x4xf32>, vector<4x8xf32>, vector<4x8xf32> -> vector<4x8xf32>
    %236 = arith.addf %234, %235 : vector<4x8xf32>
    %237 = vector.broadcast %231 : vector<4x1xf32> to vector<4x8xf32>
    %238 = arith.mulf %236, %237 : vector<4x8xf32>
    %239 = vector.extract_strided_slice %166 {offsets = [8, 0], sizes = [4, 8], strides = [1, 1]} : vector<12x8xf32> to vector<4x8xf32>
    %240 = vector.extract_strided_slice %167 {offsets = [8, 0], sizes = [4, 8], strides = [1, 1]} : vector<12x8xf32> to vector<4x8xf32>
    %241 = vector.extract_strided_slice %168 {offsets = [8, 0], sizes = [4, 8], strides = [1, 1]} : vector<12x8xf32> to vector<4x8xf32>
    %242 = vector.extract_strided_slice %167 {offsets = [4, 0], sizes = [4, 8], strides = [1, 1]} : vector<12x8xf32> to vector<4x8xf32>
    %243 = vector.extract_strided_slice %168 {offsets = [4, 0], sizes = [4, 8], strides = [1, 1]} : vector<12x8xf32> to vector<4x8xf32>
    %244 = vector.extract_strided_slice %189 {offsets = [4, 0], sizes = [4, 4], strides = [1, 1]} : vector<8x4xf32> to vector<4x4xf32>
    %cst_115 = arith.constant dense<0.000000e+00> : vector<4x4xf32>
    %245 = tpu.matmul %239, %242, %cst_115 {dimension_numbers = #tpu.dot_dimension_numbers<[1], [1], [0], [0], [0, 0, 1, 0], [], []>} : vector<4x8xf32>, vector<4x8xf32>, vector<4x4xf32> -> vector<4x4xf32>
    %cst_116 = arith.constant 0.353553385 : f32
    %246 = vector.broadcast %cst_116 : f32 to vector<4x4xf32>
    %247 = arith.mulf %245, %246 : vector<4x4xf32>
    %cst_117 = arith.constant dense<0.000000e+00> : vector<4x4xf32>
    %248 = tpu.matmul %239, %240, %cst_117 {dimension_numbers = #tpu.dot_dimension_numbers<[1], [1], [0], [0], [0, 0, 1, 0], [], []>} : vector<4x8xf32>, vector<4x8xf32>, vector<4x4xf32> -> vector<4x4xf32>
    %cst_118 = arith.constant 0.353553385 : f32
    %249 = vector.broadcast %cst_118 : f32 to vector<4x4xf32>
    %250 = arith.mulf %248, %249 : vector<4x4xf32>
    %cst_119 = arith.constant -2.38197633E+38 : f32
    %251 = vector.broadcast %cst_119 : f32 to vector<4x4xf32>
    %252 = arith.select %43, %251, %247 : vector<4x4xi1>, vector<4x4xf32>
    %cst_120 = arith.constant -2.38197633E+38 : f32
    %253 = vector.broadcast %cst_120 : f32 to vector<4x4xf32>
    %254 = arith.select %38, %253, %250 : vector<4x4xi1>, vector<4x4xf32>
    %cst_121 = arith.constant dense<0xFF800000> : vector<4xf32>
    %255 = vector.multi_reduction <maximumf>, %244, %cst_121 [1] : vector<4x4xf32> to vector<4xf32>
    %256 = vector.shape_cast %255 : vector<4xf32> to vector<4x1xf32>
    %cst_122 = arith.constant dense<0xFF800000> : vector<4xf32>
    %257 = vector.multi_reduction <maximumf>, %252, %cst_122 [1] : vector<4x4xf32> to vector<4xf32>
    %258 = vector.shape_cast %257 : vector<4xf32> to vector<4x1xf32>
    %cst_123 = arith.constant dense<0xFF800000> : vector<4xf32>
    %259 = vector.multi_reduction <maximumf>, %254, %cst_123 [1] : vector<4x4xf32> to vector<4xf32>
    %260 = vector.shape_cast %259 : vector<4xf32> to vector<4x1xf32>
    %261 = arith.maximumf %258, %260 : vector<4x1xf32>
    %262 = arith.maximumf %256, %261 : vector<4x1xf32>
    %263 = vector.broadcast %262 : vector<4x1xf32> to vector<4x4xf32>
    %264 = arith.subf %244, %263 : vector<4x4xf32>
    %265 = math.exp %264 : vector<4x4xf32>
    %266 = vector.broadcast %262 : vector<4x1xf32> to vector<4x4xf32>
    %267 = arith.subf %252, %266 : vector<4x4xf32>
    %268 = math.exp %267 : vector<4x4xf32>
    %269 = vector.broadcast %262 : vector<4x1xf32> to vector<4x4xf32>
    %270 = arith.subf %254, %269 : vector<4x4xf32>
    %271 = math.exp %270 : vector<4x4xf32>
    %cst_124 = arith.constant dense<0.000000e+00> : vector<4xf32>
    %272 = vector.multi_reduction <add>, %265, %cst_124 [1] : vector<4x4xf32> to vector<4xf32>
    %273 = vector.shape_cast %272 : vector<4xf32> to vector<4x1xf32>
    %cst_125 = arith.constant dense<0.000000e+00> : vector<4xf32>
    %274 = vector.multi_reduction <add>, %268, %cst_125 [1] : vector<4x4xf32> to vector<4xf32>
    %275 = vector.shape_cast %274 : vector<4xf32> to vector<4x1xf32>
    %276 = arith.addf %273, %275 : vector<4x1xf32>
    %cst_126 = arith.constant dense<0.000000e+00> : vector<4xf32>
    %277 = vector.multi_reduction <add>, %271, %cst_126 [1] : vector<4x4xf32> to vector<4xf32>
    %278 = vector.shape_cast %277 : vector<4xf32> to vector<4x1xf32>
    %279 = arith.addf %276, %278 : vector<4x1xf32>
    %280 = tpu.reciprocal %279 {approx = true} : vector<4x1xf32> -> vector<4x1xf32>
    %cst_127 = arith.constant dense<0.000000e+00> : vector<4x8xf32>
    %281 = tpu.matmul %265, %185, %cst_127 {dimension_numbers = #tpu.dot_dimension_numbers<[1], [0], [0], [1], [0, 0, 1, 1], [], []>} : vector<4x4xf32>, vector<4x8xf32>, vector<4x8xf32> -> vector<4x8xf32>
    %cst_128 = arith.constant dense<0.000000e+00> : vector<4x8xf32>
    %282 = tpu.matmul %268, %243, %cst_128 {dimension_numbers = #tpu.dot_dimension_numbers<[1], [0], [0], [1], [0, 0, 1, 1], [], []>} : vector<4x4xf32>, vector<4x8xf32>, vector<4x8xf32> -> vector<4x8xf32>
    %283 = arith.addf %281, %282 : vector<4x8xf32>
    %cst_129 = arith.constant dense<0.000000e+00> : vector<4x8xf32>
    %284 = tpu.matmul %271, %241, %cst_129 {dimension_numbers = #tpu.dot_dimension_numbers<[1], [0], [0], [1], [0, 0, 1, 1], [], []>} : vector<4x4xf32>, vector<4x8xf32>, vector<4x8xf32> -> vector<4x8xf32>
    %285 = arith.addf %283, %284 : vector<4x8xf32>
    %286 = vector.broadcast %280 : vector<4x1xf32> to vector<4x8xf32>
    %287 = arith.mulf %285, %286 : vector<4x8xf32>
    %c0_130 = arith.constant 0 : index
    %c16 = arith.constant 16 : index
    %288 = vector.load %arg11[%c0_130, %c16] : memref<12x32xf32, #tpu.memory_space<vmem>>, vector<12x8xf32>
    %c0_131 = arith.constant 0 : index
    %c16_132 = arith.constant 16 : index
    %289 = vector.load %arg12[%c0_131, %c16_132] : memref<12x32xf32, #tpu.memory_space<vmem>>, vector<12x8xf32>
    %c0_133 = arith.constant 0 : index
    %c16_134 = arith.constant 16 : index
    %290 = vector.load %arg13[%c0_133, %c16_134] : memref<12x32xf32, #tpu.memory_space<vmem>>, vector<12x8xf32>
    %291 = vector.extract_strided_slice %288 {offsets = [0, 0], sizes = [4, 8], strides = [1, 1]} : vector<12x8xf32> to vector<4x8xf32>
    %cst_135 = arith.constant dense<0.000000e+00> : vector<4x12xf32>
    %292 = tpu.matmul %291, %289, %cst_135 {dimension_numbers = #tpu.dot_dimension_numbers<[1], [1], [0], [0], [0, 0, 1, 0], [], []>} : vector<4x8xf32>, vector<12x8xf32>, vector<4x12xf32> -> vector<4x12xf32>
    %cst_136 = arith.constant 0.353553385 : f32
    %293 = vector.broadcast %cst_136 : f32 to vector<4x12xf32>
    %294 = arith.mulf %292, %293 : vector<4x12xf32>
    %cst_137 = arith.constant dense<0xFF800000> : vector<4xf32>
    %295 = vector.multi_reduction <maximumf>, %294, %cst_137 [1] : vector<4x12xf32> to vector<4xf32>
    %296 = vector.shape_cast %295 : vector<4xf32> to vector<4x1xf32>
    %297 = vector.broadcast %296 : vector<4x1xf32> to vector<4x12xf32>
    %298 = arith.subf %294, %297 : vector<4x12xf32>
    %299 = math.exp %298 : vector<4x12xf32>
    %cst_138 = arith.constant dense<0.000000e+00> : vector<4xf32>
    %300 = vector.multi_reduction <add>, %299, %cst_138 [1] : vector<4x12xf32> to vector<4xf32>
    %301 = vector.shape_cast %300 : vector<4xf32> to vector<4x1xf32>
    %302 = tpu.reciprocal %301 {approx = true} : vector<4x1xf32> -> vector<4x1xf32>
    %303 = vector.broadcast %302 : vector<4x1xf32> to vector<4x12xf32>
    %304 = arith.mulf %299, %303 : vector<4x12xf32>
    %cst_139 = arith.constant dense<0.000000e+00> : vector<4x8xf32>
    %305 = tpu.matmul %304, %290, %cst_139 {dimension_numbers = #tpu.dot_dimension_numbers<[1], [0], [0], [1], [0, 0, 1, 1], [], []>} : vector<4x12xf32>, vector<12x8xf32>, vector<4x8xf32> -> vector<4x8xf32>
    %306 = vector.extract_strided_slice %289 {offsets = [0, 0], sizes = [4, 8], strides = [1, 1]} : vector<12x8xf32> to vector<4x8xf32>
    %307 = vector.extract_strided_slice %290 {offsets = [0, 0], sizes = [4, 8], strides = [1, 1]} : vector<12x8xf32> to vector<4x8xf32>
    %308 = vector.extract_strided_slice %288 {offsets = [4, 0], sizes = [8, 8], strides = [1, 1]} : vector<12x8xf32> to vector<8x8xf32>
    %cst_140 = arith.constant dense<0.000000e+00> : vector<8x4xf32>
    %309 = tpu.matmul %308, %306, %cst_140 {dimension_numbers = #tpu.dot_dimension_numbers<[1], [1], [0], [0], [0, 0, 1, 0], [], []>} : vector<8x8xf32>, vector<4x8xf32>, vector<8x4xf32> -> vector<8x4xf32>
    %cst_141 = arith.constant 0.353553385 : f32
    %310 = vector.broadcast %cst_141 : f32 to vector<8x4xf32>
    %311 = arith.mulf %309, %310 : vector<8x4xf32>
    %312 = vector.extract_strided_slice %288 {offsets = [4, 0], sizes = [4, 8], strides = [1, 1]} : vector<12x8xf32> to vector<4x8xf32>
    %313 = vector.extract_strided_slice %289 {offsets = [4, 0], sizes = [4, 8], strides = [1, 1]} : vector<12x8xf32> to vector<4x8xf32>
    %314 = vector.extract_strided_slice %290 {offsets = [4, 0], sizes = [4, 8], strides = [1, 1]} : vector<12x8xf32> to vector<4x8xf32>
    %315 = vector.extract_strided_slice %289 {offsets = [8, 0], sizes = [4, 8], strides = [1, 1]} : vector<12x8xf32> to vector<4x8xf32>
    %316 = vector.extract_strided_slice %290 {offsets = [8, 0], sizes = [4, 8], strides = [1, 1]} : vector<12x8xf32> to vector<4x8xf32>
    %317 = vector.extract_strided_slice %311 {offsets = [0, 0], sizes = [4, 4], strides = [1, 1]} : vector<8x4xf32> to vector<4x4xf32>
    %cst_142 = arith.constant dense<0.000000e+00> : vector<4x4xf32>
    %318 = tpu.matmul %312, %315, %cst_142 {dimension_numbers = #tpu.dot_dimension_numbers<[1], [1], [0], [0], [0, 0, 1, 0], [], []>} : vector<4x8xf32>, vector<4x8xf32>, vector<4x4xf32> -> vector<4x4xf32>
    %cst_143 = arith.constant 0.353553385 : f32
    %319 = vector.broadcast %cst_143 : f32 to vector<4x4xf32>
    %320 = arith.mulf %318, %319 : vector<4x4xf32>
    %cst_144 = arith.constant dense<0.000000e+00> : vector<4x4xf32>
    %321 = tpu.matmul %312, %313, %cst_144 {dimension_numbers = #tpu.dot_dimension_numbers<[1], [1], [0], [0], [0, 0, 1, 0], [], []>} : vector<4x8xf32>, vector<4x8xf32>, vector<4x4xf32> -> vector<4x4xf32>
    %cst_145 = arith.constant 0.353553385 : f32
    %322 = vector.broadcast %cst_145 : f32 to vector<4x4xf32>
    %323 = arith.mulf %321, %322 : vector<4x4xf32>
    %cst_146 = arith.constant -2.38197633E+38 : f32
    %324 = vector.broadcast %cst_146 : f32 to vector<4x4xf32>
    %325 = arith.select %31, %324, %320 : vector<4x4xi1>, vector<4x4xf32>
    %cst_147 = arith.constant -2.38197633E+38 : f32
    %326 = vector.broadcast %cst_147 : f32 to vector<4x4xf32>
    %327 = arith.select %26, %326, %323 : vector<4x4xi1>, vector<4x4xf32>
    %cst_148 = arith.constant dense<0xFF800000> : vector<4xf32>
    %328 = vector.multi_reduction <maximumf>, %317, %cst_148 [1] : vector<4x4xf32> to vector<4xf32>
    %329 = vector.shape_cast %328 : vector<4xf32> to vector<4x1xf32>
    %cst_149 = arith.constant dense<0xFF800000> : vector<4xf32>
    %330 = vector.multi_reduction <maximumf>, %325, %cst_149 [1] : vector<4x4xf32> to vector<4xf32>
    %331 = vector.shape_cast %330 : vector<4xf32> to vector<4x1xf32>
    %cst_150 = arith.constant dense<0xFF800000> : vector<4xf32>
    %332 = vector.multi_reduction <maximumf>, %327, %cst_150 [1] : vector<4x4xf32> to vector<4xf32>
    %333 = vector.shape_cast %332 : vector<4xf32> to vector<4x1xf32>
    %334 = arith.maximumf %331, %333 : vector<4x1xf32>
    %335 = arith.maximumf %329, %334 : vector<4x1xf32>
    %336 = vector.broadcast %335 : vector<4x1xf32> to vector<4x4xf32>
    %337 = arith.subf %317, %336 : vector<4x4xf32>
    %338 = math.exp %337 : vector<4x4xf32>
    %339 = vector.broadcast %335 : vector<4x1xf32> to vector<4x4xf32>
    %340 = arith.subf %325, %339 : vector<4x4xf32>
    %341 = math.exp %340 : vector<4x4xf32>
    %342 = vector.broadcast %335 : vector<4x1xf32> to vector<4x4xf32>
    %343 = arith.subf %327, %342 : vector<4x4xf32>
    %344 = math.exp %343 : vector<4x4xf32>
    %cst_151 = arith.constant dense<0.000000e+00> : vector<4xf32>
    %345 = vector.multi_reduction <add>, %338, %cst_151 [1] : vector<4x4xf32> to vector<4xf32>
    %346 = vector.shape_cast %345 : vector<4xf32> to vector<4x1xf32>
    %cst_152 = arith.constant dense<0.000000e+00> : vector<4xf32>
    %347 = vector.multi_reduction <add>, %341, %cst_152 [1] : vector<4x4xf32> to vector<4xf32>
    %348 = vector.shape_cast %347 : vector<4xf32> to vector<4x1xf32>
    %349 = arith.addf %346, %348 : vector<4x1xf32>
    %cst_153 = arith.constant dense<0.000000e+00> : vector<4xf32>
    %350 = vector.multi_reduction <add>, %344, %cst_153 [1] : vector<4x4xf32> to vector<4xf32>
    %351 = vector.shape_cast %350 : vector<4xf32> to vector<4x1xf32>
    %352 = arith.addf %349, %351 : vector<4x1xf32>
    %353 = tpu.reciprocal %352 {approx = true} : vector<4x1xf32> -> vector<4x1xf32>
    %cst_154 = arith.constant dense<0.000000e+00> : vector<4x8xf32>
    %354 = tpu.matmul %338, %307, %cst_154 {dimension_numbers = #tpu.dot_dimension_numbers<[1], [0], [0], [1], [0, 0, 1, 1], [], []>} : vector<4x4xf32>, vector<4x8xf32>, vector<4x8xf32> -> vector<4x8xf32>
    %cst_155 = arith.constant dense<0.000000e+00> : vector<4x8xf32>
    %355 = tpu.matmul %341, %316, %cst_155 {dimension_numbers = #tpu.dot_dimension_numbers<[1], [0], [0], [1], [0, 0, 1, 1], [], []>} : vector<4x4xf32>, vector<4x8xf32>, vector<4x8xf32> -> vector<4x8xf32>
    %356 = arith.addf %354, %355 : vector<4x8xf32>
    %cst_156 = arith.constant dense<0.000000e+00> : vector<4x8xf32>
    %357 = tpu.matmul %344, %314, %cst_156 {dimension_numbers = #tpu.dot_dimension_numbers<[1], [0], [0], [1], [0, 0, 1, 1], [], []>} : vector<4x4xf32>, vector<4x8xf32>, vector<4x8xf32> -> vector<4x8xf32>
    %358 = arith.addf %356, %357 : vector<4x8xf32>
    %359 = vector.broadcast %353 : vector<4x1xf32> to vector<4x8xf32>
    %360 = arith.mulf %358, %359 : vector<4x8xf32>
    %361 = vector.extract_strided_slice %288 {offsets = [8, 0], sizes = [4, 8], strides = [1, 1]} : vector<12x8xf32> to vector<4x8xf32>
    %362 = vector.extract_strided_slice %289 {offsets = [8, 0], sizes = [4, 8], strides = [1, 1]} : vector<12x8xf32> to vector<4x8xf32>
    %363 = vector.extract_strided_slice %290 {offsets = [8, 0], sizes = [4, 8], strides = [1, 1]} : vector<12x8xf32> to vector<4x8xf32>
    %364 = vector.extract_strided_slice %289 {offsets = [4, 0], sizes = [4, 8], strides = [1, 1]} : vector<12x8xf32> to vector<4x8xf32>
    %365 = vector.extract_strided_slice %290 {offsets = [4, 0], sizes = [4, 8], strides = [1, 1]} : vector<12x8xf32> to vector<4x8xf32>
    %366 = vector.extract_strided_slice %311 {offsets = [4, 0], sizes = [4, 4], strides = [1, 1]} : vector<8x4xf32> to vector<4x4xf32>
    %cst_157 = arith.constant dense<0.000000e+00> : vector<4x4xf32>
    %367 = tpu.matmul %361, %364, %cst_157 {dimension_numbers = #tpu.dot_dimension_numbers<[1], [1], [0], [0], [0, 0, 1, 0], [], []>} : vector<4x8xf32>, vector<4x8xf32>, vector<4x4xf32> -> vector<4x4xf32>
    %cst_158 = arith.constant 0.353553385 : f32
    %368 = vector.broadcast %cst_158 : f32 to vector<4x4xf32>
    %369 = arith.mulf %367, %368 : vector<4x4xf32>
    %cst_159 = arith.constant dense<0.000000e+00> : vector<4x4xf32>
    %370 = tpu.matmul %361, %362, %cst_159 {dimension_numbers = #tpu.dot_dimension_numbers<[1], [1], [0], [0], [0, 0, 1, 0], [], []>} : vector<4x8xf32>, vector<4x8xf32>, vector<4x4xf32> -> vector<4x4xf32>
    %cst_160 = arith.constant 0.353553385 : f32
    %371 = vector.broadcast %cst_160 : f32 to vector<4x4xf32>
    %372 = arith.mulf %370, %371 : vector<4x4xf32>
    %cst_161 = arith.constant -2.38197633E+38 : f32
    %373 = vector.broadcast %cst_161 : f32 to vector<4x4xf32>
    %374 = arith.select %43, %373, %369 : vector<4x4xi1>, vector<4x4xf32>
    %cst_162 = arith.constant -2.38197633E+38 : f32
    %375 = vector.broadcast %cst_162 : f32 to vector<4x4xf32>
    %376 = arith.select %38, %375, %372 : vector<4x4xi1>, vector<4x4xf32>
    %cst_163 = arith.constant dense<0xFF800000> : vector<4xf32>
    %377 = vector.multi_reduction <maximumf>, %366, %cst_163 [1] : vector<4x4xf32> to vector<4xf32>
    %378 = vector.shape_cast %377 : vector<4xf32> to vector<4x1xf32>
    %cst_164 = arith.constant dense<0xFF800000> : vector<4xf32>
    %379 = vector.multi_reduction <maximumf>, %374, %cst_164 [1] : vector<4x4xf32> to vector<4xf32>
    %380 = vector.shape_cast %379 : vector<4xf32> to vector<4x1xf32>
    %cst_165 = arith.constant dense<0xFF800000> : vector<4xf32>
    %381 = vector.multi_reduction <maximumf>, %376, %cst_165 [1] : vector<4x4xf32> to vector<4xf32>
    %382 = vector.shape_cast %381 : vector<4xf32> to vector<4x1xf32>
    %383 = arith.maximumf %380, %382 : vector<4x1xf32>
    %384 = arith.maximumf %378, %383 : vector<4x1xf32>
    %385 = vector.broadcast %384 : vector<4x1xf32> to vector<4x4xf32>
    %386 = arith.subf %366, %385 : vector<4x4xf32>
    %387 = math.exp %386 : vector<4x4xf32>
    %388 = vector.broadcast %384 : vector<4x1xf32> to vector<4x4xf32>
    %389 = arith.subf %374, %388 : vector<4x4xf32>
    %390 = math.exp %389 : vector<4x4xf32>
    %391 = vector.broadcast %384 : vector<4x1xf32> to vector<4x4xf32>
    %392 = arith.subf %376, %391 : vector<4x4xf32>
    %393 = math.exp %392 : vector<4x4xf32>
    %cst_166 = arith.constant dense<0.000000e+00> : vector<4xf32>
    %394 = vector.multi_reduction <add>, %387, %cst_166 [1] : vector<4x4xf32> to vector<4xf32>
    %395 = vector.shape_cast %394 : vector<4xf32> to vector<4x1xf32>
    %cst_167 = arith.constant dense<0.000000e+00> : vector<4xf32>
    %396 = vector.multi_reduction <add>, %390, %cst_167 [1] : vector<4x4xf32> to vector<4xf32>
    %397 = vector.shape_cast %396 : vector<4xf32> to vector<4x1xf32>
    %398 = arith.addf %395, %397 : vector<4x1xf32>
    %cst_168 = arith.constant dense<0.000000e+00> : vector<4xf32>
    %399 = vector.multi_reduction <add>, %393, %cst_168 [1] : vector<4x4xf32> to vector<4xf32>
    %400 = vector.shape_cast %399 : vector<4xf32> to vector<4x1xf32>
    %401 = arith.addf %398, %400 : vector<4x1xf32>
    %402 = tpu.reciprocal %401 {approx = true} : vector<4x1xf32> -> vector<4x1xf32>
    %cst_169 = arith.constant dense<0.000000e+00> : vector<4x8xf32>
    %403 = tpu.matmul %387, %307, %cst_169 {dimension_numbers = #tpu.dot_dimension_numbers<[1], [0], [0], [1], [0, 0, 1, 1], [], []>} : vector<4x4xf32>, vector<4x8xf32>, vector<4x8xf32> -> vector<4x8xf32>
    %cst_170 = arith.constant dense<0.000000e+00> : vector<4x8xf32>
    %404 = tpu.matmul %390, %365, %cst_170 {dimension_numbers = #tpu.dot_dimension_numbers<[1], [0], [0], [1], [0, 0, 1, 1], [], []>} : vector<4x4xf32>, vector<4x8xf32>, vector<4x8xf32> -> vector<4x8xf32>
    %405 = arith.addf %403, %404 : vector<4x8xf32>
    %cst_171 = arith.constant dense<0.000000e+00> : vector<4x8xf32>
    %406 = tpu.matmul %393, %363, %cst_171 {dimension_numbers = #tpu.dot_dimension_numbers<[1], [0], [0], [1], [0, 0, 1, 1], [], []>} : vector<4x4xf32>, vector<4x8xf32>, vector<4x8xf32> -> vector<4x8xf32>
    %407 = arith.addf %405, %406 : vector<4x8xf32>
    %408 = vector.broadcast %402 : vector<4x1xf32> to vector<4x8xf32>
    %409 = arith.mulf %407, %408 : vector<4x8xf32>
    %c0_172 = arith.constant 0 : index
    %c24 = arith.constant 24 : index
    %410 = vector.load %arg11[%c0_172, %c24] : memref<12x32xf32, #tpu.memory_space<vmem>>, vector<12x8xf32>
    %c0_173 = arith.constant 0 : index
    %c24_174 = arith.constant 24 : index
    %411 = vector.load %arg12[%c0_173, %c24_174] : memref<12x32xf32, #tpu.memory_space<vmem>>, vector<12x8xf32>
    %c0_175 = arith.constant 0 : index
    %c24_176 = arith.constant 24 : index
    %412 = vector.load %arg13[%c0_175, %c24_176] : memref<12x32xf32, #tpu.memory_space<vmem>>, vector<12x8xf32>
    %413 = vector.extract_strided_slice %410 {offsets = [0, 0], sizes = [4, 8], strides = [1, 1]} : vector<12x8xf32> to vector<4x8xf32>
    %cst_177 = arith.constant dense<0.000000e+00> : vector<4x12xf32>
    %414 = tpu.matmul %413, %411, %cst_177 {dimension_numbers = #tpu.dot_dimension_numbers<[1], [1], [0], [0], [0, 0, 1, 0], [], []>} : vector<4x8xf32>, vector<12x8xf32>, vector<4x12xf32> -> vector<4x12xf32>
    %cst_178 = arith.constant 0.353553385 : f32
    %415 = vector.broadcast %cst_178 : f32 to vector<4x12xf32>
    %416 = arith.mulf %414, %415 : vector<4x12xf32>
    %cst_179 = arith.constant dense<0xFF800000> : vector<4xf32>
    %417 = vector.multi_reduction <maximumf>, %416, %cst_179 [1] : vector<4x12xf32> to vector<4xf32>
    %418 = vector.shape_cast %417 : vector<4xf32> to vector<4x1xf32>
    %419 = vector.broadcast %418 : vector<4x1xf32> to vector<4x12xf32>
    %420 = arith.subf %416, %419 : vector<4x12xf32>
    %421 = math.exp %420 : vector<4x12xf32>
    %cst_180 = arith.constant dense<0.000000e+00> : vector<4xf32>
    %422 = vector.multi_reduction <add>, %421, %cst_180 [1] : vector<4x12xf32> to vector<4xf32>
    %423 = vector.shape_cast %422 : vector<4xf32> to vector<4x1xf32>
    %424 = tpu.reciprocal %423 {approx = true} : vector<4x1xf32> -> vector<4x1xf32>
    %425 = vector.broadcast %424 : vector<4x1xf32> to vector<4x12xf32>
    %426 = arith.mulf %421, %425 : vector<4x12xf32>
    %cst_181 = arith.constant dense<0.000000e+00> : vector<4x8xf32>
    %427 = tpu.matmul %426, %412, %cst_181 {dimension_numbers = #tpu.dot_dimension_numbers<[1], [0], [0], [1], [0, 0, 1, 1], [], []>} : vector<4x12xf32>, vector<12x8xf32>, vector<4x8xf32> -> vector<4x8xf32>
    %428 = vector.extract_strided_slice %411 {offsets = [0, 0], sizes = [4, 8], strides = [1, 1]} : vector<12x8xf32> to vector<4x8xf32>
    %429 = vector.extract_strided_slice %412 {offsets = [0, 0], sizes = [4, 8], strides = [1, 1]} : vector<12x8xf32> to vector<4x8xf32>
    %430 = vector.extract_strided_slice %410 {offsets = [4, 0], sizes = [8, 8], strides = [1, 1]} : vector<12x8xf32> to vector<8x8xf32>
    %cst_182 = arith.constant dense<0.000000e+00> : vector<8x4xf32>
    %431 = tpu.matmul %430, %428, %cst_182 {dimension_numbers = #tpu.dot_dimension_numbers<[1], [1], [0], [0], [0, 0, 1, 0], [], []>} : vector<8x8xf32>, vector<4x8xf32>, vector<8x4xf32> -> vector<8x4xf32>
    %cst_183 = arith.constant 0.353553385 : f32
    %432 = vector.broadcast %cst_183 : f32 to vector<8x4xf32>
    %433 = arith.mulf %431, %432 : vector<8x4xf32>
    %434 = vector.extract_strided_slice %410 {offsets = [4, 0], sizes = [4, 8], strides = [1, 1]} : vector<12x8xf32> to vector<4x8xf32>
    %435 = vector.extract_strided_slice %411 {offsets = [4, 0], sizes = [4, 8], strides = [1, 1]} : vector<12x8xf32> to vector<4x8xf32>
    %436 = vector.extract_strided_slice %412 {offsets = [4, 0], sizes = [4, 8], strides = [1, 1]} : vector<12x8xf32> to vector<4x8xf32>
    %437 = vector.extract_strided_slice %411 {offsets = [8, 0], sizes = [4, 8], strides = [1, 1]} : vector<12x8xf32> to vector<4x8xf32>
    %438 = vector.extract_strided_slice %412 {offsets = [8, 0], sizes = [4, 8], strides = [1, 1]} : vector<12x8xf32> to vector<4x8xf32>
    %439 = vector.extract_strided_slice %433 {offsets = [0, 0], sizes = [4, 4], strides = [1, 1]} : vector<8x4xf32> to vector<4x4xf32>
    %cst_184 = arith.constant dense<0.000000e+00> : vector<4x4xf32>
    %440 = tpu.matmul %434, %437, %cst_184 {dimension_numbers = #tpu.dot_dimension_numbers<[1], [1], [0], [0], [0, 0, 1, 0], [], []>} : vector<4x8xf32>, vector<4x8xf32>, vector<4x4xf32> -> vector<4x4xf32>
    %cst_185 = arith.constant 0.353553385 : f32
    %441 = vector.broadcast %cst_185 : f32 to vector<4x4xf32>
    %442 = arith.mulf %440, %441 : vector<4x4xf32>
    %cst_186 = arith.constant dense<0.000000e+00> : vector<4x4xf32>
    %443 = tpu.matmul %434, %435, %cst_186 {dimension_numbers = #tpu.dot_dimension_numbers<[1], [1], [0], [0], [0, 0, 1, 0], [], []>} : vector<4x8xf32>, vector<4x8xf32>, vector<4x4xf32> -> vector<4x4xf32>
    %cst_187 = arith.constant 0.353553385 : f32
    %444 = vector.broadcast %cst_187 : f32 to vector<4x4xf32>
    %445 = arith.mulf %443, %444 : vector<4x4xf32>
    %cst_188 = arith.constant -2.38197633E+38 : f32
    %446 = vector.broadcast %cst_188 : f32 to vector<4x4xf32>
    %447 = arith.select %31, %446, %442 : vector<4x4xi1>, vector<4x4xf32>
    %cst_189 = arith.constant -2.38197633E+38 : f32
    %448 = vector.broadcast %cst_189 : f32 to vector<4x4xf32>
    %449 = arith.select %26, %448, %445 : vector<4x4xi1>, vector<4x4xf32>
    %cst_190 = arith.constant dense<0xFF800000> : vector<4xf32>
    %450 = vector.multi_reduction <maximumf>, %439, %cst_190 [1] : vector<4x4xf32> to vector<4xf32>
    %451 = vector.shape_cast %450 : vector<4xf32> to vector<4x1xf32>
    %cst_191 = arith.constant dense<0xFF800000> : vector<4xf32>
    %452 = vector.multi_reduction <maximumf>, %447, %cst_191 [1] : vector<4x4xf32> to vector<4xf32>
    %453 = vector.shape_cast %452 : vector<4xf32> to vector<4x1xf32>
    %cst_192 = arith.constant dense<0xFF800000> : vector<4xf32>
    %454 = vector.multi_reduction <maximumf>, %449, %cst_192 [1] : vector<4x4xf32> to vector<4xf32>
    %455 = vector.shape_cast %454 : vector<4xf32> to vector<4x1xf32>
    %456 = arith.maximumf %453, %455 : vector<4x1xf32>
    %457 = arith.maximumf %451, %456 : vector<4x1xf32>
    %458 = vector.broadcast %457 : vector<4x1xf32> to vector<4x4xf32>
    %459 = arith.subf %439, %458 : vector<4x4xf32>
    %460 = math.exp %459 : vector<4x4xf32>
    %461 = vector.broadcast %457 : vector<4x1xf32> to vector<4x4xf32>
    %462 = arith.subf %447, %461 : vector<4x4xf32>
    %463 = math.exp %462 : vector<4x4xf32>
    %464 = vector.broadcast %457 : vector<4x1xf32> to vector<4x4xf32>
    %465 = arith.subf %449, %464 : vector<4x4xf32>
    %466 = math.exp %465 : vector<4x4xf32>
    %cst_193 = arith.constant dense<0.000000e+00> : vector<4xf32>
    %467 = vector.multi_reduction <add>, %460, %cst_193 [1] : vector<4x4xf32> to vector<4xf32>
    %468 = vector.shape_cast %467 : vector<4xf32> to vector<4x1xf32>
    %cst_194 = arith.constant dense<0.000000e+00> : vector<4xf32>
    %469 = vector.multi_reduction <add>, %463, %cst_194 [1] : vector<4x4xf32> to vector<4xf32>
    %470 = vector.shape_cast %469 : vector<4xf32> to vector<4x1xf32>
    %471 = arith.addf %468, %470 : vector<4x1xf32>
    %cst_195 = arith.constant dense<0.000000e+00> : vector<4xf32>
    %472 = vector.multi_reduction <add>, %466, %cst_195 [1] : vector<4x4xf32> to vector<4xf32>
    %473 = vector.shape_cast %472 : vector<4xf32> to vector<4x1xf32>
    %474 = arith.addf %471, %473 : vector<4x1xf32>
    %475 = tpu.reciprocal %474 {approx = true} : vector<4x1xf32> -> vector<4x1xf32>
    %cst_196 = arith.constant dense<0.000000e+00> : vector<4x8xf32>
    %476 = tpu.matmul %460, %429, %cst_196 {dimension_numbers = #tpu.dot_dimension_numbers<[1], [0], [0], [1], [0, 0, 1, 1], [], []>} : vector<4x4xf32>, vector<4x8xf32>, vector<4x8xf32> -> vector<4x8xf32>
    %cst_197 = arith.constant dense<0.000000e+00> : vector<4x8xf32>
    %477 = tpu.matmul %463, %438, %cst_197 {dimension_numbers = #tpu.dot_dimension_numbers<[1], [0], [0], [1], [0, 0, 1, 1], [], []>} : vector<4x4xf32>, vector<4x8xf32>, vector<4x8xf32> -> vector<4x8xf32>
    %478 = arith.addf %476, %477 : vector<4x8xf32>
    %cst_198 = arith.constant dense<0.000000e+00> : vector<4x8xf32>
    %479 = tpu.matmul %466, %436, %cst_198 {dimension_numbers = #tpu.dot_dimension_numbers<[1], [0], [0], [1], [0, 0, 1, 1], [], []>} : vector<4x4xf32>, vector<4x8xf32>, vector<4x8xf32> -> vector<4x8xf32>
    %480 = arith.addf %478, %479 : vector<4x8xf32>
    %481 = vector.broadcast %475 : vector<4x1xf32> to vector<4x8xf32>
    %482 = arith.mulf %480, %481 : vector<4x8xf32>
    %483 = vector.extract_strided_slice %410 {offsets = [8, 0], sizes = [4, 8], strides = [1, 1]} : vector<12x8xf32> to vector<4x8xf32>
    %484 = vector.extract_strided_slice %411 {offsets = [8, 0], sizes = [4, 8], strides = [1, 1]} : vector<12x8xf32> to vector<4x8xf32>
    %485 = vector.extract_strided_slice %412 {offsets = [8, 0], sizes = [4, 8], strides = [1, 1]} : vector<12x8xf32> to vector<4x8xf32>
    %486 = vector.extract_strided_slice %411 {offsets = [4, 0], sizes = [4, 8], strides = [1, 1]} : vector<12x8xf32> to vector<4x8xf32>
    %487 = vector.extract_strided_slice %412 {offsets = [4, 0], sizes = [4, 8], strides = [1, 1]} : vector<12x8xf32> to vector<4x8xf32>
    %488 = vector.extract_strided_slice %433 {offsets = [4, 0], sizes = [4, 4], strides = [1, 1]} : vector<8x4xf32> to vector<4x4xf32>
    %cst_199 = arith.constant dense<0.000000e+00> : vector<4x4xf32>
    %489 = tpu.matmul %483, %486, %cst_199 {dimension_numbers = #tpu.dot_dimension_numbers<[1], [1], [0], [0], [0, 0, 1, 0], [], []>} : vector<4x8xf32>, vector<4x8xf32>, vector<4x4xf32> -> vector<4x4xf32>
    %cst_200 = arith.constant 0.353553385 : f32
    %490 = vector.broadcast %cst_200 : f32 to vector<4x4xf32>
    %491 = arith.mulf %489, %490 : vector<4x4xf32>
    %cst_201 = arith.constant dense<0.000000e+00> : vector<4x4xf32>
    %492 = tpu.matmul %483, %484, %cst_201 {dimension_numbers = #tpu.dot_dimension_numbers<[1], [1], [0], [0], [0, 0, 1, 0], [], []>} : vector<4x8xf32>, vector<4x8xf32>, vector<4x4xf32> -> vector<4x4xf32>
    %cst_202 = arith.constant 0.353553385 : f32
    %493 = vector.broadcast %cst_202 : f32 to vector<4x4xf32>
    %494 = arith.mulf %492, %493 : vector<4x4xf32>
    %cst_203 = arith.constant -2.38197633E+38 : f32
    %495 = vector.broadcast %cst_203 : f32 to vector<4x4xf32>
    %496 = arith.select %43, %495, %491 : vector<4x4xi1>, vector<4x4xf32>
    %cst_204 = arith.constant -2.38197633E+38 : f32
    %497 = vector.broadcast %cst_204 : f32 to vector<4x4xf32>
    %498 = arith.select %38, %497, %494 : vector<4x4xi1>, vector<4x4xf32>
    %cst_205 = arith.constant dense<0xFF800000> : vector<4xf32>
    %499 = vector.multi_reduction <maximumf>, %488, %cst_205 [1] : vector<4x4xf32> to vector<4xf32>
    %500 = vector.shape_cast %499 : vector<4xf32> to vector<4x1xf32>
    %cst_206 = arith.constant dense<0xFF800000> : vector<4xf32>
    %501 = vector.multi_reduction <maximumf>, %496, %cst_206 [1] : vector<4x4xf32> to vector<4xf32>
    %502 = vector.shape_cast %501 : vector<4xf32> to vector<4x1xf32>
    %cst_207 = arith.constant dense<0xFF800000> : vector<4xf32>
    %503 = vector.multi_reduction <maximumf>, %498, %cst_207 [1] : vector<4x4xf32> to vector<4xf32>
    %504 = vector.shape_cast %503 : vector<4xf32> to vector<4x1xf32>
    %505 = arith.maximumf %502, %504 : vector<4x1xf32>
    %506 = arith.maximumf %500, %505 : vector<4x1xf32>
    %507 = vector.broadcast %506 : vector<4x1xf32> to vector<4x4xf32>
    %508 = arith.subf %488, %507 : vector<4x4xf32>
    %509 = math.exp %508 : vector<4x4xf32>
    %510 = vector.broadcast %506 : vector<4x1xf32> to vector<4x4xf32>
    %511 = arith.subf %496, %510 : vector<4x4xf32>
    %512 = math.exp %511 : vector<4x4xf32>
    %513 = vector.broadcast %506 : vector<4x1xf32> to vector<4x4xf32>
    %514 = arith.subf %498, %513 : vector<4x4xf32>
    %515 = math.exp %514 : vector<4x4xf32>
    %cst_208 = arith.constant dense<0.000000e+00> : vector<4xf32>
    %516 = vector.multi_reduction <add>, %509, %cst_208 [1] : vector<4x4xf32> to vector<4xf32>
    %517 = vector.shape_cast %516 : vector<4xf32> to vector<4x1xf32>
    %cst_209 = arith.constant dense<0.000000e+00> : vector<4xf32>
    %518 = vector.multi_reduction <add>, %512, %cst_209 [1] : vector<4x4xf32> to vector<4xf32>
    %519 = vector.shape_cast %518 : vector<4xf32> to vector<4x1xf32>
    %520 = arith.addf %517, %519 : vector<4x1xf32>
    %cst_210 = arith.constant dense<0.000000e+00> : vector<4xf32>
    %521 = vector.multi_reduction <add>, %515, %cst_210 [1] : vector<4x4xf32> to vector<4xf32>
    %522 = vector.shape_cast %521 : vector<4xf32> to vector<4x1xf32>
    %523 = arith.addf %520, %522 : vector<4x1xf32>
    %524 = tpu.reciprocal %523 {approx = true} : vector<4x1xf32> -> vector<4x1xf32>
    %cst_211 = arith.constant dense<0.000000e+00> : vector<4x8xf32>
    %525 = tpu.matmul %509, %429, %cst_211 {dimension_numbers = #tpu.dot_dimension_numbers<[1], [0], [0], [1], [0, 0, 1, 1], [], []>} : vector<4x4xf32>, vector<4x8xf32>, vector<4x8xf32> -> vector<4x8xf32>
    %cst_212 = arith.constant dense<0.000000e+00> : vector<4x8xf32>
    %526 = tpu.matmul %512, %487, %cst_212 {dimension_numbers = #tpu.dot_dimension_numbers<[1], [0], [0], [1], [0, 0, 1, 1], [], []>} : vector<4x4xf32>, vector<4x8xf32>, vector<4x8xf32> -> vector<4x8xf32>
    %527 = arith.addf %525, %526 : vector<4x8xf32>
    %cst_213 = arith.constant dense<0.000000e+00> : vector<4x8xf32>
    %528 = tpu.matmul %515, %485, %cst_213 {dimension_numbers = #tpu.dot_dimension_numbers<[1], [0], [0], [1], [0, 0, 1, 1], [], []>} : vector<4x4xf32>, vector<4x8xf32>, vector<4x8xf32> -> vector<4x8xf32>
    %529 = arith.addf %527, %528 : vector<4x8xf32>
    %530 = vector.broadcast %524 : vector<4x1xf32> to vector<4x8xf32>
    %531 = arith.mulf %529, %530 : vector<4x8xf32>
    %532 = tpu.concatenate %61, %183, %305, %427 in 1 : vector<4x8xf32>, vector<4x8xf32>, vector<4x8xf32>, vector<4x8xf32> -> vector<4x32xf32>
    %533 = tpu.concatenate %116, %238, %360, %482 in 1 : vector<4x8xf32>, vector<4x8xf32>, vector<4x8xf32>, vector<4x8xf32> -> vector<4x32xf32>
    %534 = tpu.concatenate %165, %287, %409, %531 in 1 : vector<4x8xf32>, vector<4x8xf32>, vector<4x8xf32>, vector<4x8xf32> -> vector<4x32xf32>
    %535 = tpu.concatenate %532, %533, %534 in 0 : vector<4x32xf32>, vector<4x32xf32>, vector<4x32xf32> -> vector<12x32xf32>
    %c0_214 = arith.constant 0 : index
    %c0_215 = arith.constant 0 : index
    %c0_216 = arith.constant 0 : index
    %536 = vector.load %arg10[%c0_214, %c0_215, %c0_216] : memref<1x12x32xf32, #tpu.memory_space<vmem>>, vector<1x12x32xf32>
    %537 = vector.shape_cast %536 : vector<1x12x32xf32> to vector<12x32xf32>
    %538 = vector.shape_cast %535 : vector<12x32xf32> to vector<1x12x32xf32>
    tpu.vector_store %arg10[%c0_214, %c0_215, %c0_216], %538 {strides = array<i32>} : memref<1x12x32xf32, #tpu.memory_space<vmem>>, vector<1x12x32xf32>,
    return
  }
  func.func @transform_0(%arg0: i32) -> (i32, i32, i32) {
    %c0_i32 = arith.constant 0 : i32
    %c0_i32_0 = arith.constant 0 : i32
    %c0_i32_1 = arith.constant 0 : i32
    return %arg0, %c0_i32, %c0_i32_0 : i32, i32, i32
  }
  func.func @transform_1(%arg0: i32) -> (i32, i32) {
    %c0_i32 = arith.constant 0 : i32
    %c0_i32_0 = arith.constant 0 : i32
    %c0_i32_1 = arith.constant 0 : i32
    return %c0_i32, %c0_i32_0 : i32, i32
  }
  func.func @transform_2(%arg0: i32) -> (i32, i32) {
    %c0_i32 = arith.constant 0 : i32
    %c0_i32_0 = arith.constant 0 : i32
    %c0_i32_1 = arith.constant 0 : i32
    return %c0_i32, %c0_i32_0 : i32, i32
  }
  func.func @transform_3(%arg0: i32) -> (i32, i32) {
    %c0_i32 = arith.constant 0 : i32
    %c0_i32_0 = arith.constant 0 : i32
    %c0_i32_1 = arith.constant 0 : i32
    return %c0_i32, %c0_i32_0 : i32, i32
  }
  func.func @transform_4(%arg0: i32) -> (i32, i32) {
    %c0_i32 = arith.constant 0 : i32
    %c0_i32_0 = arith.constant 0 : i32
    %c0_i32_1 = arith.constant 0 : i32
    return %c0_i32, %c0_i32_0 : i32, i32
  }
  func.func @transform_5(%arg0: i32) -> (i32, i32) {
    %c0_i32 = arith.constant 0 : i32
    %c0_i32_0 = arith.constant 0 : i32
    %c0_i32_1 = arith.constant 0 : i32
    return %c0_i32, %c0_i32_0 : i32, i32
  }
  func.func @transform_6(%arg0: i32) -> (i32, i32) {
    %c0_i32 = arith.constant 0 : i32
    %c0_i32_0 = arith.constant 0 : i32
    %c0_i32_1 = arith.constant 0 : i32
    return %c0_i32, %c0_i32_0 : i32, i32
  }
  func.func @transform_7(%arg0: i32) -> (i32, i32, i32, i32) {
    %c0_i32 = arith.constant 0 : i32
    %c0_i32_0 = arith.constant 0 : i32
    %c0_i32_1 = arith.constant 0 : i32
    %c0_i32_2 = arith.constant 0 : i32
    return %arg0, %c0_i32, %c0_i32_0, %c0_i32_1 : i32, i32, i32, i32
  }
  func.func @transform_8(%arg0: i32) -> (i32, i32, i32, i32) {
    %c0_i32 = arith.constant 0 : i32
    %c0_i32_0 = arith.constant 0 : i32
    %c0_i32_1 = arith.constant 0 : i32
    %c0_i32_2 = arith.constant 0 : i32
    return %arg0, %c0_i32, %c0_i32_0, %c0_i32_1 : i32, i32, i32, i32
  }
  func.func @transform_9(%arg0: i32) -> (i32, i32, i32) {
    %c0_i32 = arith.constant 0 : i32
    %c0_i32_0 = arith.constant 0 : i32
    %c0_i32_1 = arith.constant 0 : i32
    return %arg0, %c0_i32, %c0_i32_0 : i32, i32, i32
  }
}

</mosaic_0001>

<llo_original>
// kernel: tpu_custom_call.1
$region0: #{tpu_custom_call.1}
  #allocation0 [shape = 'u32[]', space=smem, size = 0x4, offset = 0x4, fixed_abs, tag = 'smem constant byte address 0x4 - core index']
  #allocation1 [shape = 'u32[144,128]{1,0:T(1,128)}', space=vmem, size = 0x12000, scoped, tag = 'internal scratch']
  #allocation2 [shape = 'f32[12,32]{1,0:T(8,128)}', space=vmem, size = 0x2000, scoped, tag = 'scratch operand']
  #allocation3 [shape = 'f32[12,32]{1,0:T(8,128)}', space=vmem, size = 0x2000, scoped, tag = 'scratch operand']
  #allocation4 [shape = 'f32[12,32]{1,0:T(8,128)}', space=vmem, size = 0x2000, scoped, tag = 'scratch operand']
  %s0 = inlined_call_operand.vmem [shape: f32[2,12,32], index: 0, kind: input, shape index: {}]
  %s1 = inlined_call_operand.vmem [shape: f32[32,32], index: 1, kind: input, shape index: {}]
  %s2 = inlined_call_operand.vmem [shape: f32[32,32], index: 2, kind: input, shape index: {}]
  %s3 = inlined_call_operand.hbm [shape: f32[32,32], index: 3, kind: input, shape index: {}]
  %s4 = inlined_call_operand.vmem [shape: f32[1,32], index: 4, kind: input, shape index: {}]
  %s5 = inlined_call_operand.vmem [shape: f32[1,32], index: 5, kind: input, shape index: {}]
  %s6 = inlined_call_operand.vmem [shape: f32[1,32], index: 6, kind: input, shape index: {}]
  %s7 = inlined_call_operand.vmem [shape: s32[2,2,4,1], index: 7, kind: input, shape index: {}]
  %s8 = inlined_call_operand.vmem [shape: s32[2,2,1,4], index: 8, kind: input, shape index: {}]
  %s9 = inlined_call_operand.vmem [shape: f32[2,12,32], index: 9, kind: output, shape index: {}]
  %s10 = sld [smem:[#allocation0]]
  $region73: #{tpu_custom_call.1} parent=0
    _
  %s12 = ssub.s32 1, %s10
  %s13 = scalar_select 0, %s12, %s10
  $region1: #{tpu_custom_call.1} parent=0
    #allocation5 [shape = 'u8[16384]{0}', space=vmem, size = 0x4000, scoped, tag = 'input window, operand 3, single buffered']
    #allocation6 [shape = 's32[2]{0}', space=sflag, size = 0x8, scoped, tag = 'scoped memory for tpu_custom_call.1']
    %14 = vsyncpa [#allocation6], 0
    loop: start=0, step=1, limit=4
    $region2: #{tpu_custom_call.1} parent=1 // loop_pre_header
      _
    $region3: #{tpu_custom_call.1} parent=1 // loop_header
      %s16 = sphi 0, %s20
      %p17 = scmp.ge.s32.totalorder %s16, 4
      %s26 = sphi 0, %s28
      %s29 = sphi 0, %s26
      %s30 = sphi 0, %s29
      %s46 = sphi 0, %s30
      %s50 = sphi 0, %s50
      %s52 = sphi 0, %s50
      %s53 = sphi 0, %s52
      %s67 = sphi 0, %s53
      %s71 = sphi 0, %s71
      %s73 = sphi 0, %s71
      %s74 = sphi 0, %s73
      %s88 = sphi 0, %s74
      %s92 = sphi 0, %s92
      %s94 = sphi 0, %s92
      %s95 = sphi 0, %s94
      %s109 = sphi 0, %s95
      %s113 = sphi 0, %s113
      %s115 = sphi 0, %s113
      %s116 = sphi 0, %s115
      %s130 = sphi 0, %s116
      %s134 = sphi 0, %s134
      %s136 = sphi 0, %s134
      %s137 = sphi 0, %s136
      %s151 = sphi 0, %s137
      %s155 = sphi 0, %s155
      %s157 = sphi 0, %s155
      %s158 = sphi 0, %s157
      %s172 = sphi 0, %s158
      %s178 = sphi 0, %s180
      %s181 = sphi 0, %s178
      %s182 = sphi 0, %s181
      %s198 = sphi 0, %s182
      %s204 = sphi 0, %s206
      %s207 = sphi 0, %s204
      %s208 = sphi 0, %s207
      %s224 = sphi 0, %s208
      %s230 = sphi 0, %s232
      %s233 = sphi 0, %s230
      %s234 = sphi 0, %s233
      %s250 = sphi 0, %s234
    $region4: #{tpu_custom_call.1} parent=1 // loop_header_branch
      %19 = sbr.rel (%p17) target = $region8
    $region5: #{tpu_custom_call.1} parent=1 // loop_body
      %s21 = ssub.s32 %s16, 1
      %s22 = ssub.s32 %s16, 2
      %s23 = sadd.s32 %s16, 1
      %s24 = ssub.s32 %s16, %s23
      %p25 = scmp.eq.s32.totalorder %s24, 0
      %s27 = sadd.s32 %s26, 1
      %s28 = scalar_select %p25, %s26, %s27
      %p31 = pneg %p25
      %p32 = scmp.eq.s32.totalorder %s16, 1
      %p33 = por %p31, %p32
      %p34 = scmp.ne.s32.totalorder %s26, %s29
      %p35 = scmp.eq.s32.totalorder %s16, 0
      %p36 = por %p34, %p35
      %p37 = scmp.ne.s32.totalorder %s26, %s29
      %p38 = scmp.eq.s32.totalorder %s21, 1
      %p39 = por %p37, %p38
      %p40 = scmp.ne.s32.totalorder %s29, %s30
      %p41 = scmp.eq.s32.totalorder %s21, 0
      %p42 = por %p40, %p41
      %p43 = scmp.ne.s32.totalorder %s29, %s30
      %p44 = scmp.eq.s32.totalorder %s22, 1
      %p45 = por %p43, %p44
      %p47 = scmp.ne.s32.totalorder %s30, %s46
      %p48 = scmp.eq.s32.totalorder %s22, 0
      %p49 = por %p47, %p48
      %s51 = sadd.s32 %s50, 1
      %p54 = scmp.eq.s32.totalorder %s16, 1
      %p55 = scmp.ne.s32.totalorder %s50, %s52
      %p56 = scmp.eq.s32.totalorder %s16, 0
      %p57 = por %p55, %p56
      %p58 = scmp.ne.s32.totalorder %s50, %s52
      %p59 = scmp.eq.s32.totalorder %s21, 1
      %p60 = por %p58, %p59
      %p61 = scmp.ne.s32.totalorder %s52, %s53
      %p62 = scmp.eq.s32.totalorder %s21, 0
      %p63 = por %p61, %p62
      %p64 = scmp.ne.s32.totalorder %s52, %s53
      %p65 = scmp.eq.s32.totalorder %s22, 1
      %p66 = por %p64, %p65
      %p68 = scmp.ne.s32.totalorder %s53, %s67
      %p69 = scmp.eq.s32.totalorder %s22, 0
      %p70 = por %p68, %p69
      %s72 = sadd.s32 %s71, 1
      %p75 = scmp.eq.s32.totalorder %s16, 1
      %p76 = scmp.ne.s32.totalorder %s71, %s73
      %p77 = scmp.eq.s32.totalorder %s16, 0
      %p78 = por %p76, %p77
      %p79 = scmp.ne.s32.totalorder %s71, %s73
      %p80 = scmp.eq.s32.totalorder %s21, 1
      %p81 = por %p79, %p80
      %p82 = scmp.ne.s32.totalorder %s73, %s74
      %p83 = scmp.eq.s32.totalorder %s21, 0
      %p84 = por %p82, %p83
      %p85 = scmp.ne.s32.totalorder %s73, %s74
      %p86 = scmp.eq.s32.totalorder %s22, 1
      %p87 = por %p85, %p86
      %p89 = scmp.ne.s32.totalorder %s74, %s88
      %p90 = scmp.eq.s32.totalorder %s22, 0
      %p91 = por %p89, %p90
      %s93 = sadd.s32 %s92, 1
      %p96 = scmp.eq.s32.totalorder %s16, 1
      %p97 = scmp.ne.s32.totalorder %s92, %s94
      %p98 = scmp.eq.s32.totalorder %s16, 0
      %p99 = por %p97, %p98
      %p100 = scmp.ne.s32.totalorder %s92, %s94
      %p101 = scmp.eq.s32.totalorder %s21, 1
      %p102 = por %p100, %p101
      %p103 = scmp.ne.s32.totalorder %s94, %s95
      %p104 = scmp.eq.s32.totalorder %s21, 0
      %p105 = por %p103, %p104
      %p106 = scmp.ne.s32.totalorder %s94, %s95
      %p107 = scmp.eq.s32.totalorder %s22, 1
      %p108 = por %p106, %p107
      %p110 = scmp.ne.s32.totalorder %s95, %s109
      %p111 = scmp.eq.s32.totalorder %s22, 0
      %p112 = por %p110, %p111
      %s114 = sadd.s32 %s113, 1
      %p117 = scmp.eq.s32.totalorder %s16, 1
      %p118 = scmp.ne.s32.totalorder %s113, %s115
      %p119 = scmp.eq.s32.totalorder %s16, 0
      %p120 = por %p118, %p119
      %p121 = scmp.ne.s32.totalorder %s113, %s115
      %p122 = scmp.eq.s32.totalorder %s21, 1
      %p123 = por %p121, %p122
      %p124 = scmp.ne.s32.totalorder %s115, %s116
      %p125 = scmp.eq.s32.totalorder %s21, 0
      %p126 = por %p124, %p125
      %p127 = scmp.ne.s32.totalorder %s115, %s116
      %p128 = scmp.eq.s32.totalorder %s22, 1
      %p129 = por %p127, %p128
      %p131 = scmp.ne.s32.totalorder %s116, %s130
      %p132 = scmp.eq.s32.totalorder %s22, 0
      %p133 = por %p131, %p132
      %s135 = sadd.s32 %s134, 1
      %p138 = scmp.eq.s32.totalorder %s16, 1
      %p139 = scmp.ne.s32.totalorder %s134, %s136
      %p140 = scmp.eq.s32.totalorder %s16, 0
      %p141 = por %p139, %p140
      %p142 = scmp.ne.s32.totalorder %s134, %s136
      %p143 = scmp.eq.s32.totalorder %s21, 1
      %p144 = por %p142, %p143
      %p145 = scmp.ne.s32.totalorder %s136, %s137
      %p146 = scmp.eq.s32.totalorder %s21, 0
      %p147 = por %p145, %p146
      %p148 = scmp.ne.s32.totalorder %s136, %s137
      %p149 = scmp.eq.s32.totalorder %s22, 1
      %p150 = por %p148, %p149
      %p152 = scmp.ne.s32.totalorder %s137, %s151
      %p153 = scmp.eq.s32.totalorder %s22, 0
      %p154 = por %p152, %p153
      %s156 = sadd.s32 %s155, 1
      %p159 = scmp.eq.s32.totalorder %s16, 1
      %p160 = scmp.ne.s32.totalorder %s155, %s157
      %p161 = scmp.eq.s32.totalorder %s16, 0
      %p162 = por %p160, %p161
      %p163 = scmp.ne.s32.totalorder %s155, %s157
      %p164 = scmp.eq.s32.totalorder %s21, 1
      %p165 = por %p163, %p164
      %p166 = scmp.ne.s32.totalorder %s157, %s158
      %p167 = scmp.eq.s32.totalorder %s21, 0
      %p168 = por %p166, %p167
      %p169 = scmp.ne.s32.totalorder %s157, %s158
      %p170 = scmp.eq.s32.totalorder %s22, 1
      %p171 = por %p169, %p170
      %p173 = scmp.ne.s32.totalorder %s158, %s172
      %p174 = scmp.eq.s32.totalorder %s22, 0
      %p175 = por %p173, %p174
      %s176 = ssub.s32 %s16, %s23
      %p177 = scmp.eq.s32.totalorder %s176, 0
      %s179 = sadd.s32 %s178, 1
      %s180 = scalar_select %p177, %s178, %s179
      %p183 = pneg %p177
      %p184 = scmp.eq.s32.totalorder %s16, 1
      %p185 = por %p183, %p184
      %p186 = scmp.ne.s32.totalorder %s178, %s181
      %p187 = scmp.eq.s32.totalorder %s16, 0
      %p188 = por %p186, %p187
      %p189 = scmp.ne.s32.totalorder %s178, %s181
      %p190 = scmp.eq.s32.totalorder %s21, 1
      %p191 = por %p189, %p190
      %p192 = scmp.ne.s32.totalorder %s181, %s182
      %p193 = scmp.eq.s32.totalorder %s21, 0
      %p194 = por %p192, %p193
      %p195 = scmp.ne.s32.totalorder %s181, %s182
      %p196 = scmp.eq.s32.totalorder %s22, 1
      %p197 = por %p195, %p196
      %p199 = scmp.ne.s32.totalorder %s182, %s198
      %p200 = scmp.eq.s32.totalorder %s22, 0
      %p201 = por %p199, %p200
      %s202 = ssub.s32 %s16, %s23
      %p203 = scmp.eq.s32.totalorder %s202, 0
      %s205 = sadd.s32 %s204, 1
      %s206 = scalar_select %p203, %s204, %s205
      %p209 = pneg %p203
      %p210 = scmp.eq.s32.totalorder %s16, 1
      %p211 = por %p209, %p210
      %p212 = scmp.ne.s32.totalorder %s204, %s207
      %p213 = scmp.eq.s32.totalorder %s16, 0
      %p214 = por %p212, %p213
      %p215 = scmp.ne.s32.totalorder %s204, %s207
      %p216 = scmp.eq.s32.totalorder %s21, 1
      %p217 = por %p215, %p216
      %p218 = scmp.ne.s32.totalorder %s207, %s208
      %p219 = scmp.eq.s32.totalorder %s21, 0
      %p220 = por %p218, %p219
      %p221 = scmp.ne.s32.totalorder %s207, %s208
      %p222 = scmp.eq.s32.totalorder %s22, 1
      %p223 = por %p221, %p222
      %p225 = scmp.ne.s32.totalorder %s208, %s224
      %p226 = scmp.eq.s32.totalorder %s22, 0
      %p227 = por %p225, %p226
      %s228 = ssub.s32 %s16, %s23
      %p229 = scmp.eq.s32.totalorder %s228, 0
      %s231 = sadd.s32 %s230, 1
      %s232 = scalar_select %p229, %s230, %s231
      %p235 = pneg %p229
      %p236 = scmp.eq.s32.totalorder %s16, 1
      %p237 = por %p235, %p236
      %p238 = scmp.ne.s32.totalorder %s230, %s233
      %p239 = scmp.eq.s32.totalorder %s16, 0
      %p240 = por %p238, %p239
      %p241 = scmp.ne.s32.totalorder %s230, %s233
      %p242 = scmp.eq.s32.totalorder %s21, 1
      %p243 = por %p241, %p242
      %p244 = scmp.ne.s32.totalorder %s233, %s234
      %p245 = scmp.eq.s32.totalorder %s21, 0
      %p246 = por %p244, %p245
      %p247 = scmp.ne.s32.totalorder %s233, %s234
      %p248 = scmp.eq.s32.totalorder %s22, 1
      %p249 = por %p247, %p248
      %p251 = scmp.ne.s32.totalorder %s234, %s250
      %p252 = scmp.eq.s32.totalorder %s22, 0
      %p253 = por %p251, %p252
      %p254 = scmp.le.s32.totalorder 1, %s16
      %p255 = scmp.lt.s32.totalorder %s16, 3
      %p256 = pnand %p254, %p255
      %p257 = pneg %p256
      // Predicated region
      $region9: #{tpu_custom_call.1} parent=5 // pred_check
        _
      $region10: #{tpu_custom_call.1} parent=5 // pred_check_branch
        %259 = sbr.rel (%p256) target = $region12
      $region11: #{tpu_custom_call.1} parent=5 // pred_region
        %s260 = ssub.s32 %s16, 1
        // Predicated region
        $region13: #{tpu_custom_call.1} parent=11 // pred_check
          %p261 = pneg %p63
        $region14: #{tpu_custom_call.1} parent=11 // pred_check_branch
          %263 = sbr.rel (%p261) target = $region16
        $region15: #{tpu_custom_call.1} parent=11 // pred_region
          _
        $region16: #{tpu_custom_call.1} parent=11 // pred_fallthru
          _
        // Predicated region
        $region17: #{tpu_custom_call.1} parent=11 // pred_check
          %p264 = pneg %p84
        $region18: #{tpu_custom_call.1} parent=11 // pred_check_branch
          %266 = sbr.rel (%p264) target = $region20
        $region19: #{tpu_custom_call.1} parent=11 // pred_region
          _
        $region20: #{tpu_custom_call.1} parent=11 // pred_fallthru
          _
        // Predicated region
        $region21: #{tpu_custom_call.1} parent=11 // pred_check
          %p267 = pneg %p105
        $region22: #{tpu_custom_call.1} parent=11 // pred_check_branch
          %269 = sbr.rel (%p267) target = $region24
        $region23: #{tpu_custom_call.1} parent=11 // pred_region
          %s271 = ssub.s32 512, 512
          %272 = vsyncadd [#allocation6], %s271
          %s273 = sshll.u32 [#allocation5], 4
          %s274 = int_to_ptr.vmem [resolvable:$true] %s273
          %279 = dma.hbm_to_vmem [thread:$0]  %s3, 512, %s274, [#allocation6], 128, 128, 8
        $region24: #{tpu_custom_call.1} parent=11 // pred_fallthru
          _
        // Predicated region
        $region25: #{tpu_custom_call.1} parent=11 // pred_check
          %p280 = pneg %p126
        $region26: #{tpu_custom_call.1} parent=11 // pred_check_branch
          %282 = sbr.rel (%p280) target = $region28
        $region27: #{tpu_custom_call.1} parent=11 // pred_region
          _
        $region28: #{tpu_custom_call.1} parent=11 // pred_fallthru
          _
        // Predicated region
        $region29: #{tpu_custom_call.1} parent=11 // pred_check
          %p283 = pneg %p147
        $region30: #{tpu_custom_call.1} parent=11 // pred_check_branch
          %285 = sbr.rel (%p283) target = $region32
        $region31: #{tpu_custom_call.1} parent=11 // pred_region
          _
        $region32: #{tpu_custom_call.1} parent=11 // pred_fallthru
          _
        // Predicated region
        $region33: #{tpu_custom_call.1} parent=11 // pred_check
          %p286 = pneg %p168
        $region34: #{tpu_custom_call.1} parent=11 // pred_check_branch
          %288 = sbr.rel (%p286) target = $region36
        $region35: #{tpu_custom_call.1} parent=11 // pred_region
          _
        $region36: #{tpu_custom_call.1} parent=11 // pred_fallthru
          _
      $region12: #{tpu_custom_call.1} parent=5 // pred_fallthru
        _
      %p289 = scmp.lt.s32.totalorder %s16, 2
      // Predicated region
      $region37: #{tpu_custom_call.1} parent=5 // pred_check
        %p290 = pneg %p289
      $region38: #{tpu_custom_call.1} parent=5 // pred_check_branch
        %292 = sbr.rel (%p290) target = $region40
      $region39: #{tpu_custom_call.1} parent=5 // pred_region
        // Predicated region
        $region41: #{tpu_custom_call.1} parent=39 // pred_check
          %p293 = pneg %p36
        $region42: #{tpu_custom_call.1} parent=39 // pred_check_branch
          %295 = sbr.rel (%p293) target = $region44
        $region43: #{tpu_custom_call.1} parent=39 // pred_region
          %p296 = scmp.lt.s32.totalorder %s16, 1
          %s297 = scalar_select %p296, %s16, 1
          %s298 = smul.addr %s297, 2
          %s299 = smul.addr %s298, 8
          %s300 = scalar_lea.vmem %s0, %s299
        $region44: #{tpu_custom_call.1} parent=39 // pred_fallthru
          _
        // Predicated region
        $region45: #{tpu_custom_call.1} parent=39 // pred_check
          %p301 = pneg %p188
        $region46: #{tpu_custom_call.1} parent=39 // pred_check_branch
          %303 = sbr.rel (%p301) target = $region48
        $region47: #{tpu_custom_call.1} parent=39 // pred_region
          %p304 = scmp.lt.s32.totalorder %s16, 1
          %s305 = scalar_select %p304, %s16, 1
          %s306 = smul.addr %s305, 2
          %s307 = smul.addr %s306, 4
          %s308 = scalar_lea.vmem %s7, %s307
        $region48: #{tpu_custom_call.1} parent=39 // pred_fallthru
          _
        // Predicated region
        $region49: #{tpu_custom_call.1} parent=39 // pred_check
          %p309 = pneg %p214
        $region50: #{tpu_custom_call.1} parent=39 // pred_check_branch
          %311 = sbr.rel (%p309) target = $region52
        $region51: #{tpu_custom_call.1} parent=39 // pred_region
          %p312 = scmp.lt.s32.totalorder %s16, 1
          %s313 = scalar_select %p312, %s16, 1
          %s314 = smul.addr %s313, 2
          %s315 = scalar_lea.vmem %s8, %s314
        $region52: #{tpu_custom_call.1} parent=39 // pred_fallthru
          _
      $region40: #{tpu_custom_call.1} parent=5 // pred_fallthru
        _
      %p316 = scmp.le.s32.totalorder 1, %s16
      %p317 = scmp.lt.s32.totalorder %s16, 3
      %p318 = pnand %p316, %p317
      %p319 = pneg %p318
      // Predicated region
      $region53: #{tpu_custom_call.1} parent=5 // pred_check
        _
      $region54: #{tpu_custom_call.1} parent=5 // pred_check_branch
        %321 = sbr.rel (%p318) target = $region56
      $region55: #{tpu_custom_call.1} parent=5 // pred_region
        %s322 = ssub.s32 %s16, 1
        // Predicated region
        $region57: #{tpu_custom_call.1} parent=55 // pred_check
          %p323 = pneg %p105
        $region58: #{tpu_custom_call.1} parent=55 // pred_check_branch
          %325 = sbr.rel (%p323) target = $region60
        $region59: #{tpu_custom_call.1} parent=55 // pred_region
          %326 = dma.done [#allocation6], 512
        $region60: #{tpu_custom_call.1} parent=55 // pred_fallthru
          _
        %p327 = scmp.lt.s32.totalorder %s21, 1
        %s328 = scalar_select %p327, %s21, 1
        %s329 = smul.addr %s328, 2
        %s330 = smul.addr %s329, 8
        %s331 = scalar_lea.vmem %s0, %s330
        %p332 = pneg %p42
        %p333 = pneg %p39
        %p334 = pneg %p63
        %p335 = pneg %p60
        %p336 = pneg %p84
        %p337 = pneg %p81
        %p338 = pneg %p105
        %p339 = pneg %p102
        %p340 = pneg %p126
        %p341 = pneg %p123
        %p342 = pneg %p147
        %p343 = pneg %p144
        %p344 = pneg %p168
        %p345 = pneg %p165
        %p346 = scmp.lt.s32.totalorder %s21, 1
        %s347 = scalar_select %p346, %s21, 1
        %s348 = smul.addr %s347, 2
        %s349 = smul.addr %s348, 4
        %s350 = scalar_lea.vmem %s7, %s349
        %p351 = pneg %p194
        %p352 = pneg %p191
        %p353 = scmp.lt.s32.totalorder %s21, 1
        %s354 = scalar_select %p353, %s21, 1
        %s355 = smul.addr %s354, 2
        %s356 = scalar_lea.vmem %s8, %s355
        %p357 = pneg %p220
        %p358 = pneg %p217
        %p359 = pneg %p246
        %p360 = pneg %p243
        %p361 = scmp.lt.s32.totalorder %s21, 1
        %s362 = scalar_select %p361, %s21, 1
        %s363 = smul.addr %s362, 2
        %s364 = smul.addr %s363, 8
        %s365 = scalar_lea.vmem %s9, %s364
        %p366 = scmp.lt.s32.totalorder %s21, 1
        %s367 = scalar_select %p366, %s21, 1
        %s368 = smul.addr %s367, 2
        %s369 = smul.addr %s368, 8
        %s370 = scalar_lea.vmem %s0, %s369
        %p371 = scmp.lt.s32.totalorder %s21, 1
        %s372 = scalar_select %p371, %s21, 1
        %s373 = smul.addr %s372, 2
        %s374 = smul.addr %s373, 4
        %s375 = scalar_lea.vmem %s7, %s374
        %p376 = scmp.lt.s32.totalorder %s21, 1
        %s377 = scalar_select %p376, %s21, 1
        %s378 = smul.addr %s377, 2
        %s379 = scalar_lea.vmem %s8, %s378
        %p380 = scmp.lt.s32.totalorder %s21, 1
        %s381 = scalar_select %p380, %s21, 1
        %s382 = smul.addr %s381, 2
        %s383 = smul.addr %s382, 8
        %s384 = scalar_lea.vmem %s9, %s383
        %v385 = vld [vmem:[%s370] sm:$0xff]
        %v386 = vld [vmem:[%s370 + $0x8] sm:$0xf]
        %v387 = vld [vmem:[%s1] sm:$0xff]
        %v388 = vld [vmem:[%s1 + $0x8] sm:$0xff]
        %v389 = vld [vmem:[%s1 + $0x10] sm:$0xff]
        %v390 = vld [vmem:[%s1 + $0x18] sm:$0xff]
        %v391 = vld [vmem:[%s4] sm:$0x1]
        %v393 = vlaneseq
        %v394 = vshrl.u32 %v393, 7
        %v395 = vsub.s32 0, %v394
        %v396 = vrot.slane %v391, %v395
        %vm398 = vcmask 261120
        %v400 = vsel %vm398, %v385, 0
        %v403 = vsel %vm398, %v386, 0
        %v406 = vsel %vm398, %v387, 0
        %v409 = vsel %vm398, %v388, 0
        %v412 = vsel %vm398, %v389, 0
        %v415 = vsel %vm398, %v390, 0
        %417 = vmatprep.subr.mxu0 0.0
        %418 = vmatpush1.xpose.msra.mxu0 %v406
        %419 = vmatprep.subr.mxu0 0.0
        %420 = vmatpush1.xpose.msra.mxu0 %v409
        %421 = vmatprep.subr.mxu0 0.0
        %422 = vmatpush1.xpose.msra.mxu0 %v412
        %423 = vmatprep.subr.mxu0 0.0
        %424 = vmatpush1.xpose.msra.mxu0 %v415
        %425 = vmatprep.subr.mxu0 0.0
        %426 = vmatpush1.xpose.msra.mxu0 0.0
        %427 = vmatprep.subr.mxu0 0.0
        %428 = vmatpush1.xpose.msra.mxu0 0.0
        %429 = vmatprep.subr.mxu0 0.0
        %430 = vmatpush1.xpose.msra.mxu0 0.0
        %431 = vmatprep.subr.mxu0 0.0
        %432 = vmatpush1.xpose.msra.mxu0 0.0
        %433 = vmatprep.subr.mxu0 0.0
        %434 = vmatpush1.xpose.msra.mxu0 0.0
        %435 = vmatprep.subr.mxu0 0.0
        %436 = vmatpush1.xpose.msra.mxu0 0.0
        %437 = vmatprep.subr.mxu0 0.0
        %438 = vmatpush1.xpose.msra.mxu0 0.0
        %439 = vmatprep.subr.mxu0 0.0
        %440 = vmatpush1.xpose.msra.mxu0 0.0
        %441 = vmatprep.subr.mxu0 0.0
        %442 = vmatpush1.xpose.msra.mxu0 0.0
        %443 = vmatprep.subr.mxu0 0.0
        %444 = vmatpush1.xpose.msra.mxu0 0.0
        %445 = vmatprep.subr.mxu0 0.0
        %446 = vmatpush1.xpose.msra.mxu0 0.0
        %447 = vmatprep.subr.mxu0 0.0
        %448 = vmatpush1.xpose.msra.mxu0 0.0
        %449 = vmatprep.subr.mxu0 0.0
        %450 = vmatpush1.xpose.msra.mxu0 0.0
        %451 = vmatprep.subr.mxu0 0.0
        %452 = vmatpush1.xpose.msra.mxu0 0.0
        %453 = vmatprep.subr.mxu0 0.0
        %454 = vmatpush1.xpose.msra.mxu0 0.0
        %455 = vmatprep.subr.mxu0 0.0
        %456 = vmatpush1.xpose.msra.mxu0 0.0
        %457 = vmatprep.subr.mxu0 0.0
        %458 = vmatpush1.xpose.msra.mxu0 0.0
        %459 = vmatprep.subr.mxu0 0.0
        %460 = vmatpush1.xpose.msra.mxu0 0.0
        %461 = vmatprep.subr.mxu0 0.0
        %462 = vmatpush1.xpose.msra.mxu0 0.0
        %463 = vmatprep.subr.mxu0 0.0
        %464 = vmatpush1.xpose.msra.mxu0 0.0
        %465 = vmatprep.subr.mxu0 0.0
        %466 = vmatpush1.xpose.msra.mxu0 0.0
        %467 = vmatprep.subr.mxu0 0.0
        %468 = vmatpush1.xpose.msra.mxu0 0.0
        %469 = vmatprep.subr.mxu0 0.0
        %470 = vmatpush1.xpose.msra.mxu0 0.0
        %471 = vmatprep.subr.mxu0 0.0
        %472 = vmatpush1.xpose.msra.mxu0 0.0
        %473 = vmatprep.subr.mxu0 0.0
        %474 = vmatpush1.xpose.msra.mxu0 0.0
        %475 = vmatprep.subr.mxu0 0.0
        %476 = vmatpush1.xpose.msra.mxu0 0.0
        %477 = vmatprep.subr.mxu0 0.0
        %478 = vmatpush1.xpose.msra.mxu0 0.0
        %479 = vmatprep.subr.mxu0 0.0
        %480 = vmatpush1.xpose.msra.mxu0 0.0
        %481 = vmatprep.mubr.f32.mxu0 0.0
        %482 = vmatmul.mubr.f32.gmra.mrb[0].mxu0 %v400
        %v483 = vpop.f32.mrb[0].mxu0
        %v484 = vadd.f32 %v396, %v483
        %v485 = vpop.f32.mrb[0].mxu0
        %486 = vmatprep.mubr.f32.mxu0 0.0
        %487 = vmatmul.mubr.f32.gmra.mrb[0].mxu0 %v403
        %v488 = vpop.f32.mrb[0].mxu0
        %v489 = vadd.f32 %v396, %v488
        %v490 = vpop.f32.mrb[0].mxu0
        %491 = vdwg.mxu0
        %492 = vst.msk [vmem:[#allocation2] sm:$0xff] %vm398, %v484
        %vm493 = vcmask 257024
        %494 = vst.msk [vmem:[#allocation2 + $0x8] sm:$0xf] %vm493, %v489
        %v495 = vld [vmem:[%s2] sm:$0xff]
        %v496 = vld [vmem:[%s2 + $0x8] sm:$0xff]
        %v497 = vld [vmem:[%s2 + $0x10] sm:$0xff]
        %v498 = vld [vmem:[%s2 + $0x18] sm:$0xff]
        %v499 = vld [vmem:[%s5] sm:$0x1]
        %v501 = vlaneseq
        %v502 = vshrl.u32 %v501, 7
        %v503 = vsub.s32 0, %v502
        %v504 = vrot.slane %v499, %v503
        %v507 = vsel %vm398, %v495, 0
        %v510 = vsel %vm398, %v496, 0
        %v513 = vsel %vm398, %v497, 0
        %v516 = vsel %vm398, %v498, 0
        %518 = vmatprep.subr.mxu0 0.0
        %519 = vmatpush1.xpose.msra.mxu0 %v507
        %520 = vmatprep.subr.mxu0 0.0
        %521 = vmatpush1.xpose.msra.mxu0 %v510
        %522 = vmatprep.subr.mxu0 0.0
        %523 = vmatpush1.xpose.msra.mxu0 %v513
        %524 = vmatprep.subr.mxu0 0.0
        %525 = vmatpush1.xpose.msra.mxu0 %v516
        %526 = vmatprep.subr.mxu0 0.0
        %527 = vmatpush1.xpose.msra.mxu0 0.0
        %528 = vmatprep.subr.mxu0 0.0
        %529 = vmatpush1.xpose.msra.mxu0 0.0
        %530 = vmatprep.subr.mxu0 0.0
        %531 = vmatpush1.xpose.msra.mxu0 0.0
        %532 = vmatprep.subr.mxu0 0.0
        %533 = vmatpush1.xpose.msra.mxu0 0.0
        %534 = vmatprep.subr.mxu0 0.0
        %535 = vmatpush1.xpose.msra.mxu0 0.0
        %536 = vmatprep.subr.mxu0 0.0
        %537 = vmatpush1.xpose.msra.mxu0 0.0
        %538 = vmatprep.subr.mxu0 0.0
        %539 = vmatpush1.xpose.msra.mxu0 0.0
        %540 = vmatprep.subr.mxu0 0.0
        %541 = vmatpush1.xpose.msra.mxu0 0.0
        %542 = vmatprep.subr.mxu0 0.0
        %543 = vmatpush1.xpose.msra.mxu0 0.0
        %544 = vmatprep.subr.mxu0 0.0
        %545 = vmatpush1.xpose.msra.mxu0 0.0
        %546 = vmatprep.subr.mxu0 0.0
        %547 = vmatpush1.xpose.msra.mxu0 0.0
        %548 = vmatprep.subr.mxu0 0.0
        %549 = vmatpush1.xpose.msra.mxu0 0.0
        %550 = vmatprep.subr.mxu0 0.0
        %551 = vmatpush1.xpose.msra.mxu0 0.0
        %552 = vmatprep.subr.mxu0 0.0
        %553 = vmatpush1.xpose.msra.mxu0 0.0
        %554 = vmatprep.subr.mxu0 0.0
        %555 = vmatpush1.xpose.msra.mxu0 0.0
        %556 = vmatprep.subr.mxu0 0.0
        %557 = vmatpush1.xpose.msra.mxu0 0.0
        %558 = vmatprep.subr.mxu0 0.0
        %559 = vmatpush1.xpose.msra.mxu0 0.0
        %560 = vmatprep.subr.mxu0 0.0
        %561 = vmatpush1.xpose.msra.mxu0 0.0
        %562 = vmatprep.subr.mxu0 0.0
        %563 = vmatpush1.xpose.msra.mxu0 0.0
        %564 = vmatprep.subr.mxu0 0.0
        %565 = vmatpush1.xpose.msra.mxu0 0.0
        %566 = vmatprep.subr.mxu0 0.0
        %567 = vmatpush1.xpose.msra.mxu0 0.0
        %568 = vmatprep.subr.mxu0 0.0
        %569 = vmatpush1.xpose.msra.mxu0 0.0
        %570 = vmatprep.subr.mxu0 0.0
        %571 = vmatpush1.xpose.msra.mxu0 0.0
        %572 = vmatprep.subr.mxu0 0.0
        %573 = vmatpush1.xpose.msra.mxu0 0.0
        %574 = vmatprep.subr.mxu0 0.0
        %575 = vmatpush1.xpose.msra.mxu0 0.0
        %576 = vmatprep.subr.mxu0 0.0
        %577 = vmatpush1.xpose.msra.mxu0 0.0
        %578 = vmatprep.subr.mxu0 0.0
        %579 = vmatpush1.xpose.msra.mxu0 0.0
        %580 = vmatprep.subr.mxu0 0.0
        %581 = vmatpush1.xpose.msra.mxu0 0.0
        %582 = vmatprep.mubr.f32.mxu0 0.0
        %583 = vmatmul.mubr.f32.gmra.mrb[0].mxu0 %v400
        %v584 = vpop.f32.mrb[0].mxu0
        %v585 = vadd.f32 %v504, %v584
        %v586 = vpop.f32.mrb[0].mxu0
        %587 = vmatprep.mubr.f32.mxu0 0.0
        %588 = vmatmul.mubr.f32.gmra.mrb[0].mxu0 %v403
        %v589 = vpop.f32.mrb[0].mxu0
        %v590 = vadd.f32 %v504, %v589
        %v591 = vpop.f32.mrb[0].mxu0
        %592 = vdwg.mxu0
        %593 = vst.msk [vmem:[#allocation3] sm:$0xff] %vm398, %v585
        %594 = vst.msk [vmem:[#allocation3 + $0x8] sm:$0xf] %vm493, %v590
        %v595 = vld [vmem:[#allocation5] sm:$0xff]
        %v596 = vld [vmem:[#allocation5 + $0x8] sm:$0xff]
        %v597 = vld [vmem:[#allocation5 + $0x10] sm:$0xff]
        %v598 = vld [vmem:[#allocation5 + $0x18] sm:$0xff]
        %v599 = vld [vmem:[%s6] sm:$0x1]
        %v601 = vlaneseq
        %v602 = vshrl.u32 %v601, 7
        %v603 = vsub.s32 0, %v602
        %v604 = vrot.slane %v599, %v603
        %v607 = vsel %vm398, %v595, 0
        %v610 = vsel %vm398, %v596, 0
        %v613 = vsel %vm398, %v597, 0
        %v616 = vsel %vm398, %v598, 0
        %618 = vmatprep.subr.mxu0 0.0
        %619 = vmatpush1.xpose.msra.mxu0 %v607
        %620 = vmatprep.subr.mxu0 0.0
        %621 = vmatpush1.xpose.msra.mxu0 %v610
        %622 = vmatprep.subr.mxu0 0.0
        %623 = vmatpush1.xpose.msra.mxu0 %v613
        %624 = vmatprep.subr.mxu0 0.0
        %625 = vmatpush1.xpose.msra.mxu0 %v616
        %626 = vmatprep.subr.mxu0 0.0
        %627 = vmatpush1.xpose.msra.mxu0 0.0
        %628 = vmatprep.subr.mxu0 0.0
        %629 = vmatpush1.xpose.msra.mxu0 0.0
        %630 = vmatprep.subr.mxu0 0.0
        %631 = vmatpush1.xpose.msra.mxu0 0.0
        %632 = vmatprep.subr.mxu0 0.0
        %633 = vmatpush1.xpose.msra.mxu0 0.0
        %634 = vmatprep.subr.mxu0 0.0
        %635 = vmatpush1.xpose.msra.mxu0 0.0
        %636 = vmatprep.subr.mxu0 0.0
        %637 = vmatpush1.xpose.msra.mxu0 0.0
        %638 = vmatprep.subr.mxu0 0.0
        %639 = vmatpush1.xpose.msra.mxu0 0.0
        %640 = vmatprep.subr.mxu0 0.0
        %641 = vmatpush1.xpose.msra.mxu0 0.0
        %642 = vmatprep.subr.mxu0 0.0
        %643 = vmatpush1.xpose.msra.mxu0 0.0
        %644 = vmatprep.subr.mxu0 0.0
        %645 = vmatpush1.xpose.msra.mxu0 0.0
        %646 = vmatprep.subr.mxu0 0.0
        %647 = vmatpush1.xpose.msra.mxu0 0.0
        %648 = vmatprep.subr.mxu0 0.0
        %649 = vmatpush1.xpose.msra.mxu0 0.0
        %650 = vmatprep.subr.mxu0 0.0
        %651 = vmatpush1.xpose.msra.mxu0 0.0
        %652 = vmatprep.subr.mxu0 0.0
        %653 = vmatpush1.xpose.msra.mxu0 0.0
        %654 = vmatprep.subr.mxu0 0.0
        %655 = vmatpush1.xpose.msra.mxu0 0.0
        %656 = vmatprep.subr.mxu0 0.0
        %657 = vmatpush1.xpose.msra.mxu0 0.0
        %658 = vmatprep.subr.mxu0 0.0
        %659 = vmatpush1.xpose.msra.mxu0 0.0
        %660 = vmatprep.subr.mxu0 0.0
        %661 = vmatpush1.xpose.msra.mxu0 0.0
        %662 = vmatprep.subr.mxu0 0.0
        %663 = vmatpush1.xpose.msra.mxu0 0.0
        %664 = vmatprep.subr.mxu0 0.0
        %665 = vmatpush1.xpose.msra.mxu0 0.0
        %666 = vmatprep.subr.mxu0 0.0
        %667 = vmatpush1.xpose.msra.mxu0 0.0
        %668 = vmatprep.subr.mxu0 0.0
        %669 = vmatpush1.xpose.msra.mxu0 0.0
        %670 = vmatprep.subr.mxu0 0.0
        %671 = vmatpush1.xpose.msra.mxu0 0.0
        %672 = vmatprep.subr.mxu0 0.0
        %673 = vmatpush1.xpose.msra.mxu0 0.0
        %674 = vmatprep.subr.mxu0 0.0
        %675 = vmatpush1.xpose.msra.mxu0 0.0
        %676 = vmatprep.subr.mxu0 0.0
        %677 = vmatpush1.xpose.msra.mxu0 0.0
        %678 = vmatprep.subr.mxu0 0.0
        %679 = vmatpush1.xpose.msra.mxu0 0.0
        %680 = vmatprep.subr.mxu0 0.0
        %681 = vmatpush1.xpose.msra.mxu0 0.0
        %682 = vmatprep.mubr.f32.mxu0 0.0
        %683 = vmatmul.mubr.f32.gmra.mrb[0].mxu0 %v400
        %v684 = vpop.f32.mrb[0].mxu0
        %v685 = vadd.f32 %v604, %v684
        %v686 = vpop.f32.mrb[0].mxu0
        %687 = vmatprep.mubr.f32.mxu0 0.0
        %688 = vmatmul.mubr.f32.gmra.mrb[0].mxu0 %v403
        %v689 = vpop.f32.mrb[0].mxu0
        %v690 = vadd.f32 %v604, %v689
        %v691 = vpop.f32.mrb[0].mxu0
        %692 = vdwg.mxu0
        %693 = vst.msk [vmem:[#allocation4] sm:$0xff] %vm398, %v685
        %694 = vst.msk [vmem:[#allocation4 + $0x8] sm:$0xf] %vm493, %v690
        %v695 = vld [vmem:[%s375] sm:$0xf]
        %v696 = vld [vmem:[%s379] sm:$0x1]
        %697 = vset.pattern.permute.xlu0 0
        %698 = vperm.xlu0 %697, %v695
        %v699 = vpop.permute.xlu0 %698
        %v700 = vlaneseq
        %v701 = vshrl.u32 %v700, 7
        %v702 = vsub.s32 0, %v701
        %v703 = vrot.slane %v696, %v702
        %vm704 = vcmp.ne.s32.totalorder %v699, %v703
        %s705 = scalar_lea.vmem %s379, 1
        %v706 = vld [vmem:[%s705] sm:$0x1]
        %v707 = vlaneseq
        %v708 = vshrl.u32 %v707, 7
        %v709 = vsub.s32 0, %v708
        %v710 = vrot.slane %v706, %v709
        %vm711 = vcmp.ne.s32.totalorder %v699, %v710
        %s712 = scalar_lea.vmem %s375, 4
        %v713 = vld [vmem:[%s712] sm:$0xf]
        %714 = vset.pattern.permute.xlu0 0
        %715 = vperm.xlu0 %714, %v713
        %v716 = vpop.permute.xlu0 %715
        %vm717 = vcmp.ne.s32.totalorder %v716, %v710
        %vm718 = vcmp.ne.s32.totalorder %v716, %v703
        %v719 = vld [vmem:[#allocation2] sm:$0xff]
        %v720 = vld [vmem:[#allocation2 + $0x8] sm:$0xf]
        %v721 = vld [vmem:[#allocation3] sm:$0xff]
        %v722 = vld [vmem:[#allocation3 + $0x8] sm:$0xf]
        %v723 = vld [vmem:[#allocation4] sm:$0xff]
        %v724 = vld [vmem:[#allocation4 + $0x8] sm:$0xf]
        %vm725 = vcmask 64512
        %v727 = vsel %vm725, %v719, 0
        %v730 = vsel %vm725, %v721, 0
        %v733 = vsel %vm725, %v722, 0
        %735 = vmatprep.subr.mxu0 0.0
        %736 = vmatpush1.xpose.msra.mxu0 %v730
        %737 = vmatprep.subr.mxu0 0.0
        %738 = vmatpush1.xpose.msra.mxu0 %v733
        %739 = vmatprep.subr.mxu0 0.0
        %740 = vmatpush1.xpose.msra.mxu0 0.0
        %741 = vmatprep.subr.mxu0 0.0
        %742 = vmatpush1.xpose.msra.mxu0 0.0
        %743 = vmatprep.subr.mxu0 0.0
        %744 = vmatpush1.xpose.msra.mxu0 0.0
        %745 = vmatprep.subr.mxu0 0.0
        %746 = vmatpush1.xpose.msra.mxu0 0.0
        %747 = vmatprep.subr.mxu0 0.0
        %748 = vmatpush1.xpose.msra.mxu0 0.0
        %749 = vmatprep.subr.mxu0 0.0
        %750 = vmatpush1.xpose.msra.mxu0 0.0
        %751 = vmatprep.subr.mxu0 0.0
        %752 = vmatpush1.xpose.msra.mxu0 0.0
        %753 = vmatprep.subr.mxu0 0.0
        %754 = vmatpush1.xpose.msra.mxu0 0.0
        %755 = vmatprep.subr.mxu0 0.0
        %756 = vmatpush1.xpose.msra.mxu0 0.0
        %757 = vmatprep.subr.mxu0 0.0
        %758 = vmatpush1.xpose.msra.mxu0 0.0
        %759 = vmatprep.subr.mxu0 0.0
        %760 = vmatpush1.xpose.msra.mxu0 0.0
        %761 = vmatprep.subr.mxu0 0.0
        %762 = vmatpush1.xpose.msra.mxu0 0.0
        %763 = vmatprep.subr.mxu0 0.0
        %764 = vmatpush1.xpose.msra.mxu0 0.0
        %765 = vmatprep.subr.mxu0 0.0
        %766 = vmatpush1.xpose.msra.mxu0 0.0
        %767 = vmatprep.subr.mxu0 0.0
        %768 = vmatpush1.xpose.msra.mxu0 0.0
        %769 = vmatprep.subr.mxu0 0.0
        %770 = vmatpush1.xpose.msra.mxu0 0.0
        %771 = vmatprep.subr.mxu0 0.0
        %772 = vmatpush1.xpose.msra.mxu0 0.0
        %773 = vmatprep.subr.mxu0 0.0
        %774 = vmatpush1.xpose.msra.mxu0 0.0
        %775 = vmatprep.subr.mxu0 0.0
        %776 = vmatpush1.xpose.msra.mxu0 0.0
        %777 = vmatprep.subr.mxu0 0.0
        %778 = vmatpush1.xpose.msra.mxu0 0.0
        %779 = vmatprep.subr.mxu0 0.0
        %780 = vmatpush1.xpose.msra.mxu0 0.0
        %781 = vmatprep.subr.mxu0 0.0
        %782 = vmatpush1.xpose.msra.mxu0 0.0
        %783 = vmatprep.subr.mxu0 0.0
        %784 = vmatpush1.xpose.msra.mxu0 0.0
        %785 = vmatprep.subr.mxu0 0.0
        %786 = vmatpush1.xpose.msra.mxu0 0.0
        %787 = vmatprep.subr.mxu0 0.0
        %788 = vmatpush1.xpose.msra.mxu0 0.0
        %789 = vmatprep.subr.mxu0 0.0
        %790 = vmatpush1.xpose.msra.mxu0 0.0
        %791 = vmatprep.subr.mxu0 0.0
        %792 = vmatpush1.xpose.msra.mxu0 0.0
        %793 = vmatprep.subr.mxu0 0.0
        %794 = vmatpush1.xpose.msra.mxu0 0.0
        %795 = vmatprep.subr.mxu0 0.0
        %796 = vmatpush1.xpose.msra.mxu0 0.0
        %797 = vmatprep.subr.mxu0 0.0
        %798 = vmatpush1.xpose.msra.mxu0 0.0
        %799 = vmatprep.mubr.f32.mxu0 0.0
        %800 = vmatmul.mubr.f32.gmra.mrb[0].mxu0 %v727
        %v801 = vpop.f32.mrb[0].mxu0
        %v802 = vadd.f32 0.0, %v801
        %v803 = vpop.f32.mrb[0].mxu0
        %804 = vdwg.mxu0
        %v805 = vmul.f32 %v802, 0.35355338
        %vm806 = vcmask 93184
        %v807 = vsel %vm806, %v805, -inf
        %808 = vmax.xlane.f32.xlu0 %v807
        %v809 = vpop.xlane.xlu0 %808
        %v810 = vsub.f32 %v805, %v809
        %v811 = vmul.f32 %v810, 1.442695
        %v812 = vpow.pop %v811
        %v813 = vsel %vm806, %v812, 0.0
        %814 = vadd.xlane.f32.xlu0 %v813
        %v815 = vpop.xlane.xlu0 %814
        %v816 = vrcp.pop %v815
        %v817 = vmul.f32 %v812, %v816
        %vm818 = vcmask 97280
        %v820 = vsel %vm818, %v817, 0
        %vm822 = vcmask 1043456
        %v824 = vsel %vm822, %v724, 0
        %826 = vmatprep.subr.mxu0 0.0
        %827 = vmatpush1.msra.mxu0 %v723
        %828 = vmatprep.subr.mxu0 0.0
        %829 = vmatpush1.msra.mxu0 %v824
        %830 = vmatprep.subr.mxu0 0.0
        %831 = vmatpush1.msra.mxu0 0.0
        %832 = vmatprep.subr.mxu0 0.0
        %833 = vmatpush1.msra.mxu0 0.0
        %834 = vmatprep.subr.mxu0 0.0
        %835 = vmatpush1.msra.mxu0 0.0
        %836 = vmatprep.subr.mxu0 0.0
        %837 = vmatpush1.msra.mxu0 0.0
        %838 = vmatprep.subr.mxu0 0.0
        %839 = vmatpush1.msra.mxu0 0.0
        %840 = vmatprep.subr.mxu0 0.0
        %841 = vmatpush1.msra.mxu0 0.0
        %842 = vmatprep.subr.mxu0 0.0
        %843 = vmatpush1.msra.mxu0 0.0
        %844 = vmatprep.subr.mxu0 0.0
        %845 = vmatpush1.msra.mxu0 0.0
        %846 = vmatprep.subr.mxu0 0.0
        %847 = vmatpush1.msra.mxu0 0.0
        %848 = vmatprep.subr.mxu0 0.0
        %849 = vmatpush1.msra.mxu0 0.0
        %850 = vmatprep.subr.mxu0 0.0
        %851 = vmatpush1.msra.mxu0 0.0
        %852 = vmatprep.subr.mxu0 0.0
        %853 = vmatpush1.msra.mxu0 0.0
        %854 = vmatprep.subr.mxu0 0.0
        %855 = vmatpush1.msra.mxu0 0.0
        %856 = vmatprep.subr.mxu0 0.0
        %857 = vmatpush1.msra.mxu0 0.0
        %858 = vmatprep.subr.mxu0 0.0
        %859 = vmatpush1.msra.mxu0 0.0
        %860 = vmatprep.subr.mxu0 0.0
        %861 = vmatpush1.msra.mxu0 0.0
        %862 = vmatprep.subr.mxu0 0.0
        %863 = vmatpush1.msra.mxu0 0.0
        %864 = vmatprep.subr.mxu0 0.0
        %865 = vmatpush1.msra.mxu0 0.0
        %866 = vmatprep.subr.mxu0 0.0
        %867 = vmatpush1.msra.mxu0 0.0
        %868 = vmatprep.subr.mxu0 0.0
        %869 = vmatpush1.msra.mxu0 0.0
        %870 = vmatprep.subr.mxu0 0.0
        %871 = vmatpush1.msra.mxu0 0.0
        %872 = vmatprep.subr.mxu0 0.0
        %873 = vmatpush1.msra.mxu0 0.0
        %874 = vmatprep.subr.mxu0 0.0
        %875 = vmatpush1.msra.mxu0 0.0
        %876 = vmatprep.subr.mxu0 0.0
        %877 = vmatpush1.msra.mxu0 0.0
        %878 = vmatprep.subr.mxu0 0.0
        %879 = vmatpush1.msra.mxu0 0.0
        %880 = vmatprep.subr.mxu0 0.0
        %881 = vmatpush1.msra.mxu0 0.0
        %882 = vmatprep.subr.mxu0 0.0
        %883 = vmatpush1.msra.mxu0 0.0
        %884 = vmatprep.subr.mxu0 0.0
        %885 = vmatpush1.msra.mxu0 0.0
        %886 = vmatprep.subr.mxu0 0.0
        %887 = vmatpush1.msra.mxu0 0.0
        %888 = vmatprep.subr.mxu0 0.0
        %889 = vmatpush1.msra.mxu0 0.0
        %890 = vmatprep.mubr.f32.mxu0 0.0
        %891 = vmatmul.mubr.f32.gmra.mrb[0].mxu0 %v820
        %v892 = vpop.f32.mrb[0].mxu0
        %v893 = vadd.f32 0.0, %v892
        %v894 = vpop.f32.mrb[0].mxu0
        %895 = vdwg.mxu0
        %v897 = vrot.slane %v719, 4
        %v898 = vrot.slane %v720, 4
        %v899 = vsel %vm822, %v897, %v898
        %v900 = vsel %vm725, %v899, 0
        %902 = vmatprep.subr.mxu0 0.0
        %903 = vmatpush1.xpose.msra.mxu0 %v730
        %904 = vmatprep.subr.mxu0 0.0
        %905 = vmatpush1.xpose.msra.mxu0 0.0
        %906 = vmatprep.subr.mxu0 0.0
        %907 = vmatpush1.xpose.msra.mxu0 0.0
        %908 = vmatprep.subr.mxu0 0.0
        %909 = vmatpush1.xpose.msra.mxu0 0.0
        %910 = vmatprep.subr.mxu0 0.0
        %911 = vmatpush1.xpose.msra.mxu0 0.0
        %912 = vmatprep.subr.mxu0 0.0
        %913 = vmatpush1.xpose.msra.mxu0 0.0
        %914 = vmatprep.subr.mxu0 0.0
        %915 = vmatpush1.xpose.msra.mxu0 0.0
        %916 = vmatprep.subr.mxu0 0.0
        %917 = vmatpush1.xpose.msra.mxu0 0.0
        %918 = vmatprep.subr.mxu0 0.0
        %919 = vmatpush1.xpose.msra.mxu0 0.0
        %920 = vmatprep.subr.mxu0 0.0
        %921 = vmatpush1.xpose.msra.mxu0 0.0
        %922 = vmatprep.subr.mxu0 0.0
        %923 = vmatpush1.xpose.msra.mxu0 0.0
        %924 = vmatprep.subr.mxu0 0.0
        %925 = vmatpush1.xpose.msra.mxu0 0.0
        %926 = vmatprep.subr.mxu0 0.0
        %927 = vmatpush1.xpose.msra.mxu0 0.0
        %928 = vmatprep.subr.mxu0 0.0
        %929 = vmatpush1.xpose.msra.mxu0 0.0
        %930 = vmatprep.subr.mxu0 0.0
        %931 = vmatpush1.xpose.msra.mxu0 0.0
        %932 = vmatprep.subr.mxu0 0.0
        %933 = vmatpush1.xpose.msra.mxu0 0.0
        %934 = vmatprep.subr.mxu0 0.0
        %935 = vmatpush1.xpose.msra.mxu0 0.0
        %936 = vmatprep.subr.mxu0 0.0
        %937 = vmatpush1.xpose.msra.mxu0 0.0
        %938 = vmatprep.subr.mxu0 0.0
        %939 = vmatpush1.xpose.msra.mxu0 0.0
        %940 = vmatprep.subr.mxu0 0.0
        %941 = vmatpush1.xpose.msra.mxu0 0.0
        %942 = vmatprep.subr.mxu0 0.0
        %943 = vmatpush1.xpose.msra.mxu0 0.0
        %944 = vmatprep.subr.mxu0 0.0
        %945 = vmatpush1.xpose.msra.mxu0 0.0
        %946 = vmatprep.subr.mxu0 0.0
        %947 = vmatpush1.xpose.msra.mxu0 0.0
        %948 = vmatprep.subr.mxu0 0.0
        %949 = vmatpush1.xpose.msra.mxu0 0.0
        %950 = vmatprep.subr.mxu0 0.0
        %951 = vmatpush1.xpose.msra.mxu0 0.0
        %952 = vmatprep.subr.mxu0 0.0
        %953 = vmatpush1.xpose.msra.mxu0 0.0
        %954 = vmatprep.subr.mxu0 0.0
        %955 = vmatpush1.xpose.msra.mxu0 0.0
        %956 = vmatprep.subr.mxu0 0.0
        %957 = vmatpush1.xpose.msra.mxu0 0.0
        %958 = vmatprep.subr.mxu0 0.0
        %959 = vmatpush1.xpose.msra.mxu0 0.0
        %960 = vmatprep.subr.mxu0 0.0
        %961 = vmatpush1.xpose.msra.mxu0 0.0
        %962 = vmatprep.subr.mxu0 0.0
        %963 = vmatpush1.xpose.msra.mxu0 0.0
        %964 = vmatprep.subr.mxu0 0.0
        %965 = vmatpush1.xpose.msra.mxu0 0.0
        %966 = vmatprep.mubr.f32.mxu0 0.0
        %967 = vmatmul.mubr.f32.gmra.mrb[0].mxu0 %v900
        %v968 = vpop.f32.mrb[0].mxu0
        %v969 = vadd.f32 0.0, %v968
        %v970 = vpop.f32.mrb[0].mxu0
        %971 = vdwg.mxu0
        %v972 = vmul.f32 %v969, 0.35355338
        %v973 = vsel %vm725, %v897, 0
        %975 = vmatprep.subr.mxu0 0.0
        %976 = vmatpush1.xpose.msra.mxu0 %v733
        %977 = vmatprep.subr.mxu0 0.0
        %978 = vmatpush1.xpose.msra.mxu0 0.0
        %979 = vmatprep.subr.mxu0 0.0
        %980 = vmatpush1.xpose.msra.mxu0 0.0
        %981 = vmatprep.subr.mxu0 0.0
        %982 = vmatpush1.xpose.msra.mxu0 0.0
        %983 = vmatprep.subr.mxu0 0.0
        %984 = vmatpush1.xpose.msra.mxu0 0.0
        %985 = vmatprep.subr.mxu0 0.0
        %986 = vmatpush1.xpose.msra.mxu0 0.0
        %987 = vmatprep.subr.mxu0 0.0
        %988 = vmatpush1.xpose.msra.mxu0 0.0
        %989 = vmatprep.subr.mxu0 0.0
        %990 = vmatpush1.xpose.msra.mxu0 0.0
        %991 = vmatprep.subr.mxu0 0.0
        %992 = vmatpush1.xpose.msra.mxu0 0.0
        %993 = vmatprep.subr.mxu0 0.0
        %994 = vmatpush1.xpose.msra.mxu0 0.0
        %995 = vmatprep.subr.mxu0 0.0
        %996 = vmatpush1.xpose.msra.mxu0 0.0
        %997 = vmatprep.subr.mxu0 0.0
        %998 = vmatpush1.xpose.msra.mxu0 0.0
        %999 = vmatprep.subr.mxu0 0.0
        %1000 = vmatpush1.xpose.msra.mxu0 0.0
        %1001 = vmatprep.subr.mxu0 0.0
        %1002 = vmatpush1.xpose.msra.mxu0 0.0
        %1003 = vmatprep.subr.mxu0 0.0
        %1004 = vmatpush1.xpose.msra.mxu0 0.0
        %1005 = vmatprep.subr.mxu0 0.0
        %1006 = vmatpush1.xpose.msra.mxu0 0.0
        %1007 = vmatprep.subr.mxu0 0.0
        %1008 = vmatpush1.xpose.msra.mxu0 0.0
        %1009 = vmatprep.subr.mxu0 0.0
        %1010 = vmatpush1.xpose.msra.mxu0 0.0
        %1011 = vmatprep.subr.mxu0 0.0
        %1012 = vmatpush1.xpose.msra.mxu0 0.0
        %1013 = vmatprep.subr.mxu0 0.0
        %1014 = vmatpush1.xpose.msra.mxu0 0.0
        %1015 = vmatprep.subr.mxu0 0.0
        %1016 = vmatpush1.xpose.msra.mxu0 0.0
        %1017 = vmatprep.subr.mxu0 0.0
        %1018 = vmatpush1.xpose.msra.mxu0 0.0
        %1019 = vmatprep.subr.mxu0 0.0
        %1020 = vmatpush1.xpose.msra.mxu0 0.0
        %1021 = vmatprep.subr.mxu0 0.0
        %1022 = vmatpush1.xpose.msra.mxu0 0.0
        %1023 = vmatprep.subr.mxu0 0.0
        %1024 = vmatpush1.xpose.msra.mxu0 0.0
        %1025 = vmatprep.subr.mxu0 0.0
        %1026 = vmatpush1.xpose.msra.mxu0 0.0
        %1027 = vmatprep.subr.mxu0 0.0
        %1028 = vmatpush1.xpose.msra.mxu0 0.0
        %1029 = vmatprep.subr.mxu0 0.0
        %1030 = vmatpush1.xpose.msra.mxu0 0.0
        %1031 = vmatprep.subr.mxu0 0.0
        %1032 = vmatpush1.xpose.msra.mxu0 0.0
        %1033 = vmatprep.subr.mxu0 0.0
        %1034 = vmatpush1.xpose.msra.mxu0 0.0
        %1035 = vmatprep.subr.mxu0 0.0
        %1036 = vmatpush1.xpose.msra.mxu0 0.0
        %1037 = vmatprep.subr.mxu0 0.0
        %1038 = vmatpush1.xpose.msra.mxu0 0.0
        %1039 = vmatprep.mubr.f32.mxu0 0.0
        %1040 = vmatmul.mubr.f32.gmra.mrb[0].mxu0 %v973
        %v1041 = vpop.f32.mrb[0].mxu0
        %v1042 = vadd.f32 0.0, %v1041
        %v1043 = vpop.f32.mrb[0].mxu0
        %1044 = vdwg.mxu0
        %v1045 = vmul.f32 %v1042, 0.35355338
        %v1046 = vrot.slane %v721, 4
        %v1047 = vsel %vm725, %v1046, 0
        %1049 = vmatprep.subr.mxu0 0.0
        %1050 = vmatpush1.xpose.msra.mxu0 %v1047
        %1051 = vmatprep.subr.mxu0 0.0
        %1052 = vmatpush1.xpose.msra.mxu0 0.0
        %1053 = vmatprep.subr.mxu0 0.0
        %1054 = vmatpush1.xpose.msra.mxu0 0.0
        %1055 = vmatprep.subr.mxu0 0.0
        %1056 = vmatpush1.xpose.msra.mxu0 0.0
        %1057 = vmatprep.subr.mxu0 0.0
        %1058 = vmatpush1.xpose.msra.mxu0 0.0
        %1059 = vmatprep.subr.mxu0 0.0
        %1060 = vmatpush1.xpose.msra.mxu0 0.0
        %1061 = vmatprep.subr.mxu0 0.0
        %1062 = vmatpush1.xpose.msra.mxu0 0.0
        %1063 = vmatprep.subr.mxu0 0.0
        %1064 = vmatpush1.xpose.msra.mxu0 0.0
        %1065 = vmatprep.subr.mxu0 0.0
        %1066 = vmatpush1.xpose.msra.mxu0 0.0
        %1067 = vmatprep.subr.mxu0 0.0
        %1068 = vmatpush1.xpose.msra.mxu0 0.0
        %1069 = vmatprep.subr.mxu0 0.0
        %1070 = vmatpush1.xpose.msra.mxu0 0.0
        %1071 = vmatprep.subr.mxu0 0.0
        %1072 = vmatpush1.xpose.msra.mxu0 0.0
        %1073 = vmatprep.subr.mxu0 0.0
        %1074 = vmatpush1.xpose.msra.mxu0 0.0
        %1075 = vmatprep.subr.mxu0 0.0
        %1076 = vmatpush1.xpose.msra.mxu0 0.0
        %1077 = vmatprep.subr.mxu0 0.0
        %1078 = vmatpush1.xpose.msra.mxu0 0.0
        %1079 = vmatprep.subr.mxu0 0.0
        %1080 = vmatpush1.xpose.msra.mxu0 0.0
        %1081 = vmatprep.subr.mxu0 0.0
        %1082 = vmatpush1.xpose.msra.mxu0 0.0
        %1083 = vmatprep.subr.mxu0 0.0
        %1084 = vmatpush1.xpose.msra.mxu0 0.0
        %1085 = vmatprep.subr.mxu0 0.0
        %1086 = vmatpush1.xpose.msra.mxu0 0.0
        %1087 = vmatprep.subr.mxu0 0.0
        %1088 = vmatpush1.xpose.msra.mxu0 0.0
        %1089 = vmatprep.subr.mxu0 0.0
        %1090 = vmatpush1.xpose.msra.mxu0 0.0
        %1091 = vmatprep.subr.mxu0 0.0
        %1092 = vmatpush1.xpose.msra.mxu0 0.0
        %1093 = vmatprep.subr.mxu0 0.0
        %1094 = vmatpush1.xpose.msra.mxu0 0.0
        %1095 = vmatprep.subr.mxu0 0.0
        %1096 = vmatpush1.xpose.msra.mxu0 0.0
        %1097 = vmatprep.subr.mxu0 0.0
        %1098 = vmatpush1.xpose.msra.mxu0 0.0
        %1099 = vmatprep.subr.mxu0 0.0
        %1100 = vmatpush1.xpose.msra.mxu0 0.0
        %1101 = vmatprep.subr.mxu0 0.0
        %1102 = vmatpush1.xpose.msra.mxu0 0.0
        %1103 = vmatprep.subr.mxu0 0.0
        %1104 = vmatpush1.xpose.msra.mxu0 0.0
        %1105 = vmatprep.subr.mxu0 0.0
        %1106 = vmatpush1.xpose.msra.mxu0 0.0
        %1107 = vmatprep.subr.mxu0 0.0
        %1108 = vmatpush1.xpose.msra.mxu0 0.0
        %1109 = vmatprep.subr.mxu0 0.0
        %1110 = vmatpush1.xpose.msra.mxu0 0.0
        %1111 = vmatprep.subr.mxu0 0.0
        %1112 = vmatpush1.xpose.msra.mxu0 0.0
        %1113 = vmatprep.mubr.f32.mxu0 0.0
        %1114 = vmatmul.mubr.f32.gmra.mrb[0].mxu0 %v973
        %v1115 = vpop.f32.mrb[0].mxu0
        %v1116 = vadd.f32 0.0, %v1115
        %v1117 = vpop.f32.mrb[0].mxu0
        %1118 = vdwg.mxu0
        %v1119 = vmul.f32 %v1116, 0.35355338
        %v1120 = vsel %vm711, -2.3819763e+38, %v1045
        %v1121 = vsel %vm704, -2.3819763e+38, %v1119
        %vm1122 = vcmask 27648
        %v1123 = vsel %vm1122, %v972, -inf
        %1124 = vmax.xlane.f32.xlu0 %v1123
        %v1125 = vpop.xlane.xlu0 %1124
        %v1126 = vsel %vm1122, %v1120, -inf
        %1127 = vmax.xlane.f32.xlu0 %v1126
        %v1128 = vpop.xlane.xlu0 %1127
        %v1129 = vsel %vm1122, %v1121, -inf
        %1130 = vmax.xlane.f32.xlu0 %v1129
        %v1131 = vpop.xlane.xlu0 %1130
        %v1132 = vmax.f32 %v1128, %v1131
        %v1133 = vmax.f32 %v1125, %v1132
        %v1134 = vsub.f32 %v972, %v1133
        %v1135 = vmul.f32 %v1134, 1.442695
        %v1136 = vpow.pop %v1135
        %v1137 = vsub.f32 %v1120, %v1133
        %v1138 = vmul.f32 %v1137, 1.442695
        %v1139 = vpow.pop %v1138
        %v1140 = vsub.f32 %v1121, %v1133
        %v1141 = vmul.f32 %v1140, 1.442695
        %v1142 = vpow.pop %v1141
        %v1143 = vsel %vm1122, %v1136, 0.0
        %1144 = vadd.xlane.f32.xlu0 %v1143
        %v1145 = vpop.xlane.xlu0 %1144
        %v1146 = vsel %vm1122, %v1139, 0.0
        %1147 = vadd.xlane.f32.xlu0 %v1146
        %v1148 = vpop.xlane.xlu0 %1147
        %v1149 = vadd.f32 %v1145, %v1148
        %v1150 = vsel %vm1122, %v1142, 0.0
        %1151 = vadd.xlane.f32.xlu0 %v1150
        %v1152 = vpop.xlane.xlu0 %1151
        %v1153 = vadd.f32 %v1149, %v1152
        %v1154 = vrcp.pop %v1153
        %vm1155 = vcmask 31744
        %v1157 = vsel %vm1155, %v1139, 0
        %1159 = vmatprep.subr.mxu0 0.0
        %1160 = vmatpush1.msra.mxu0 %v824
        %1161 = vmatprep.subr.mxu0 0.0
        %1162 = vmatpush1.msra.mxu0 0.0
        %1163 = vmatprep.subr.mxu0 0.0
        %1164 = vmatpush1.msra.mxu0 0.0
        %1165 = vmatprep.subr.mxu0 0.0
        %1166 = vmatpush1.msra.mxu0 0.0
        %1167 = vmatprep.subr.mxu0 0.0
        %1168 = vmatpush1.msra.mxu0 0.0
        %1169 = vmatprep.subr.mxu0 0.0
        %1170 = vmatpush1.msra.mxu0 0.0
        %1171 = vmatprep.subr.mxu0 0.0
        %1172 = vmatpush1.msra.mxu0 0.0
        %1173 = vmatprep.subr.mxu0 0.0
        %1174 = vmatpush1.msra.mxu0 0.0
        %1175 = vmatprep.subr.mxu0 0.0
        %1176 = vmatpush1.msra.mxu0 0.0
        %1177 = vmatprep.subr.mxu0 0.0
        %1178 = vmatpush1.msra.mxu0 0.0
        %1179 = vmatprep.subr.mxu0 0.0
        %1180 = vmatpush1.msra.mxu0 0.0
        %1181 = vmatprep.subr.mxu0 0.0
        %1182 = vmatpush1.msra.mxu0 0.0
        %1183 = vmatprep.subr.mxu0 0.0
        %1184 = vmatpush1.msra.mxu0 0.0
        %1185 = vmatprep.subr.mxu0 0.0
        %1186 = vmatpush1.msra.mxu0 0.0
        %1187 = vmatprep.subr.mxu0 0.0
        %1188 = vmatpush1.msra.mxu0 0.0
        %1189 = vmatprep.subr.mxu0 0.0
        %1190 = vmatpush1.msra.mxu0 0.0
        %1191 = vmatprep.subr.mxu0 0.0
        %1192 = vmatpush1.msra.mxu0 0.0
        %1193 = vmatprep.subr.mxu0 0.0
        %1194 = vmatpush1.msra.mxu0 0.0
        %1195 = vmatprep.subr.mxu0 0.0
        %1196 = vmatpush1.msra.mxu0 0.0
        %1197 = vmatprep.subr.mxu0 0.0
        %1198 = vmatpush1.msra.mxu0 0.0
        %1199 = vmatprep.subr.mxu0 0.0
        %1200 = vmatpush1.msra.mxu0 0.0
        %1201 = vmatprep.subr.mxu0 0.0
        %1202 = vmatpush1.msra.mxu0 0.0
        %1203 = vmatprep.subr.mxu0 0.0
        %1204 = vmatpush1.msra.mxu0 0.0
        %1205 = vmatprep.subr.mxu0 0.0
        %1206 = vmatpush1.msra.mxu0 0.0
        %1207 = vmatprep.subr.mxu0 0.0
        %1208 = vmatpush1.msra.mxu0 0.0
        %1209 = vmatprep.subr.mxu0 0.0
        %1210 = vmatpush1.msra.mxu0 0.0
        %1211 = vmatprep.subr.mxu0 0.0
        %1212 = vmatpush1.msra.mxu0 0.0
        %1213 = vmatprep.subr.mxu0 0.0
        %1214 = vmatpush1.msra.mxu0 0.0
        %1215 = vmatprep.subr.mxu0 0.0
        %1216 = vmatpush1.msra.mxu0 0.0
        %1217 = vmatprep.subr.mxu0 0.0
        %1218 = vmatpush1.msra.mxu0 0.0
        %1219 = vmatprep.subr.mxu0 0.0
        %1220 = vmatpush1.msra.mxu0 0.0
        %1221 = vmatprep.subr.mxu0 0.0
        %1222 = vmatpush1.msra.mxu0 0.0
        %1223 = vmatprep.mubr.f32.mxu0 0.0
        %1224 = vmatmul.mubr.f32.gmra.mrb[0].mxu0 %v1157
        %v1225 = vpop.f32.mrb[0].mxu0
        %v1226 = vadd.f32 0.0, %v1225
        %v1227 = vpop.f32.mrb[0].mxu0
        %1228 = vdwg.mxu0
        %v1230 = vsel %vm1155, %v1136, 0
        %v1233 = vsel %vm822, %v723, 0
        %1235 = vmatprep.subr.mxu0 0.0
        %1236 = vmatpush1.msra.mxu0 %v1233
        %1237 = vmatprep.subr.mxu0 0.0
        %1238 = vmatpush1.msra.mxu0 0.0
        %1239 = vmatprep.subr.mxu0 0.0
        %1240 = vmatpush1.msra.mxu0 0.0
        %1241 = vmatprep.subr.mxu0 0.0
        %1242 = vmatpush1.msra.mxu0 0.0
        %1243 = vmatprep.subr.mxu0 0.0
        %1244 = vmatpush1.msra.mxu0 0.0
        %1245 = vmatprep.subr.mxu0 0.0
        %1246 = vmatpush1.msra.mxu0 0.0
        %1247 = vmatprep.subr.mxu0 0.0
        %1248 = vmatpush1.msra.mxu0 0.0
        %1249 = vmatprep.subr.mxu0 0.0
        %1250 = vmatpush1.msra.mxu0 0.0
        %1251 = vmatprep.subr.mxu0 0.0
        %1252 = vmatpush1.msra.mxu0 0.0
        %1253 = vmatprep.subr.mxu0 0.0
        %1254 = vmatpush1.msra.mxu0 0.0
        %1255 = vmatprep.subr.mxu0 0.0
        %1256 = vmatpush1.msra.mxu0 0.0
        %1257 = vmatprep.subr.mxu0 0.0
        %1258 = vmatpush1.msra.mxu0 0.0
        %1259 = vmatprep.subr.mxu0 0.0
        %1260 = vmatpush1.msra.mxu0 0.0
        %1261 = vmatprep.subr.mxu0 0.0
        %1262 = vmatpush1.msra.mxu0 0.0
        %1263 = vmatprep.subr.mxu0 0.0
        %1264 = vmatpush1.msra.mxu0 0.0
        %1265 = vmatprep.subr.mxu0 0.0
        %1266 = vmatpush1.msra.mxu0 0.0
        %1267 = vmatprep.subr.mxu0 0.0
        %1268 = vmatpush1.msra.mxu0 0.0
        %1269 = vmatprep.subr.mxu0 0.0
        %1270 = vmatpush1.msra.mxu0 0.0
        %1271 = vmatprep.subr.mxu0 0.0
        %1272 = vmatpush1.msra.mxu0 0.0
        %1273 = vmatprep.subr.mxu0 0.0
        %1274 = vmatpush1.msra.mxu0 0.0
        %1275 = vmatprep.subr.mxu0 0.0
        %1276 = vmatpush1.msra.mxu0 0.0
        %1277 = vmatprep.subr.mxu0 0.0
        %1278 = vmatpush1.msra.mxu0 0.0
        %1279 = vmatprep.subr.mxu0 0.0
        %1280 = vmatpush1.msra.mxu0 0.0
        %1281 = vmatprep.subr.mxu0 0.0
        %1282 = vmatpush1.msra.mxu0 0.0
        %1283 = vmatprep.subr.mxu0 0.0
        %1284 = vmatpush1.msra.mxu0 0.0
        %1285 = vmatprep.subr.mxu0 0.0
        %1286 = vmatpush1.msra.mxu0 0.0
        %1287 = vmatprep.subr.mxu0 0.0
        %1288 = vmatpush1.msra.mxu0 0.0
        %1289 = vmatprep.subr.mxu0 0.0
        %1290 = vmatpush1.msra.mxu0 0.0
        %1291 = vmatprep.subr.mxu0 0.0
        %1292 = vmatpush1.msra.mxu0 0.0
        %1293 = vmatprep.subr.mxu0 0.0
        %1294 = vmatpush1.msra.mxu0 0.0
        %1295 = vmatprep.subr.mxu0 0.0
        %1296 = vmatpush1.msra.mxu0 0.0
        %1297 = vmatprep.subr.mxu0 0.0
        %1298 = vmatpush1.msra.mxu0 0.0
        %1299 = vmatprep.mubr.f32.mxu0 0.0
        %1300 = vmatmul.mubr.f32.gmra.mrb[0].mxu0 %v1230
        %v1301 = vpop.f32.mrb[0].mxu0
        %v1302 = vadd.f32 %v1226, %v1301
        %v1303 = vpop.f32.mrb[0].mxu0
        %1304 = vdwg.mxu0
        %v1305 = vrot.slane %v723, 4
        %v1307 = vsel %vm1155, %v1142, 0
        %v1309 = vsel %vm822, %v1305, 0
        %1311 = vmatprep.subr.mxu0 0.0
        %1312 = vmatpush1.msra.mxu0 %v1309
        %1313 = vmatprep.subr.mxu0 0.0
        %1314 = vmatpush1.msra.mxu0 0.0
        %1315 = vmatprep.subr.mxu0 0.0
        %1316 = vmatpush1.msra.mxu0 0.0
        %1317 = vmatprep.subr.mxu0 0.0
        %1318 = vmatpush1.msra.mxu0 0.0
        %1319 = vmatprep.subr.mxu0 0.0
        %1320 = vmatpush1.msra.mxu0 0.0
        %1321 = vmatprep.subr.mxu0 0.0
        %1322 = vmatpush1.msra.mxu0 0.0
        %1323 = vmatprep.subr.mxu0 0.0
        %1324 = vmatpush1.msra.mxu0 0.0
        %1325 = vmatprep.subr.mxu0 0.0
        %1326 = vmatpush1.msra.mxu0 0.0
        %1327 = vmatprep.subr.mxu0 0.0
        %1328 = vmatpush1.msra.mxu0 0.0
        %1329 = vmatprep.subr.mxu0 0.0
        %1330 = vmatpush1.msra.mxu0 0.0
        %1331 = vmatprep.subr.mxu0 0.0
        %1332 = vmatpush1.msra.mxu0 0.0
        %1333 = vmatprep.subr.mxu0 0.0
        %1334 = vmatpush1.msra.mxu0 0.0
        %1335 = vmatprep.subr.mxu0 0.0
        %1336 = vmatpush1.msra.mxu0 0.0
        %1337 = vmatprep.subr.mxu0 0.0
        %1338 = vmatpush1.msra.mxu0 0.0
        %1339 = vmatprep.subr.mxu0 0.0
        %1340 = vmatpush1.msra.mxu0 0.0
        %1341 = vmatprep.subr.mxu0 0.0
        %1342 = vmatpush1.msra.mxu0 0.0
        %1343 = vmatprep.subr.mxu0 0.0
        %1344 = vmatpush1.msra.mxu0 0.0
        %1345 = vmatprep.subr.mxu0 0.0
        %1346 = vmatpush1.msra.mxu0 0.0
        %1347 = vmatprep.subr.mxu0 0.0
        %1348 = vmatpush1.msra.mxu0 0.0
        %1349 = vmatprep.subr.mxu0 0.0
        %1350 = vmatpush1.msra.mxu0 0.0
        %1351 = vmatprep.subr.mxu0 0.0
        %1352 = vmatpush1.msra.mxu0 0.0
        %1353 = vmatprep.subr.mxu0 0.0
        %1354 = vmatpush1.msra.mxu0 0.0
        %1355 = vmatprep.subr.mxu0 0.0
        %1356 = vmatpush1.msra.mxu0 0.0
        %1357 = vmatprep.subr.mxu0 0.0
        %1358 = vmatpush1.msra.mxu0 0.0
        %1359 = vmatprep.subr.mxu0 0.0
        %1360 = vmatpush1.msra.mxu0 0.0
        %1361 = vmatprep.subr.mxu0 0.0
        %1362 = vmatpush1.msra.mxu0 0.0
        %1363 = vmatprep.subr.mxu0 0.0
        %1364 = vmatpush1.msra.mxu0 0.0
        %1365 = vmatprep.subr.mxu0 0.0
        %1366 = vmatpush1.msra.mxu0 0.0
        %1367 = vmatprep.subr.mxu0 0.0
        %1368 = vmatpush1.msra.mxu0 0.0
        %1369 = vmatprep.subr.mxu0 0.0
        %1370 = vmatpush1.msra.mxu0 0.0
        %1371 = vmatprep.subr.mxu0 0.0
        %1372 = vmatpush1.msra.mxu0 0.0
        %1373 = vmatprep.subr.mxu0 0.0
        %1374 = vmatpush1.msra.mxu0 0.0
        %1375 = vmatprep.mubr.f32.mxu0 0.0
        %1376 = vmatmul.mubr.f32.gmra.mrb[0].mxu0 %v1307
        %v1377 = vpop.f32.mrb[0].mxu0
        %v1378 = vadd.f32 0.0, %v1377
        %v1379 = vpop.f32.mrb[0].mxu0
        %1380 = vdwg.mxu0
        %v1381 = vadd.f32 %v1302, %v1378
        %v1382 = vmul.f32 %v1381, %v1154
        %v1383 = vsel %vm725, %v720, 0
        %1385 = vmatprep.subr.mxu0 0.0
        %1386 = vmatpush1.xpose.msra.mxu0 %v1047
        %1387 = vmatprep.subr.mxu0 0.0
        %1388 = vmatpush1.xpose.msra.mxu0 0.0
        %1389 = vmatprep.subr.mxu0 0.0
        %1390 = vmatpush1.xpose.msra.mxu0 0.0
        %1391 = vmatprep.subr.mxu0 0.0
        %1392 = vmatpush1.xpose.msra.mxu0 0.0
        %1393 = vmatprep.subr.mxu0 0.0
        %1394 = vmatpush1.xpose.msra.mxu0 0.0
        %1395 = vmatprep.subr.mxu0 0.0
        %1396 = vmatpush1.xpose.msra.mxu0 0.0
        %1397 = vmatprep.subr.mxu0 0.0
        %1398 = vmatpush1.xpose.msra.mxu0 0.0
        %1399 = vmatprep.subr.mxu0 0.0
        %1400 = vmatpush1.xpose.msra.mxu0 0.0
        %1401 = vmatprep.subr.mxu0 0.0
        %1402 = vmatpush1.xpose.msra.mxu0 0.0
        %1403 = vmatprep.subr.mxu0 0.0
        %1404 = vmatpush1.xpose.msra.mxu0 0.0
        %1405 = vmatprep.subr.mxu0 0.0
        %1406 = vmatpush1.xpose.msra.mxu0 0.0
        %1407 = vmatprep.subr.mxu0 0.0
        %1408 = vmatpush1.xpose.msra.mxu0 0.0
        %1409 = vmatprep.subr.mxu0 0.0
        %1410 = vmatpush1.xpose.msra.mxu0 0.0
        %1411 = vmatprep.subr.mxu0 0.0
        %1412 = vmatpush1.xpose.msra.mxu0 0.0
        %1413 = vmatprep.subr.mxu0 0.0
        %1414 = vmatpush1.xpose.msra.mxu0 0.0
        %1415 = vmatprep.subr.mxu0 0.0
        %1416 = vmatpush1.xpose.msra.mxu0 0.0
        %1417 = vmatprep.subr.mxu0 0.0
        %1418 = vmatpush1.xpose.msra.mxu0 0.0
        %1419 = vmatprep.subr.mxu0 0.0
        %1420 = vmatpush1.xpose.msra.mxu0 0.0
        %1421 = vmatprep.subr.mxu0 0.0
        %1422 = vmatpush1.xpose.msra.mxu0 0.0
        %1423 = vmatprep.subr.mxu0 0.0
        %1424 = vmatpush1.xpose.msra.mxu0 0.0
        %1425 = vmatprep.subr.mxu0 0.0
        %1426 = vmatpush1.xpose.msra.mxu0 0.0
        %1427 = vmatprep.subr.mxu0 0.0
        %1428 = vmatpush1.xpose.msra.mxu0 0.0
        %1429 = vmatprep.subr.mxu0 0.0
        %1430 = vmatpush1.xpose.msra.mxu0 0.0
        %1431 = vmatprep.subr.mxu0 0.0
        %1432 = vmatpush1.xpose.msra.mxu0 0.0
        %1433 = vmatprep.subr.mxu0 0.0
        %1434 = vmatpush1.xpose.msra.mxu0 0.0
        %1435 = vmatprep.subr.mxu0 0.0
        %1436 = vmatpush1.xpose.msra.mxu0 0.0
        %1437 = vmatprep.subr.mxu0 0.0
        %1438 = vmatpush1.xpose.msra.mxu0 0.0
        %1439 = vmatprep.subr.mxu0 0.0
        %1440 = vmatpush1.xpose.msra.mxu0 0.0
        %1441 = vmatprep.subr.mxu0 0.0
        %1442 = vmatpush1.xpose.msra.mxu0 0.0
        %1443 = vmatprep.subr.mxu0 0.0
        %1444 = vmatpush1.xpose.msra.mxu0 0.0
        %1445 = vmatprep.subr.mxu0 0.0
        %1446 = vmatpush1.xpose.msra.mxu0 0.0
        %1447 = vmatprep.subr.mxu0 0.0
        %1448 = vmatpush1.xpose.msra.mxu0 0.0
        %1449 = vmatprep.mubr.f32.mxu0 0.0
        %1450 = vmatmul.mubr.f32.gmra.mrb[0].mxu0 %v1383
        %v1451 = vpop.f32.mrb[0].mxu0
        %v1452 = vadd.f32 0.0, %v1451
        %v1453 = vpop.f32.mrb[0].mxu0
        %1454 = vdwg.mxu0
        %v1455 = vmul.f32 %v1452, 0.35355338
        %1456 = vmatprep.subr.mxu0 0.0
        %1457 = vmatpush1.xpose.msra.mxu0 %v733
        %1458 = vmatprep.subr.mxu0 0.0
        %1459 = vmatpush1.xpose.msra.mxu0 0.0
        %1460 = vmatprep.subr.mxu0 0.0
        %1461 = vmatpush1.xpose.msra.mxu0 0.0
        %1462 = vmatprep.subr.mxu0 0.0
        %1463 = vmatpush1.xpose.msra.mxu0 0.0
        %1464 = vmatprep.subr.mxu0 0.0
        %1465 = vmatpush1.xpose.msra.mxu0 0.0
        %1466 = vmatprep.subr.mxu0 0.0
        %1467 = vmatpush1.xpose.msra.mxu0 0.0
        %1468 = vmatprep.subr.mxu0 0.0
        %1469 = vmatpush1.xpose.msra.mxu0 0.0
        %1470 = vmatprep.subr.mxu0 0.0
        %1471 = vmatpush1.xpose.msra.mxu0 0.0
        %1472 = vmatprep.subr.mxu0 0.0
        %1473 = vmatpush1.xpose.msra.mxu0 0.0
        %1474 = vmatprep.subr.mxu0 0.0
        %1475 = vmatpush1.xpose.msra.mxu0 0.0
        %1476 = vmatprep.subr.mxu0 0.0
        %1477 = vmatpush1.xpose.msra.mxu0 0.0
        %1478 = vmatprep.subr.mxu0 0.0
        %1479 = vmatpush1.xpose.msra.mxu0 0.0
        %1480 = vmatprep.subr.mxu0 0.0
        %1481 = vmatpush1.xpose.msra.mxu0 0.0
        %1482 = vmatprep.subr.mxu0 0.0
        %1483 = vmatpush1.xpose.msra.mxu0 0.0
        %1484 = vmatprep.subr.mxu0 0.0
        %1485 = vmatpush1.xpose.msra.mxu0 0.0
        %1486 = vmatprep.subr.mxu0 0.0
        %1487 = vmatpush1.xpose.msra.mxu0 0.0
        %1488 = vmatprep.subr.mxu0 0.0
        %1489 = vmatpush1.xpose.msra.mxu0 0.0
        %1490 = vmatprep.subr.mxu0 0.0
        %1491 = vmatpush1.xpose.msra.mxu0 0.0
        %1492 = vmatprep.subr.mxu0 0.0
        %1493 = vmatpush1.xpose.msra.mxu0 0.0
        %1494 = vmatprep.subr.mxu0 0.0
        %1495 = vmatpush1.xpose.msra.mxu0 0.0
        %1496 = vmatprep.subr.mxu0 0.0
        %1497 = vmatpush1.xpose.msra.mxu0 0.0
        %1498 = vmatprep.subr.mxu0 0.0
        %1499 = vmatpush1.xpose.msra.mxu0 0.0
        %1500 = vmatprep.subr.mxu0 0.0
        %1501 = vmatpush1.xpose.msra.mxu0 0.0
        %1502 = vmatprep.subr.mxu0 0.0
        %1503 = vmatpush1.xpose.msra.mxu0 0.0
        %1504 = vmatprep.subr.mxu0 0.0
        %1505 = vmatpush1.xpose.msra.mxu0 0.0
        %1506 = vmatprep.subr.mxu0 0.0
        %1507 = vmatpush1.xpose.msra.mxu0 0.0
        %1508 = vmatprep.subr.mxu0 0.0
        %1509 = vmatpush1.xpose.msra.mxu0 0.0
        %1510 = vmatprep.subr.mxu0 0.0
        %1511 = vmatpush1.xpose.msra.mxu0 0.0
        %1512 = vmatprep.subr.mxu0 0.0
        %1513 = vmatpush1.xpose.msra.mxu0 0.0
        %1514 = vmatprep.subr.mxu0 0.0
        %1515 = vmatpush1.xpose.msra.mxu0 0.0
        %1516 = vmatprep.subr.mxu0 0.0
        %1517 = vmatpush1.xpose.msra.mxu0 0.0
        %1518 = vmatprep.subr.mxu0 0.0
        %1519 = vmatpush1.xpose.msra.mxu0 0.0
        %1520 = vmatprep.mubr.f32.mxu0 0.0
        %1521 = vmatmul.mubr.f32.gmra.mrb[0].mxu0 %v1383
        %v1522 = vpop.f32.mrb[0].mxu0
        %v1523 = vadd.f32 0.0, %v1522
        %v1524 = vpop.f32.mrb[0].mxu0
        %1525 = vdwg.mxu0
        %v1526 = vmul.f32 %v1523, 0.35355338
        %v1527 = vsel %vm718, -2.3819763e+38, %v1455
        %v1528 = vsel %vm717, -2.3819763e+38, %v1526
        %vm1529 = vcmask 31748
        %v1530 = vsel %vm1529, %v972, -inf
        %1531 = vmax.xlane.f32.xlu0 %v1530
        %v1532 = vpop.xlane.xlu0 %1531
        %v1533 = vsel %vm1122, %v1527, -inf
        %1534 = vmax.xlane.f32.xlu0 %v1533
        %v1535 = vpop.xlane.xlu0 %1534
        %v1536 = vsel %vm1122, %v1528, -inf
        %1537 = vmax.xlane.f32.xlu0 %v1536
        %v1538 = vpop.xlane.xlu0 %1537
        %v1539 = vmax.f32 %v1535, %v1538
        %v1541 = vrot.slane %v1539, 4
        %v1543 = vmax.f32 %v1532, %v1541
        %1545 = vset.pattern.permute.xlu0 0
        %1546 = vperm.xlu0 %1545, %v1543
        %v1547 = vpop.permute.xlu0 %1546
        %v1549 = vsub.f32 %v972, %v1547
        %v1550 = vmul.f32 %v1549, 1.442695
        %v1551 = vpow.pop %v1550
        %v1552 = vrot.slane %v1547, 4
        %v1554 = vsub.f32 %v1527, %v1552
        %v1555 = vmul.f32 %v1554, 1.442695
        %v1556 = vpow.pop %v1555
        %v1557 = vsub.f32 %v1528, %v1552
        %v1558 = vmul.f32 %v1557, 1.442695
        %v1559 = vpow.pop %v1558
        %v1560 = vsel %vm1529, %v1551, 0.0
        %1561 = vadd.xlane.f32.xlu0 %v1560
        %v1562 = vpop.xlane.xlu0 %1561
        %v1563 = vsel %vm1122, %v1556, 0.0
        %1564 = vadd.xlane.f32.xlu0 %v1563
        %v1565 = vpop.xlane.xlu0 %1564
        %v1567 = vrot.slane %v1565, 4
        %v1569 = vadd.f32 %v1562, %v1567
        %v1570 = vsel %vm1122, %v1559, 0.0
        %1571 = vadd.xlane.f32.xlu0 %v1570
        %v1572 = vpop.xlane.xlu0 %1571
        %v1574 = vrot.slane %v1572, 4
        %v1576 = vadd.f32 %v1569, %v1574
        %v1577 = vrcp.pop %v1576
        %v1579 = vsel %vm1155, %v1556, 0
        %1581 = vmatprep.subr.mxu0 0.0
        %1582 = vmatpush1.msra.mxu0 %v1309
        %1583 = vmatprep.subr.mxu0 0.0
        %1584 = vmatpush1.msra.mxu0 0.0
        %1585 = vmatprep.subr.mxu0 0.0
        %1586 = vmatpush1.msra.mxu0 0.0
        %1587 = vmatprep.subr.mxu0 0.0
        %1588 = vmatpush1.msra.mxu0 0.0
        %1589 = vmatprep.subr.mxu0 0.0
        %1590 = vmatpush1.msra.mxu0 0.0
        %1591 = vmatprep.subr.mxu0 0.0
        %1592 = vmatpush1.msra.mxu0 0.0
        %1593 = vmatprep.subr.mxu0 0.0
        %1594 = vmatpush1.msra.mxu0 0.0
        %1595 = vmatprep.subr.mxu0 0.0
        %1596 = vmatpush1.msra.mxu0 0.0
        %1597 = vmatprep.subr.mxu0 0.0
        %1598 = vmatpush1.msra.mxu0 0.0
        %1599 = vmatprep.subr.mxu0 0.0
        %1600 = vmatpush1.msra.mxu0 0.0
        %1601 = vmatprep.subr.mxu0 0.0
        %1602 = vmatpush1.msra.mxu0 0.0
        %1603 = vmatprep.subr.mxu0 0.0
        %1604 = vmatpush1.msra.mxu0 0.0
        %1605 = vmatprep.subr.mxu0 0.0
        %1606 = vmatpush1.msra.mxu0 0.0
        %1607 = vmatprep.subr.mxu0 0.0
        %1608 = vmatpush1.msra.mxu0 0.0
        %1609 = vmatprep.subr.mxu0 0.0
        %1610 = vmatpush1.msra.mxu0 0.0
        %1611 = vmatprep.subr.mxu0 0.0
        %1612 = vmatpush1.msra.mxu0 0.0
        %1613 = vmatprep.subr.mxu0 0.0
        %1614 = vmatpush1.msra.mxu0 0.0
        %1615 = vmatprep.subr.mxu0 0.0
        %1616 = vmatpush1.msra.mxu0 0.0
        %1617 = vmatprep.subr.mxu0 0.0
        %1618 = vmatpush1.msra.mxu0 0.0
        %1619 = vmatprep.subr.mxu0 0.0
        %1620 = vmatpush1.msra.mxu0 0.0
        %1621 = vmatprep.subr.mxu0 0.0
        %1622 = vmatpush1.msra.mxu0 0.0
        %1623 = vmatprep.subr.mxu0 0.0
        %1624 = vmatpush1.msra.mxu0 0.0
        %1625 = vmatprep.subr.mxu0 0.0
        %1626 = vmatpush1.msra.mxu0 0.0
        %1627 = vmatprep.subr.mxu0 0.0
        %1628 = vmatpush1.msra.mxu0 0.0
        %1629 = vmatprep.subr.mxu0 0.0
        %1630 = vmatpush1.msra.mxu0 0.0
        %1631 = vmatprep.subr.mxu0 0.0
        %1632 = vmatpush1.msra.mxu0 0.0
        %1633 = vmatprep.subr.mxu0 0.0
        %1634 = vmatpush1.msra.mxu0 0.0
        %1635 = vmatprep.subr.mxu0 0.0
        %1636 = vmatpush1.msra.mxu0 0.0
        %1637 = vmatprep.subr.mxu0 0.0
        %1638 = vmatpush1.msra.mxu0 0.0
        %1639 = vmatprep.subr.mxu0 0.0
        %1640 = vmatpush1.msra.mxu0 0.0
        %1641 = vmatprep.subr.mxu0 0.0
        %1642 = vmatpush1.msra.mxu0 0.0
        %1643 = vmatprep.subr.mxu0 0.0
        %1644 = vmatpush1.msra.mxu0 0.0
        %1645 = vmatprep.mubr.f32.mxu0 0.0
        %1646 = vmatmul.mubr.f32.gmra.mrb[0].mxu0 %v1579
        %v1647 = vpop.f32.mrb[0].mxu0
        %v1648 = vadd.f32 0.0, %v1647
        %v1649 = vpop.f32.mrb[0].mxu0
        %1650 = vdwg.mxu0
        %v1652 = vrot.slane %v1551, 4
        %v1653 = vsel %vm1155, %v1652, 0
        %1655 = vmatprep.subr.mxu0 0.0
        %1656 = vmatpush1.msra.mxu0 %v1233
        %1657 = vmatprep.subr.mxu0 0.0
        %1658 = vmatpush1.msra.mxu0 0.0
        %1659 = vmatprep.subr.mxu0 0.0
        %1660 = vmatpush1.msra.mxu0 0.0
        %1661 = vmatprep.subr.mxu0 0.0
        %1662 = vmatpush1.msra.mxu0 0.0
        %1663 = vmatprep.subr.mxu0 0.0
        %1664 = vmatpush1.msra.mxu0 0.0
        %1665 = vmatprep.subr.mxu0 0.0
        %1666 = vmatpush1.msra.mxu0 0.0
        %1667 = vmatprep.subr.mxu0 0.0
        %1668 = vmatpush1.msra.mxu0 0.0
        %1669 = vmatprep.subr.mxu0 0.0
        %1670 = vmatpush1.msra.mxu0 0.0
        %1671 = vmatprep.subr.mxu0 0.0
        %1672 = vmatpush1.msra.mxu0 0.0
        %1673 = vmatprep.subr.mxu0 0.0
        %1674 = vmatpush1.msra.mxu0 0.0
        %1675 = vmatprep.subr.mxu0 0.0
        %1676 = vmatpush1.msra.mxu0 0.0
        %1677 = vmatprep.subr.mxu0 0.0
        %1678 = vmatpush1.msra.mxu0 0.0
        %1679 = vmatprep.subr.mxu0 0.0
        %1680 = vmatpush1.msra.mxu0 0.0
        %1681 = vmatprep.subr.mxu0 0.0
        %1682 = vmatpush1.msra.mxu0 0.0
        %1683 = vmatprep.subr.mxu0 0.0
        %1684 = vmatpush1.msra.mxu0 0.0
        %1685 = vmatprep.subr.mxu0 0.0
        %1686 = vmatpush1.msra.mxu0 0.0
        %1687 = vmatprep.subr.mxu0 0.0
        %1688 = vmatpush1.msra.mxu0 0.0
        %1689 = vmatprep.subr.mxu0 0.0
        %1690 = vmatpush1.msra.mxu0 0.0
        %1691 = vmatprep.subr.mxu0 0.0
        %1692 = vmatpush1.msra.mxu0 0.0
        %1693 = vmatprep.subr.mxu0 0.0
        %1694 = vmatpush1.msra.mxu0 0.0
        %1695 = vmatprep.subr.mxu0 0.0
        %1696 = vmatpush1.msra.mxu0 0.0
        %1697 = vmatprep.subr.mxu0 0.0
        %1698 = vmatpush1.msra.mxu0 0.0
        %1699 = vmatprep.subr.mxu0 0.0
        %1700 = vmatpush1.msra.mxu0 0.0
        %1701 = vmatprep.subr.mxu0 0.0
        %1702 = vmatpush1.msra.mxu0 0.0
        %1703 = vmatprep.subr.mxu0 0.0
        %1704 = vmatpush1.msra.mxu0 0.0
        %1705 = vmatprep.subr.mxu0 0.0
        %1706 = vmatpush1.msra.mxu0 0.0
        %1707 = vmatprep.subr.mxu0 0.0
        %1708 = vmatpush1.msra.mxu0 0.0
        %1709 = vmatprep.subr.mxu0 0.0
        %1710 = vmatpush1.msra.mxu0 0.0
        %1711 = vmatprep.subr.mxu0 0.0
        %1712 = vmatpush1.msra.mxu0 0.0
        %1713 = vmatprep.subr.mxu0 0.0
        %1714 = vmatpush1.msra.mxu0 0.0
        %1715 = vmatprep.subr.mxu0 0.0
        %1716 = vmatpush1.msra.mxu0 0.0
        %1717 = vmatprep.subr.mxu0 0.0
        %1718 = vmatpush1.msra.mxu0 0.0
        %1719 = vmatprep.mubr.f32.mxu0 0.0
        %1720 = vmatmul.mubr.f32.gmra.mrb[0].mxu0 %v1653
        %v1721 = vpop.f32.mrb[0].mxu0
        %v1722 = vadd.f32 %v1648, %v1721
        %v1723 = vpop.f32.mrb[0].mxu0
        %1724 = vdwg.mxu0
        %v1726 = vsel %vm1155, %v1559, 0
        %1728 = vmatprep.subr.mxu0 0.0
        %1729 = vmatpush1.msra.mxu0 %v824
        %1730 = vmatprep.subr.mxu0 0.0
        %1731 = vmatpush1.msra.mxu0 0.0
        %1732 = vmatprep.subr.mxu0 0.0
        %1733 = vmatpush1.msra.mxu0 0.0
        %1734 = vmatprep.subr.mxu0 0.0
        %1735 = vmatpush1.msra.mxu0 0.0
        %1736 = vmatprep.subr.mxu0 0.0
        %1737 = vmatpush1.msra.mxu0 0.0
        %1738 = vmatprep.subr.mxu0 0.0
        %1739 = vmatpush1.msra.mxu0 0.0
        %1740 = vmatprep.subr.mxu0 0.0
        %1741 = vmatpush1.msra.mxu0 0.0
        %1742 = vmatprep.subr.mxu0 0.0
        %1743 = vmatpush1.msra.mxu0 0.0
        %1744 = vmatprep.subr.mxu0 0.0
        %1745 = vmatpush1.msra.mxu0 0.0
        %1746 = vmatprep.subr.mxu0 0.0
        %1747 = vmatpush1.msra.mxu0 0.0
        %1748 = vmatprep.subr.mxu0 0.0
        %1749 = vmatpush1.msra.mxu0 0.0
        %1750 = vmatprep.subr.mxu0 0.0
        %1751 = vmatpush1.msra.mxu0 0.0
        %1752 = vmatprep.subr.mxu0 0.0
        %1753 = vmatpush1.msra.mxu0 0.0
        %1754 = vmatprep.subr.mxu0 0.0
        %1755 = vmatpush1.msra.mxu0 0.0
        %1756 = vmatprep.subr.mxu0 0.0
        %1757 = vmatpush1.msra.mxu0 0.0
        %1758 = vmatprep.subr.mxu0 0.0
        %1759 = vmatpush1.msra.mxu0 0.0
        %1760 = vmatprep.subr.mxu0 0.0
        %1761 = vmatpush1.msra.mxu0 0.0
        %1762 = vmatprep.subr.mxu0 0.0
        %1763 = vmatpush1.msra.mxu0 0.0
        %1764 = vmatprep.subr.mxu0 0.0
        %1765 = vmatpush1.msra.mxu0 0.0
        %1766 = vmatprep.subr.mxu0 0.0
        %1767 = vmatpush1.msra.mxu0 0.0
        %1768 = vmatprep.subr.mxu0 0.0
        %1769 = vmatpush1.msra.mxu0 0.0
        %1770 = vmatprep.subr.mxu0 0.0
        %1771 = vmatpush1.msra.mxu0 0.0
        %1772 = vmatprep.subr.mxu0 0.0
        %1773 = vmatpush1.msra.mxu0 0.0
        %1774 = vmatprep.subr.mxu0 0.0
        %1775 = vmatpush1.msra.mxu0 0.0
        %1776 = vmatprep.subr.mxu0 0.0
        %1777 = vmatpush1.msra.mxu0 0.0
        %1778 = vmatprep.subr.mxu0 0.0
        %1779 = vmatpush1.msra.mxu0 0.0
        %1780 = vmatprep.subr.mxu0 0.0
        %1781 = vmatpush1.msra.mxu0 0.0
        %1782 = vmatprep.subr.mxu0 0.0
        %1783 = vmatpush1.msra.mxu0 0.0
        %1784 = vmatprep.subr.mxu0 0.0
        %1785 = vmatpush1.msra.mxu0 0.0
        %1786 = vmatprep.subr.mxu0 0.0
        %1787 = vmatpush1.msra.mxu0 0.0
        %1788 = vmatprep.subr.mxu0 0.0
        %1789 = vmatpush1.msra.mxu0 0.0
        %1790 = vmatprep.subr.mxu0 0.0
        %1791 = vmatpush1.msra.mxu0 0.0
        %1792 = vmatprep.mubr.f32.mxu0 0.0
        %1793 = vmatmul.mubr.f32.gmra.mrb[0].mxu0 %v1726
        %v1794 = vpop.f32.mrb[0].mxu0
        %v1795 = vadd.f32 0.0, %v1794
        %v1796 = vpop.f32.mrb[0].mxu0
        %1797 = vdwg.mxu0
        %v1798 = vadd.f32 %v1722, %v1795
        %1800 = vset.pattern.permute.xlu0 0
        %1801 = vperm.xlu0 %1800, %v1577
        %v1802 = vpop.permute.xlu0 %1801
        %v1803 = vrot.slane %v1802, 4
        %v1805 = vmul.f32 %v1798, %v1803
        %1806 = vrot.lane.b32.xlu0 %v719, 120
        %v1807 = vpop.permute.xlu0 %1806
        %1808 = vrot.lane.b32.xlu0 %v721, 120
        %v1809 = vpop.permute.xlu0 %1808
        %1810 = vrot.lane.b32.xlu0 %v722, 120
        %v1811 = vpop.permute.xlu0 %1810
        %v1812 = vsel %vm725, %v1807, 0
        %v1814 = vsel %vm725, %v1809, 0
        %v1816 = vsel %vm725, %v1811, 0
        %1818 = vmatprep.subr.mxu0 0.0
        %1819 = vmatpush1.xpose.msra.mxu0 %v1814
        %1820 = vmatprep.subr.mxu0 0.0
        %1821 = vmatpush1.xpose.msra.mxu0 %v1816
        %1822 = vmatprep.subr.mxu0 0.0
        %1823 = vmatpush1.xpose.msra.mxu0 0.0
        %1824 = vmatprep.subr.mxu0 0.0
        %1825 = vmatpush1.xpose.msra.mxu0 0.0
        %1826 = vmatprep.subr.mxu0 0.0
        %1827 = vmatpush1.xpose.msra.mxu0 0.0
        %1828 = vmatprep.subr.mxu0 0.0
        %1829 = vmatpush1.xpose.msra.mxu0 0.0
        %1830 = vmatprep.subr.mxu0 0.0
        %1831 = vmatpush1.xpose.msra.mxu0 0.0
        %1832 = vmatprep.subr.mxu0 0.0
        %1833 = vmatpush1.xpose.msra.mxu0 0.0
        %1834 = vmatprep.subr.mxu0 0.0
        %1835 = vmatpush1.xpose.msra.mxu0 0.0
        %1836 = vmatprep.subr.mxu0 0.0
        %1837 = vmatpush1.xpose.msra.mxu0 0.0
        %1838 = vmatprep.subr.mxu0 0.0
        %1839 = vmatpush1.xpose.msra.mxu0 0.0
        %1840 = vmatprep.subr.mxu0 0.0
        %1841 = vmatpush1.xpose.msra.mxu0 0.0
        %1842 = vmatprep.subr.mxu0 0.0
        %1843 = vmatpush1.xpose.msra.mxu0 0.0
        %1844 = vmatprep.subr.mxu0 0.0
        %1845 = vmatpush1.xpose.msra.mxu0 0.0
        %1846 = vmatprep.subr.mxu0 0.0
        %1847 = vmatpush1.xpose.msra.mxu0 0.0
        %1848 = vmatprep.subr.mxu0 0.0
        %1849 = vmatpush1.xpose.msra.mxu0 0.0
        %1850 = vmatprep.subr.mxu0 0.0
        %1851 = vmatpush1.xpose.msra.mxu0 0.0
        %1852 = vmatprep.subr.mxu0 0.0
        %1853 = vmatpush1.xpose.msra.mxu0 0.0
        %1854 = vmatprep.subr.mxu0 0.0
        %1855 = vmatpush1.xpose.msra.mxu0 0.0
        %1856 = vmatprep.subr.mxu0 0.0
        %1857 = vmatpush1.xpose.msra.mxu0 0.0
        %1858 = vmatprep.subr.mxu0 0.0
        %1859 = vmatpush1.xpose.msra.mxu0 0.0
        %1860 = vmatprep.subr.mxu0 0.0
        %1861 = vmatpush1.xpose.msra.mxu0 0.0
        %1862 = vmatprep.subr.mxu0 0.0
        %1863 = vmatpush1.xpose.msra.mxu0 0.0
        %1864 = vmatprep.subr.mxu0 0.0
        %1865 = vmatpush1.xpose.msra.mxu0 0.0
        %1866 = vmatprep.subr.mxu0 0.0
        %1867 = vmatpush1.xpose.msra.mxu0 0.0
        %1868 = vmatprep.subr.mxu0 0.0
        %1869 = vmatpush1.xpose.msra.mxu0 0.0
        %1870 = vmatprep.subr.mxu0 0.0
        %1871 = vmatpush1.xpose.msra.mxu0 0.0
        %1872 = vmatprep.subr.mxu0 0.0
        %1873 = vmatpush1.xpose.msra.mxu0 0.0
        %1874 = vmatprep.subr.mxu0 0.0
        %1875 = vmatpush1.xpose.msra.mxu0 0.0
        %1876 = vmatprep.subr.mxu0 0.0
        %1877 = vmatpush1.xpose.msra.mxu0 0.0
        %1878 = vmatprep.subr.mxu0 0.0
        %1879 = vmatpush1.xpose.msra.mxu0 0.0
        %1880 = vmatprep.subr.mxu0 0.0
        %1881 = vmatpush1.xpose.msra.mxu0 0.0
        %1882 = vmatprep.mubr.f32.mxu0 0.0
        %1883 = vmatmul.mubr.f32.gmra.mrb[0].mxu0 %v1812
        %v1884 = vpop.f32.mrb[0].mxu0
        %v1885 = vadd.f32 0.0, %v1884
        %v1886 = vpop.f32.mrb[0].mxu0
        %1887 = vdwg.mxu0
        %v1888 = vmul.f32 %v1885, 0.35355338
        %v1889 = vsel %vm806, %v1888, -inf
        %1890 = vmax.xlane.f32.xlu0 %v1889
        %v1891 = vpop.xlane.xlu0 %1890
        %v1892 = vsub.f32 %v1888, %v1891
        %v1893 = vmul.f32 %v1892, 1.442695
        %v1894 = vpow.pop %v1893
        %v1895 = vsel %vm806, %v1894, 0.0
        %1896 = vadd.xlane.f32.xlu0 %v1895
        %v1897 = vpop.xlane.xlu0 %1896
        %v1898 = vrcp.pop %v1897
        %v1899 = vmul.f32 %v1894, %v1898
        %1900 = vrot.lane.b32.xlu0 %v723, 120
        %v1901 = vpop.permute.xlu0 %1900
        %1902 = vrot.lane.b32.xlu0 %v724, 120
        %v1903 = vpop.permute.xlu0 %1902
        %v1906 = vsel %vm818, %v1899, 0
        %v1908 = vsel %vm822, %v1903, 0
        %1910 = vmatprep.subr.mxu0 0.0
        %1911 = vmatpush1.msra.mxu0 %v1901
        %1912 = vmatprep.subr.mxu0 0.0
        %1913 = vmatpush1.msra.mxu0 %v1908
        %1914 = vmatprep.subr.mxu0 0.0
        %1915 = vmatpush1.msra.mxu0 0.0
        %1916 = vmatprep.subr.mxu0 0.0
        %1917 = vmatpush1.msra.mxu0 0.0
        %1918 = vmatprep.subr.mxu0 0.0
        %1919 = vmatpush1.msra.mxu0 0.0
        %1920 = vmatprep.subr.mxu0 0.0
        %1921 = vmatpush1.msra.mxu0 0.0
        %1922 = vmatprep.subr.mxu0 0.0
        %1923 = vmatpush1.msra.mxu0 0.0
        %1924 = vmatprep.subr.mxu0 0.0
        %1925 = vmatpush1.msra.mxu0 0.0
        %1926 = vmatprep.subr.mxu0 0.0
        %1927 = vmatpush1.msra.mxu0 0.0
        %1928 = vmatprep.subr.mxu0 0.0
        %1929 = vmatpush1.msra.mxu0 0.0
        %1930 = vmatprep.subr.mxu0 0.0
        %1931 = vmatpush1.msra.mxu0 0.0
        %1932 = vmatprep.subr.mxu0 0.0
        %1933 = vmatpush1.msra.mxu0 0.0
        %1934 = vmatprep.subr.mxu0 0.0
        %1935 = vmatpush1.msra.mxu0 0.0
        %1936 = vmatprep.subr.mxu0 0.0
        %1937 = vmatpush1.msra.mxu0 0.0
        %1938 = vmatprep.subr.mxu0 0.0
        %1939 = vmatpush1.msra.mxu0 0.0
        %1940 = vmatprep.subr.mxu0 0.0
        %1941 = vmatpush1.msra.mxu0 0.0
        %1942 = vmatprep.subr.mxu0 0.0
        %1943 = vmatpush1.msra.mxu0 0.0
        %1944 = vmatprep.subr.mxu0 0.0
        %1945 = vmatpush1.msra.mxu0 0.0
        %1946 = vmatprep.subr.mxu0 0.0
        %1947 = vmatpush1.msra.mxu0 0.0
        %1948 = vmatprep.subr.mxu0 0.0
        %1949 = vmatpush1.msra.mxu0 0.0
        %1950 = vmatprep.subr.mxu0 0.0
        %1951 = vmatpush1.msra.mxu0 0.0
        %1952 = vmatprep.subr.mxu0 0.0
        %1953 = vmatpush1.msra.mxu0 0.0
        %1954 = vmatprep.subr.mxu0 0.0
        %1955 = vmatpush1.msra.mxu0 0.0
        %1956 = vmatprep.subr.mxu0 0.0
        %1957 = vmatpush1.msra.mxu0 0.0
        %1958 = vmatprep.subr.mxu0 0.0
        %1959 = vmatpush1.msra.mxu0 0.0
        %1960 = vmatprep.subr.mxu0 0.0
        %1961 = vmatpush1.msra.mxu0 0.0
        %1962 = vmatprep.subr.mxu0 0.0
        %1963 = vmatpush1.msra.mxu0 0.0
        %1964 = vmatprep.subr.mxu0 0.0
        %1965 = vmatpush1.msra.mxu0 0.0
        %1966 = vmatprep.subr.mxu0 0.0
        %1967 = vmatpush1.msra.mxu0 0.0
        %1968 = vmatprep.subr.mxu0 0.0
        %1969 = vmatpush1.msra.mxu0 0.0
        %1970 = vmatprep.subr.mxu0 0.0
        %1971 = vmatpush1.msra.mxu0 0.0
        %1972 = vmatprep.subr.mxu0 0.0
        %1973 = vmatpush1.msra.mxu0 0.0
        %1974 = vmatprep.mubr.f32.mxu0 0.0
        %1975 = vmatmul.mubr.f32.gmra.mrb[0].mxu0 %v1906
        %v1976 = vpop.f32.mrb[0].mxu0
        %v1977 = vadd.f32 0.0, %v1976
        %v1978 = vpop.f32.mrb[0].mxu0
        %1979 = vdwg.mxu0
        %1980 = vrot.lane.b32.xlu0 %v899, 120
        %v1981 = vpop.permute.xlu0 %1980
        %v1982 = vsel %vm725, %v1981, 0
        %1984 = vmatprep.subr.mxu0 0.0
        %1985 = vmatpush1.xpose.msra.mxu0 %v1814
        %1986 = vmatprep.subr.mxu0 0.0
        %1987 = vmatpush1.xpose.msra.mxu0 0.0
        %1988 = vmatprep.subr.mxu0 0.0
        %1989 = vmatpush1.xpose.msra.mxu0 0.0
        %1990 = vmatprep.subr.mxu0 0.0
        %1991 = vmatpush1.xpose.msra.mxu0 0.0
        %1992 = vmatprep.subr.mxu0 0.0
        %1993 = vmatpush1.xpose.msra.mxu0 0.0
        %1994 = vmatprep.subr.mxu0 0.0
        %1995 = vmatpush1.xpose.msra.mxu0 0.0
        %1996 = vmatprep.subr.mxu0 0.0
        %1997 = vmatpush1.xpose.msra.mxu0 0.0
        %1998 = vmatprep.subr.mxu0 0.0
        %1999 = vmatpush1.xpose.msra.mxu0 0.0
        %2000 = vmatprep.subr.mxu0 0.0
        %2001 = vmatpush1.xpose.msra.mxu0 0.0
        %2002 = vmatprep.subr.mxu0 0.0
        %2003 = vmatpush1.xpose.msra.mxu0 0.0
        %2004 = vmatprep.subr.mxu0 0.0
        %2005 = vmatpush1.xpose.msra.mxu0 0.0
        %2006 = vmatprep.subr.mxu0 0.0
        %2007 = vmatpush1.xpose.msra.mxu0 0.0
        %2008 = vmatprep.subr.mxu0 0.0
        %2009 = vmatpush1.xpose.msra.mxu0 0.0
        %2010 = vmatprep.subr.mxu0 0.0
        %2011 = vmatpush1.xpose.msra.mxu0 0.0
        %2012 = vmatprep.subr.mxu0 0.0
        %2013 = vmatpush1.xpose.msra.mxu0 0.0
        %2014 = vmatprep.subr.mxu0 0.0
        %2015 = vmatpush1.xpose.msra.mxu0 0.0
        %2016 = vmatprep.subr.mxu0 0.0
        %2017 = vmatpush1.xpose.msra.mxu0 0.0
        %2018 = vmatprep.subr.mxu0 0.0
        %2019 = vmatpush1.xpose.msra.mxu0 0.0
        %2020 = vmatprep.subr.mxu0 0.0
        %2021 = vmatpush1.xpose.msra.mxu0 0.0
        %2022 = vmatprep.subr.mxu0 0.0
        %2023 = vmatpush1.xpose.msra.mxu0 0.0
        %2024 = vmatprep.subr.mxu0 0.0
        %2025 = vmatpush1.xpose.msra.mxu0 0.0
        %2026 = vmatprep.subr.mxu0 0.0
        %2027 = vmatpush1.xpose.msra.mxu0 0.0
        %2028 = vmatprep.subr.mxu0 0.0
        %2029 = vmatpush1.xpose.msra.mxu0 0.0
        %2030 = vmatprep.subr.mxu0 0.0
        %2031 = vmatpush1.xpose.msra.mxu0 0.0
        %2032 = vmatprep.subr.mxu0 0.0
        %2033 = vmatpush1.xpose.msra.mxu0 0.0
        %2034 = vmatprep.subr.mxu0 0.0
        %2035 = vmatpush1.xpose.msra.mxu0 0.0
        %2036 = vmatprep.subr.mxu0 0.0
        %2037 = vmatpush1.xpose.msra.mxu0 0.0
        %2038 = vmatprep.subr.mxu0 0.0
        %2039 = vmatpush1.xpose.msra.mxu0 0.0
        %2040 = vmatprep.subr.mxu0 0.0
        %2041 = vmatpush1.xpose.msra.mxu0 0.0
        %2042 = vmatprep.subr.mxu0 0.0
        %2043 = vmatpush1.xpose.msra.mxu0 0.0
        %2044 = vmatprep.subr.mxu0 0.0
        %2045 = vmatpush1.xpose.msra.mxu0 0.0
        %2046 = vmatprep.subr.mxu0 0.0
        %2047 = vmatpush1.xpose.msra.mxu0 0.0
        %2048 = vmatprep.mubr.f32.mxu0 0.0
        %2049 = vmatmul.mubr.f32.gmra.mrb[0].mxu0 %v1982
        %v2050 = vpop.f32.mrb[0].mxu0
        %v2051 = vadd.f32 0.0, %v2050
        %v2052 = vpop.f32.mrb[0].mxu0
        %2053 = vdwg.mxu0
        %v2054 = vmul.f32 %v2051, 0.35355338
        %2055 = vrot.lane.b32.xlu0 %v897, 120
        %v2056 = vpop.permute.xlu0 %2055
        %v2057 = vsel %vm725, %v2056, 0
        %2059 = vmatprep.subr.mxu0 0.0
        %2060 = vmatpush1.xpose.msra.mxu0 %v1816
        %2061 = vmatprep.subr.mxu0 0.0
        %2062 = vmatpush1.xpose.msra.mxu0 0.0
        %2063 = vmatprep.subr.mxu0 0.0
        %2064 = vmatpush1.xpose.msra.mxu0 0.0
        %2065 = vmatprep.subr.mxu0 0.0
        %2066 = vmatpush1.xpose.msra.mxu0 0.0
        %2067 = vmatprep.subr.mxu0 0.0
        %2068 = vmatpush1.xpose.msra.mxu0 0.0
        %2069 = vmatprep.subr.mxu0 0.0
        %2070 = vmatpush1.xpose.msra.mxu0 0.0
        %2071 = vmatprep.subr.mxu0 0.0
        %2072 = vmatpush1.xpose.msra.mxu0 0.0
        %2073 = vmatprep.subr.mxu0 0.0
        %2074 = vmatpush1.xpose.msra.mxu0 0.0
        %2075 = vmatprep.subr.mxu0 0.0
        %2076 = vmatpush1.xpose.msra.mxu0 0.0
        %2077 = vmatprep.subr.mxu0 0.0
        %2078 = vmatpush1.xpose.msra.mxu0 0.0
        %2079 = vmatprep.subr.mxu0 0.0
        %2080 = vmatpush1.xpose.msra.mxu0 0.0
        %2081 = vmatprep.subr.mxu0 0.0
        %2082 = vmatpush1.xpose.msra.mxu0 0.0
        %2083 = vmatprep.subr.mxu0 0.0
        %2084 = vmatpush1.xpose.msra.mxu0 0.0
        %2085 = vmatprep.subr.mxu0 0.0
        %2086 = vmatpush1.xpose.msra.mxu0 0.0
        %2087 = vmatprep.subr.mxu0 0.0
        %2088 = vmatpush1.xpose.msra.mxu0 0.0
        %2089 = vmatprep.subr.mxu0 0.0
        %2090 = vmatpush1.xpose.msra.mxu0 0.0
        %2091 = vmatprep.subr.mxu0 0.0
        %2092 = vmatpush1.xpose.msra.mxu0 0.0
        %2093 = vmatprep.subr.mxu0 0.0
        %2094 = vmatpush1.xpose.msra.mxu0 0.0
        %2095 = vmatprep.subr.mxu0 0.0
        %2096 = vmatpush1.xpose.msra.mxu0 0.0
        %2097 = vmatprep.subr.mxu0 0.0
        %2098 = vmatpush1.xpose.msra.mxu0 0.0
        %2099 = vmatprep.subr.mxu0 0.0
        %2100 = vmatpush1.xpose.msra.mxu0 0.0
        %2101 = vmatprep.subr.mxu0 0.0
        %2102 = vmatpush1.xpose.msra.mxu0 0.0
        %2103 = vmatprep.subr.mxu0 0.0
        %2104 = vmatpush1.xpose.msra.mxu0 0.0
        %2105 = vmatprep.subr.mxu0 0.0
        %2106 = vmatpush1.xpose.msra.mxu0 0.0
        %2107 = vmatprep.subr.mxu0 0.0
        %2108 = vmatpush1.xpose.msra.mxu0 0.0
        %2109 = vmatprep.subr.mxu0 0.0
        %2110 = vmatpush1.xpose.msra.mxu0 0.0
        %2111 = vmatprep.subr.mxu0 0.0
        %2112 = vmatpush1.xpose.msra.mxu0 0.0
        %2113 = vmatprep.subr.mxu0 0.0
        %2114 = vmatpush1.xpose.msra.mxu0 0.0
        %2115 = vmatprep.subr.mxu0 0.0
        %2116 = vmatpush1.xpose.msra.mxu0 0.0
        %2117 = vmatprep.subr.mxu0 0.0
        %2118 = vmatpush1.xpose.msra.mxu0 0.0
        %2119 = vmatprep.subr.mxu0 0.0
        %2120 = vmatpush1.xpose.msra.mxu0 0.0
        %2121 = vmatprep.subr.mxu0 0.0
        %2122 = vmatpush1.xpose.msra.mxu0 0.0
        %2123 = vmatprep.mubr.f32.mxu0 0.0
        %2124 = vmatmul.mubr.f32.gmra.mrb[0].mxu0 %v2057
        %v2125 = vpop.f32.mrb[0].mxu0
        %v2126 = vadd.f32 0.0, %v2125
        %v2127 = vpop.f32.mrb[0].mxu0
        %2128 = vdwg.mxu0
        %v2129 = vmul.f32 %v2126, 0.35355338
        %2130 = vrot.lane.b32.xlu0 %v1046, 120
        %v2131 = vpop.permute.xlu0 %2130
        %v2132 = vsel %vm725, %v2131, 0
        %2134 = vmatprep.subr.mxu0 0.0
        %2135 = vmatpush1.xpose.msra.mxu0 %v2132
        %2136 = vmatprep.subr.mxu0 0.0
        %2137 = vmatpush1.xpose.msra.mxu0 0.0
        %2138 = vmatprep.subr.mxu0 0.0
        %2139 = vmatpush1.xpose.msra.mxu0 0.0
        %2140 = vmatprep.subr.mxu0 0.0
        %2141 = vmatpush1.xpose.msra.mxu0 0.0
        %2142 = vmatprep.subr.mxu0 0.0
        %2143 = vmatpush1.xpose.msra.mxu0 0.0
        %2144 = vmatprep.subr.mxu0 0.0
        %2145 = vmatpush1.xpose.msra.mxu0 0.0
        %2146 = vmatprep.subr.mxu0 0.0
        %2147 = vmatpush1.xpose.msra.mxu0 0.0
        %2148 = vmatprep.subr.mxu0 0.0
        %2149 = vmatpush1.xpose.msra.mxu0 0.0
        %2150 = vmatprep.subr.mxu0 0.0
        %2151 = vmatpush1.xpose.msra.mxu0 0.0
        %2152 = vmatprep.subr.mxu0 0.0
        %2153 = vmatpush1.xpose.msra.mxu0 0.0
        %2154 = vmatprep.subr.mxu0 0.0
        %2155 = vmatpush1.xpose.msra.mxu0 0.0
        %2156 = vmatprep.subr.mxu0 0.0
        %2157 = vmatpush1.xpose.msra.mxu0 0.0
        %2158 = vmatprep.subr.mxu0 0.0
        %2159 = vmatpush1.xpose.msra.mxu0 0.0
        %2160 = vmatprep.subr.mxu0 0.0
        %2161 = vmatpush1.xpose.msra.mxu0 0.0
        %2162 = vmatprep.subr.mxu0 0.0
        %2163 = vmatpush1.xpose.msra.mxu0 0.0
        %2164 = vmatprep.subr.mxu0 0.0
        %2165 = vmatpush1.xpose.msra.mxu0 0.0
        %2166 = vmatprep.subr.mxu0 0.0
        %2167 = vmatpush1.xpose.msra.mxu0 0.0
        %2168 = vmatprep.subr.mxu0 0.0
        %2169 = vmatpush1.xpose.msra.mxu0 0.0
        %2170 = vmatprep.subr.mxu0 0.0
        %2171 = vmatpush1.xpose.msra.mxu0 0.0
        %2172 = vmatprep.subr.mxu0 0.0
        %2173 = vmatpush1.xpose.msra.mxu0 0.0
        %2174 = vmatprep.subr.mxu0 0.0
        %2175 = vmatpush1.xpose.msra.mxu0 0.0
        %2176 = vmatprep.subr.mxu0 0.0
        %2177 = vmatpush1.xpose.msra.mxu0 0.0
        %2178 = vmatprep.subr.mxu0 0.0
        %2179 = vmatpush1.xpose.msra.mxu0 0.0
        %2180 = vmatprep.subr.mxu0 0.0
        %2181 = vmatpush1.xpose.msra.mxu0 0.0
        %2182 = vmatprep.subr.mxu0 0.0
        %2183 = vmatpush1.xpose.msra.mxu0 0.0
        %2184 = vmatprep.subr.mxu0 0.0
        %2185 = vmatpush1.xpose.msra.mxu0 0.0
        %2186 = vmatprep.subr.mxu0 0.0
        %2187 = vmatpush1.xpose.msra.mxu0 0.0
        %2188 = vmatprep.subr.mxu0 0.0
        %2189 = vmatpush1.xpose.msra.mxu0 0.0
        %2190 = vmatprep.subr.mxu0 0.0
        %2191 = vmatpush1.xpose.msra.mxu0 0.0
        %2192 = vmatprep.subr.mxu0 0.0
        %2193 = vmatpush1.xpose.msra.mxu0 0.0
        %2194 = vmatprep.subr.mxu0 0.0
        %2195 = vmatpush1.xpose.msra.mxu0 0.0
        %2196 = vmatprep.subr.mxu0 0.0
        %2197 = vmatpush1.xpose.msra.mxu0 0.0
        %2198 = vmatprep.mubr.f32.mxu0 0.0
        %2199 = vmatmul.mubr.f32.gmra.mrb[0].mxu0 %v2057
        %v2200 = vpop.f32.mrb[0].mxu0
        %v2201 = vadd.f32 0.0, %v2200
        %v2202 = vpop.f32.mrb[0].mxu0
        %2203 = vdwg.mxu0
        %v2204 = vmul.f32 %v2201, 0.35355338
        %v2205 = vsel %vm711, -2.3819763e+38, %v2129
        %v2206 = vsel %vm704, -2.3819763e+38, %v2204
        %v2207 = vsel %vm1122, %v2054, -inf
        %2208 = vmax.xlane.f32.xlu0 %v2207
        %v2209 = vpop.xlane.xlu0 %2208
        %v2210 = vsel %vm1122, %v2205, -inf
        %2211 = vmax.xlane.f32.xlu0 %v2210
        %v2212 = vpop.xlane.xlu0 %2211
        %v2213 = vsel %vm1122, %v2206, -inf
        %2214 = vmax.xlane.f32.xlu0 %v2213
        %v2215 = vpop.xlane.xlu0 %2214
        %v2216 = vmax.f32 %v2212, %v2215
        %v2217 = vmax.f32 %v2209, %v2216
        %v2218 = vsub.f32 %v2054, %v2217
        %v2219 = vmul.f32 %v2218, 1.442695
        %v2220 = vpow.pop %v2219
        %v2221 = vsub.f32 %v2205, %v2217
        %v2222 = vmul.f32 %v2221, 1.442695
        %v2223 = vpow.pop %v2222
        %v2224 = vsub.f32 %v2206, %v2217
        %v2225 = vmul.f32 %v2224, 1.442695
        %v2226 = vpow.pop %v2225
        %v2227 = vsel %vm1122, %v2220, 0.0
        %2228 = vadd.xlane.f32.xlu0 %v2227
        %v2229 = vpop.xlane.xlu0 %2228
        %v2230 = vsel %vm1122, %v2223, 0.0
        %2231 = vadd.xlane.f32.xlu0 %v2230
        %v2232 = vpop.xlane.xlu0 %2231
        %v2233 = vadd.f32 %v2229, %v2232
        %v2234 = vsel %vm1122, %v2226, 0.0
        %2235 = vadd.xlane.f32.xlu0 %v2234
        %v2236 = vpop.xlane.xlu0 %2235
        %v2237 = vadd.f32 %v2233, %v2236
        %v2238 = vrcp.pop %v2237
        %v2240 = vsel %vm1155, %v2223, 0
        %2242 = vmatprep.subr.mxu0 0.0
        %2243 = vmatpush1.msra.mxu0 %v1908
        %2244 = vmatprep.subr.mxu0 0.0
        %2245 = vmatpush1.msra.mxu0 0.0
        %2246 = vmatprep.subr.mxu0 0.0
        %2247 = vmatpush1.msra.mxu0 0.0
        %2248 = vmatprep.subr.mxu0 0.0
        %2249 = vmatpush1.msra.mxu0 0.0
        %2250 = vmatprep.subr.mxu0 0.0
        %2251 = vmatpush1.msra.mxu0 0.0
        %2252 = vmatprep.subr.mxu0 0.0
        %2253 = vmatpush1.msra.mxu0 0.0
        %2254 = vmatprep.subr.mxu0 0.0
        %2255 = vmatpush1.msra.mxu0 0.0
        %2256 = vmatprep.subr.mxu0 0.0
        %2257 = vmatpush1.msra.mxu0 0.0
        %2258 = vmatprep.subr.mxu0 0.0
        %2259 = vmatpush1.msra.mxu0 0.0
        %2260 = vmatprep.subr.mxu0 0.0
        %2261 = vmatpush1.msra.mxu0 0.0
        %2262 = vmatprep.subr.mxu0 0.0
        %2263 = vmatpush1.msra.mxu0 0.0
        %2264 = vmatprep.subr.mxu0 0.0
        %2265 = vmatpush1.msra.mxu0 0.0
        %2266 = vmatprep.subr.mxu0 0.0
        %2267 = vmatpush1.msra.mxu0 0.0
        %2268 = vmatprep.subr.mxu0 0.0
        %2269 = vmatpush1.msra.mxu0 0.0
        %2270 = vmatprep.subr.mxu0 0.0
        %2271 = vmatpush1.msra.mxu0 0.0
        %2272 = vmatprep.subr.mxu0 0.0
        %2273 = vmatpush1.msra.mxu0 0.0
        %2274 = vmatprep.subr.mxu0 0.0
        %2275 = vmatpush1.msra.mxu0 0.0
        %2276 = vmatprep.subr.mxu0 0.0
        %2277 = vmatpush1.msra.mxu0 0.0
        %2278 = vmatprep.subr.mxu0 0.0
        %2279 = vmatpush1.msra.mxu0 0.0
        %2280 = vmatprep.subr.mxu0 0.0
        %2281 = vmatpush1.msra.mxu0 0.0
        %2282 = vmatprep.subr.mxu0 0.0
        %2283 = vmatpush1.msra.mxu0 0.0
        %2284 = vmatprep.subr.mxu0 0.0
        %2285 = vmatpush1.msra.mxu0 0.0
        %2286 = vmatprep.subr.mxu0 0.0
        %2287 = vmatpush1.msra.mxu0 0.0
        %2288 = vmatprep.subr.mxu0 0.0
        %2289 = vmatpush1.msra.mxu0 0.0
        %2290 = vmatprep.subr.mxu0 0.0
        %2291 = vmatpush1.msra.mxu0 0.0
        %2292 = vmatprep.subr.mxu0 0.0
        %2293 = vmatpush1.msra.mxu0 0.0
        %2294 = vmatprep.subr.mxu0 0.0
        %2295 = vmatpush1.msra.mxu0 0.0
        %2296 = vmatprep.subr.mxu0 0.0
        %2297 = vmatpush1.msra.mxu0 0.0
        %2298 = vmatprep.subr.mxu0 0.0
        %2299 = vmatpush1.msra.mxu0 0.0
        %2300 = vmatprep.subr.mxu0 0.0
        %2301 = vmatpush1.msra.mxu0 0.0
        %2302 = vmatprep.subr.mxu0 0.0
        %2303 = vmatpush1.msra.mxu0 0.0
        %2304 = vmatprep.subr.mxu0 0.0
        %2305 = vmatpush1.msra.mxu0 0.0
        %2306 = vmatprep.mubr.f32.mxu0 0.0
        %2307 = vmatmul.mubr.f32.gmra.mrb[0].mxu0 %v2240
        %v2308 = vpop.f32.mrb[0].mxu0
        %v2309 = vadd.f32 0.0, %v2308
        %v2310 = vpop.f32.mrb[0].mxu0
        %2311 = vdwg.mxu0
        %v2313 = vsel %vm1155, %v2220, 0
        %v2315 = vsel %vm822, %v1901, 0
        %2317 = vmatprep.subr.mxu0 0.0
        %2318 = vmatpush1.msra.mxu0 %v2315
        %2319 = vmatprep.subr.mxu0 0.0
        %2320 = vmatpush1.msra.mxu0 0.0
        %2321 = vmatprep.subr.mxu0 0.0
        %2322 = vmatpush1.msra.mxu0 0.0
        %2323 = vmatprep.subr.mxu0 0.0
        %2324 = vmatpush1.msra.mxu0 0.0
        %2325 = vmatprep.subr.mxu0 0.0
        %2326 = vmatpush1.msra.mxu0 0.0
        %2327 = vmatprep.subr.mxu0 0.0
        %2328 = vmatpush1.msra.mxu0 0.0
        %2329 = vmatprep.subr.mxu0 0.0
        %2330 = vmatpush1.msra.mxu0 0.0
        %2331 = vmatprep.subr.mxu0 0.0
        %2332 = vmatpush1.msra.mxu0 0.0
        %2333 = vmatprep.subr.mxu0 0.0
        %2334 = vmatpush1.msra.mxu0 0.0
        %2335 = vmatprep.subr.mxu0 0.0
        %2336 = vmatpush1.msra.mxu0 0.0
        %2337 = vmatprep.subr.mxu0 0.0
        %2338 = vmatpush1.msra.mxu0 0.0
        %2339 = vmatprep.subr.mxu0 0.0
        %2340 = vmatpush1.msra.mxu0 0.0
        %2341 = vmatprep.subr.mxu0 0.0
        %2342 = vmatpush1.msra.mxu0 0.0
        %2343 = vmatprep.subr.mxu0 0.0
        %2344 = vmatpush1.msra.mxu0 0.0
        %2345 = vmatprep.subr.mxu0 0.0
        %2346 = vmatpush1.msra.mxu0 0.0
        %2347 = vmatprep.subr.mxu0 0.0
        %2348 = vmatpush1.msra.mxu0 0.0
        %2349 = vmatprep.subr.mxu0 0.0
        %2350 = vmatpush1.msra.mxu0 0.0
        %2351 = vmatprep.subr.mxu0 0.0
        %2352 = vmatpush1.msra.mxu0 0.0
        %2353 = vmatprep.subr.mxu0 0.0
        %2354 = vmatpush1.msra.mxu0 0.0
        %2355 = vmatprep.subr.mxu0 0.0
        %2356 = vmatpush1.msra.mxu0 0.0
        %2357 = vmatprep.subr.mxu0 0.0
        %2358 = vmatpush1.msra.mxu0 0.0
        %2359 = vmatprep.subr.mxu0 0.0
        %2360 = vmatpush1.msra.mxu0 0.0
        %2361 = vmatprep.subr.mxu0 0.0
        %2362 = vmatpush1.msra.mxu0 0.0
        %2363 = vmatprep.subr.mxu0 0.0
        %2364 = vmatpush1.msra.mxu0 0.0
        %2365 = vmatprep.subr.mxu0 0.0
        %2366 = vmatpush1.msra.mxu0 0.0
        %2367 = vmatprep.subr.mxu0 0.0
        %2368 = vmatpush1.msra.mxu0 0.0
        %2369 = vmatprep.subr.mxu0 0.0
        %2370 = vmatpush1.msra.mxu0 0.0
        %2371 = vmatprep.subr.mxu0 0.0
        %2372 = vmatpush1.msra.mxu0 0.0
        %2373 = vmatprep.subr.mxu0 0.0
        %2374 = vmatpush1.msra.mxu0 0.0
        %2375 = vmatprep.subr.mxu0 0.0
        %2376 = vmatpush1.msra.mxu0 0.0
        %2377 = vmatprep.subr.mxu0 0.0
        %2378 = vmatpush1.msra.mxu0 0.0
        %2379 = vmatprep.subr.mxu0 0.0
        %2380 = vmatpush1.msra.mxu0 0.0
        %2381 = vmatprep.mubr.f32.mxu0 0.0
        %2382 = vmatmul.mubr.f32.gmra.mrb[0].mxu0 %v2313
        %v2383 = vpop.f32.mrb[0].mxu0
        %v2384 = vadd.f32 %v2309, %v2383
        %v2385 = vpop.f32.mrb[0].mxu0
        %2386 = vdwg.mxu0
        %2387 = vrot.lane.b32.xlu0 %v1305, 120
        %v2388 = vpop.permute.xlu0 %2387
        %v2390 = vsel %vm1155, %v2226, 0
        %v2392 = vsel %vm822, %v2388, 0
        %2394 = vmatprep.subr.mxu0 0.0
        %2395 = vmatpush1.msra.mxu0 %v2392
        %2396 = vmatprep.subr.mxu0 0.0
        %2397 = vmatpush1.msra.mxu0 0.0
        %2398 = vmatprep.subr.mxu0 0.0
        %2399 = vmatpush1.msra.mxu0 0.0
        %2400 = vmatprep.subr.mxu0 0.0
        %2401 = vmatpush1.msra.mxu0 0.0
        %2402 = vmatprep.subr.mxu0 0.0
        %2403 = vmatpush1.msra.mxu0 0.0
        %2404 = vmatprep.subr.mxu0 0.0
        %2405 = vmatpush1.msra.mxu0 0.0
        %2406 = vmatprep.subr.mxu0 0.0
        %2407 = vmatpush1.msra.mxu0 0.0
        %2408 = vmatprep.subr.mxu0 0.0
        %2409 = vmatpush1.msra.mxu0 0.0
        %2410 = vmatprep.subr.mxu0 0.0
        %2411 = vmatpush1.msra.mxu0 0.0
        %2412 = vmatprep.subr.mxu0 0.0
        %2413 = vmatpush1.msra.mxu0 0.0
        %2414 = vmatprep.subr.mxu0 0.0
        %2415 = vmatpush1.msra.mxu0 0.0
        %2416 = vmatprep.subr.mxu0 0.0
        %2417 = vmatpush1.msra.mxu0 0.0
        %2418 = vmatprep.subr.mxu0 0.0
        %2419 = vmatpush1.msra.mxu0 0.0
        %2420 = vmatprep.subr.mxu0 0.0
        %2421 = vmatpush1.msra.mxu0 0.0
        %2422 = vmatprep.subr.mxu0 0.0
        %2423 = vmatpush1.msra.mxu0 0.0
        %2424 = vmatprep.subr.mxu0 0.0
        %2425 = vmatpush1.msra.mxu0 0.0
        %2426 = vmatprep.subr.mxu0 0.0
        %2427 = vmatpush1.msra.mxu0 0.0
        %2428 = vmatprep.subr.mxu0 0.0
        %2429 = vmatpush1.msra.mxu0 0.0
        %2430 = vmatprep.subr.mxu0 0.0
        %2431 = vmatpush1.msra.mxu0 0.0
        %2432 = vmatprep.subr.mxu0 0.0
        %2433 = vmatpush1.msra.mxu0 0.0
        %2434 = vmatprep.subr.mxu0 0.0
        %2435 = vmatpush1.msra.mxu0 0.0
        %2436 = vmatprep.subr.mxu0 0.0
        %2437 = vmatpush1.msra.mxu0 0.0
        %2438 = vmatprep.subr.mxu0 0.0
        %2439 = vmatpush1.msra.mxu0 0.0
        %2440 = vmatprep.subr.mxu0 0.0
        %2441 = vmatpush1.msra.mxu0 0.0
        %2442 = vmatprep.subr.mxu0 0.0
        %2443 = vmatpush1.msra.mxu0 0.0
        %2444 = vmatprep.subr.mxu0 0.0
        %2445 = vmatpush1.msra.mxu0 0.0
        %2446 = vmatprep.subr.mxu0 0.0
        %2447 = vmatpush1.msra.mxu0 0.0
        %2448 = vmatprep.subr.mxu0 0.0
        %2449 = vmatpush1.msra.mxu0 0.0
        %2450 = vmatprep.subr.mxu0 0.0
        %2451 = vmatpush1.msra.mxu0 0.0
        %2452 = vmatprep.subr.mxu0 0.0
        %2453 = vmatpush1.msra.mxu0 0.0
        %2454 = vmatprep.subr.mxu0 0.0
        %2455 = vmatpush1.msra.mxu0 0.0
        %2456 = vmatprep.subr.mxu0 0.0
        %2457 = vmatpush1.msra.mxu0 0.0
        %2458 = vmatprep.mubr.f32.mxu0 0.0
        %2459 = vmatmul.mubr.f32.gmra.mrb[0].mxu0 %v2390
        %v2460 = vpop.f32.mrb[0].mxu0
        %v2461 = vadd.f32 0.0, %v2460
        %v2462 = vpop.f32.mrb[0].mxu0
        %2463 = vdwg.mxu0
        %v2464 = vadd.f32 %v2384, %v2461
        %v2465 = vmul.f32 %v2464, %v2238
        %2466 = vrot.lane.b32.xlu0 %v720, 120
        %v2467 = vpop.permute.xlu0 %2466
        %v2468 = vsel %vm725, %v2467, 0
        %2470 = vmatprep.subr.mxu0 0.0
        %2471 = vmatpush1.xpose.msra.mxu0 %v2132
        %2472 = vmatprep.subr.mxu0 0.0
        %2473 = vmatpush1.xpose.msra.mxu0 0.0
        %2474 = vmatprep.subr.mxu0 0.0
        %2475 = vmatpush1.xpose.msra.mxu0 0.0
        %2476 = vmatprep.subr.mxu0 0.0
        %2477 = vmatpush1.xpose.msra.mxu0 0.0
        %2478 = vmatprep.subr.mxu0 0.0
        %2479 = vmatpush1.xpose.msra.mxu0 0.0
        %2480 = vmatprep.subr.mxu0 0.0
        %2481 = vmatpush1.xpose.msra.mxu0 0.0
        %2482 = vmatprep.subr.mxu0 0.0
        %2483 = vmatpush1.xpose.msra.mxu0 0.0
        %2484 = vmatprep.subr.mxu0 0.0
        %2485 = vmatpush1.xpose.msra.mxu0 0.0
        %2486 = vmatprep.subr.mxu0 0.0
        %2487 = vmatpush1.xpose.msra.mxu0 0.0
        %2488 = vmatprep.subr.mxu0 0.0
        %2489 = vmatpush1.xpose.msra.mxu0 0.0
        %2490 = vmatprep.subr.mxu0 0.0
        %2491 = vmatpush1.xpose.msra.mxu0 0.0
        %2492 = vmatprep.subr.mxu0 0.0
        %2493 = vmatpush1.xpose.msra.mxu0 0.0
        %2494 = vmatprep.subr.mxu0 0.0
        %2495 = vmatpush1.xpose.msra.mxu0 0.0
        %2496 = vmatprep.subr.mxu0 0.0
        %2497 = vmatpush1.xpose.msra.mxu0 0.0
        %2498 = vmatprep.subr.mxu0 0.0
        %2499 = vmatpush1.xpose.msra.mxu0 0.0
        %2500 = vmatprep.subr.mxu0 0.0
        %2501 = vmatpush1.xpose.msra.mxu0 0.0
        %2502 = vmatprep.subr.mxu0 0.0
        %2503 = vmatpush1.xpose.msra.mxu0 0.0
        %2504 = vmatprep.subr.mxu0 0.0
        %2505 = vmatpush1.xpose.msra.mxu0 0.0
        %2506 = vmatprep.subr.mxu0 0.0
        %2507 = vmatpush1.xpose.msra.mxu0 0.0
        %2508 = vmatprep.subr.mxu0 0.0
        %2509 = vmatpush1.xpose.msra.mxu0 0.0
        %2510 = vmatprep.subr.mxu0 0.0
        %2511 = vmatpush1.xpose.msra.mxu0 0.0
        %2512 = vmatprep.subr.mxu0 0.0
        %2513 = vmatpush1.xpose.msra.mxu0 0.0
        %2514 = vmatprep.subr.mxu0 0.0
        %2515 = vmatpush1.xpose.msra.mxu0 0.0
        %2516 = vmatprep.subr.mxu0 0.0
        %2517 = vmatpush1.xpose.msra.mxu0 0.0
        %2518 = vmatprep.subr.mxu0 0.0
        %2519 = vmatpush1.xpose.msra.mxu0 0.0
        %2520 = vmatprep.subr.mxu0 0.0
        %2521 = vmatpush1.xpose.msra.mxu0 0.0
        %2522 = vmatprep.subr.mxu0 0.0
        %2523 = vmatpush1.xpose.msra.mxu0 0.0
        %2524 = vmatprep.subr.mxu0 0.0
        %2525 = vmatpush1.xpose.msra.mxu0 0.0
        %2526 = vmatprep.subr.mxu0 0.0
        %2527 = vmatpush1.xpose.msra.mxu0 0.0
        %2528 = vmatprep.subr.mxu0 0.0
        %2529 = vmatpush1.xpose.msra.mxu0 0.0
        %2530 = vmatprep.subr.mxu0 0.0
        %2531 = vmatpush1.xpose.msra.mxu0 0.0
        %2532 = vmatprep.subr.mxu0 0.0
        %2533 = vmatpush1.xpose.msra.mxu0 0.0
        %2534 = vmatprep.mubr.f32.mxu0 0.0
        %2535 = vmatmul.mubr.f32.gmra.mrb[0].mxu0 %v2468
        %v2536 = vpop.f32.mrb[0].mxu0
        %v2537 = vadd.f32 0.0, %v2536
        %v2538 = vpop.f32.mrb[0].mxu0
        %2539 = vdwg.mxu0
        %v2540 = vmul.f32 %v2537, 0.35355338
        %2541 = vmatprep.subr.mxu0 0.0
        %2542 = vmatpush1.xpose.msra.mxu0 %v1816
        %2543 = vmatprep.subr.mxu0 0.0
        %2544 = vmatpush1.xpose.msra.mxu0 0.0
        %2545 = vmatprep.subr.mxu0 0.0
        %2546 = vmatpush1.xpose.msra.mxu0 0.0
        %2547 = vmatprep.subr.mxu0 0.0
        %2548 = vmatpush1.xpose.msra.mxu0 0.0
        %2549 = vmatprep.subr.mxu0 0.0
        %2550 = vmatpush1.xpose.msra.mxu0 0.0
        %2551 = vmatprep.subr.mxu0 0.0
        %2552 = vmatpush1.xpose.msra.mxu0 0.0
        %2553 = vmatprep.subr.mxu0 0.0
        %2554 = vmatpush1.xpose.msra.mxu0 0.0
        %2555 = vmatprep.subr.mxu0 0.0
        %2556 = vmatpush1.xpose.msra.mxu0 0.0
        %2557 = vmatprep.subr.mxu0 0.0
        %2558 = vmatpush1.xpose.msra.mxu0 0.0
        %2559 = vmatprep.subr.mxu0 0.0
        %2560 = vmatpush1.xpose.msra.mxu0 0.0
        %2561 = vmatprep.subr.mxu0 0.0
        %2562 = vmatpush1.xpose.msra.mxu0 0.0
        %2563 = vmatprep.subr.mxu0 0.0
        %2564 = vmatpush1.xpose.msra.mxu0 0.0
        %2565 = vmatprep.subr.mxu0 0.0
        %2566 = vmatpush1.xpose.msra.mxu0 0.0
        %2567 = vmatprep.subr.mxu0 0.0
        %2568 = vmatpush1.xpose.msra.mxu0 0.0
        %2569 = vmatprep.subr.mxu0 0.0
        %2570 = vmatpush1.xpose.msra.mxu0 0.0
        %2571 = vmatprep.subr.mxu0 0.0
        %2572 = vmatpush1.xpose.msra.mxu0 0.0
        %2573 = vmatprep.subr.mxu0 0.0
        %2574 = vmatpush1.xpose.msra.mxu0 0.0
        %2575 = vmatprep.subr.mxu0 0.0
        %2576 = vmatpush1.xpose.msra.mxu0 0.0
        %2577 = vmatprep.subr.mxu0 0.0
        %2578 = vmatpush1.xpose.msra.mxu0 0.0
        %2579 = vmatprep.subr.mxu0 0.0
        %2580 = vmatpush1.xpose.msra.mxu0 0.0
        %2581 = vmatprep.subr.mxu0 0.0
        %2582 = vmatpush1.xpose.msra.mxu0 0.0
        %2583 = vmatprep.subr.mxu0 0.0
        %2584 = vmatpush1.xpose.msra.mxu0 0.0
        %2585 = vmatprep.subr.mxu0 0.0
        %2586 = vmatpush1.xpose.msra.mxu0 0.0
        %2587 = vmatprep.subr.mxu0 0.0
        %2588 = vmatpush1.xpose.msra.mxu0 0.0
        %2589 = vmatprep.subr.mxu0 0.0
        %2590 = vmatpush1.xpose.msra.mxu0 0.0
        %2591 = vmatprep.subr.mxu0 0.0
        %2592 = vmatpush1.xpose.msra.mxu0 0.0
        %2593 = vmatprep.subr.mxu0 0.0
        %2594 = vmatpush1.xpose.msra.mxu0 0.0
        %2595 = vmatprep.subr.mxu0 0.0
        %2596 = vmatpush1.xpose.msra.mxu0 0.0
        %2597 = vmatprep.subr.mxu0 0.0
        %2598 = vmatpush1.xpose.msra.mxu0 0.0
        %2599 = vmatprep.subr.mxu0 0.0
        %2600 = vmatpush1.xpose.msra.mxu0 0.0
        %2601 = vmatprep.subr.mxu0 0.0
        %2602 = vmatpush1.xpose.msra.mxu0 0.0
        %2603 = vmatprep.subr.mxu0 0.0
        %2604 = vmatpush1.xpose.msra.mxu0 0.0
        %2605 = vmatprep.mubr.f32.mxu0 0.0
        %2606 = vmatmul.mubr.f32.gmra.mrb[0].mxu0 %v2468
        %v2607 = vpop.f32.mrb[0].mxu0
        %v2608 = vadd.f32 0.0, %v2607
        %v2609 = vpop.f32.mrb[0].mxu0
        %2610 = vdwg.mxu0
        %v2611 = vmul.f32 %v2608, 0.35355338
        %v2612 = vsel %vm718, -2.3819763e+38, %v2540
        %v2613 = vsel %vm717, -2.3819763e+38, %v2611
        %v2614 = vsel %vm1529, %v2054, -inf
        %2615 = vmax.xlane.f32.xlu0 %v2614
        %v2616 = vpop.xlane.xlu0 %2615
        %v2617 = vsel %vm1122, %v2612, -inf
        %2618 = vmax.xlane.f32.xlu0 %v2617
        %v2619 = vpop.xlane.xlu0 %2618
        %v2620 = vsel %vm1122, %v2613, -inf
        %2621 = vmax.xlane.f32.xlu0 %v2620
        %v2622 = vpop.xlane.xlu0 %2621
        %v2623 = vmax.f32 %v2619, %v2622
        %v2625 = vrot.slane %v2623, 4
        %v2627 = vmax.f32 %v2616, %v2625
        %2629 = vset.pattern.permute.xlu0 0
        %2630 = vperm.xlu0 %2629, %v2627
        %v2631 = vpop.permute.xlu0 %2630
        %v2633 = vsub.f32 %v2054, %v2631
        %v2634 = vmul.f32 %v2633, 1.442695
        %v2635 = vpow.pop %v2634
        %v2636 = vrot.slane %v2631, 4
        %v2638 = vsub.f32 %v2612, %v2636
        %v2639 = vmul.f32 %v2638, 1.442695
        %v2640 = vpow.pop %v2639
        %v2641 = vsub.f32 %v2613, %v2636
        %v2642 = vmul.f32 %v2641, 1.442695
        %v2643 = vpow.pop %v2642
        %v2644 = vsel %vm1529, %v2635, 0.0
        %2645 = vadd.xlane.f32.xlu0 %v2644
        %v2646 = vpop.xlane.xlu0 %2645
        %v2647 = vsel %vm1122, %v2640, 0.0
        %2648 = vadd.xlane.f32.xlu0 %v2647
        %v2649 = vpop.xlane.xlu0 %2648
        %v2651 = vrot.slane %v2649, 4
        %v2653 = vadd.f32 %v2646, %v2651
        %v2654 = vsel %vm1122, %v2643, 0.0
        %2655 = vadd.xlane.f32.xlu0 %v2654
        %v2656 = vpop.xlane.xlu0 %2655
        %v2658 = vrot.slane %v2656, 4
        %v2660 = vadd.f32 %v2653, %v2658
        %v2661 = vrcp.pop %v2660
        %v2663 = vsel %vm1155, %v2640, 0
        %2665 = vmatprep.subr.mxu0 0.0
        %2666 = vmatpush1.msra.mxu0 %v2392
        %2667 = vmatprep.subr.mxu0 0.0
        %2668 = vmatpush1.msra.mxu0 0.0
        %2669 = vmatprep.subr.mxu0 0.0
        %2670 = vmatpush1.msra.mxu0 0.0
        %2671 = vmatprep.subr.mxu0 0.0
        %2672 = vmatpush1.msra.mxu0 0.0
        %2673 = vmatprep.subr.mxu0 0.0
        %2674 = vmatpush1.msra.mxu0 0.0
        %2675 = vmatprep.subr.mxu0 0.0
        %2676 = vmatpush1.msra.mxu0 0.0
        %2677 = vmatprep.subr.mxu0 0.0
        %2678 = vmatpush1.msra.mxu0 0.0
        %2679 = vmatprep.subr.mxu0 0.0
        %2680 = vmatpush1.msra.mxu0 0.0
        %2681 = vmatprep.subr.mxu0 0.0
        %2682 = vmatpush1.msra.mxu0 0.0
        %2683 = vmatprep.subr.mxu0 0.0
        %2684 = vmatpush1.msra.mxu0 0.0
        %2685 = vmatprep.subr.mxu0 0.0
        %2686 = vmatpush1.msra.mxu0 0.0
        %2687 = vmatprep.subr.mxu0 0.0
        %2688 = vmatpush1.msra.mxu0 0.0
        %2689 = vmatprep.subr.mxu0 0.0
        %2690 = vmatpush1.msra.mxu0 0.0
        %2691 = vmatprep.subr.mxu0 0.0
        %2692 = vmatpush1.msra.mxu0 0.0
        %2693 = vmatprep.subr.mxu0 0.0
        %2694 = vmatpush1.msra.mxu0 0.0
        %2695 = vmatprep.subr.mxu0 0.0
        %2696 = vmatpush1.msra.mxu0 0.0
        %2697 = vmatprep.subr.mxu0 0.0
        %2698 = vmatpush1.msra.mxu0 0.0
        %2699 = vmatprep.subr.mxu0 0.0
        %2700 = vmatpush1.msra.mxu0 0.0
        %2701 = vmatprep.subr.mxu0 0.0
        %2702 = vmatpush1.msra.mxu0 0.0
        %2703 = vmatprep.subr.mxu0 0.0
        %2704 = vmatpush1.msra.mxu0 0.0
        %2705 = vmatprep.subr.mxu0 0.0
        %2706 = vmatpush1.msra.mxu0 0.0
        %2707 = vmatprep.subr.mxu0 0.0
        %2708 = vmatpush1.msra.mxu0 0.0
        %2709 = vmatprep.subr.mxu0 0.0
        %2710 = vmatpush1.msra.mxu0 0.0
        %2711 = vmatprep.subr.mxu0 0.0
        %2712 = vmatpush1.msra.mxu0 0.0
        %2713 = vmatprep.subr.mxu0 0.0
        %2714 = vmatpush1.msra.mxu0 0.0
        %2715 = vmatprep.subr.mxu0 0.0
        %2716 = vmatpush1.msra.mxu0 0.0
        %2717 = vmatprep.subr.mxu0 0.0
        %2718 = vmatpush1.msra.mxu0 0.0
        %2719 = vmatprep.subr.mxu0 0.0
        %2720 = vmatpush1.msra.mxu0 0.0
        %2721 = vmatprep.subr.mxu0 0.0
        %2722 = vmatpush1.msra.mxu0 0.0
        %2723 = vmatprep.subr.mxu0 0.0
        %2724 = vmatpush1.msra.mxu0 0.0
        %2725 = vmatprep.subr.mxu0 0.0
        %2726 = vmatpush1.msra.mxu0 0.0
        %2727 = vmatprep.subr.mxu0 0.0
        %2728 = vmatpush1.msra.mxu0 0.0
        %2729 = vmatprep.mubr.f32.mxu0 0.0
        %2730 = vmatmul.mubr.f32.gmra.mrb[0].mxu0 %v2663
        %v2731 = vpop.f32.mrb[0].mxu0
        %v2732 = vadd.f32 0.0, %v2731
        %v2733 = vpop.f32.mrb[0].mxu0
        %2734 = vdwg.mxu0
        %v2736 = vrot.slane %v2635, 4
        %v2737 = vsel %vm1155, %v2736, 0
        %2739 = vmatprep.subr.mxu0 0.0
        %2740 = vmatpush1.msra.mxu0 %v2315
        %2741 = vmatprep.subr.mxu0 0.0
        %2742 = vmatpush1.msra.mxu0 0.0
        %2743 = vmatprep.subr.mxu0 0.0
        %2744 = vmatpush1.msra.mxu0 0.0
        %2745 = vmatprep.subr.mxu0 0.0
        %2746 = vmatpush1.msra.mxu0 0.0
        %2747 = vmatprep.subr.mxu0 0.0
        %2748 = vmatpush1.msra.mxu0 0.0
        %2749 = vmatprep.subr.mxu0 0.0
        %2750 = vmatpush1.msra.mxu0 0.0
        %2751 = vmatprep.subr.mxu0 0.0
        %2752 = vmatpush1.msra.mxu0 0.0
        %2753 = vmatprep.subr.mxu0 0.0
        %2754 = vmatpush1.msra.mxu0 0.0
        %2755 = vmatprep.subr.mxu0 0.0
        %2756 = vmatpush1.msra.mxu0 0.0
        %2757 = vmatprep.subr.mxu0 0.0
        %2758 = vmatpush1.msra.mxu0 0.0
        %2759 = vmatprep.subr.mxu0 0.0
        %2760 = vmatpush1.msra.mxu0 0.0
        %2761 = vmatprep.subr.mxu0 0.0
        %2762 = vmatpush1.msra.mxu0 0.0
        %2763 = vmatprep.subr.mxu0 0.0
        %2764 = vmatpush1.msra.mxu0 0.0
        %2765 = vmatprep.subr.mxu0 0.0
        %2766 = vmatpush1.msra.mxu0 0.0
        %2767 = vmatprep.subr.mxu0 0.0
        %2768 = vmatpush1.msra.mxu0 0.0
        %2769 = vmatprep.subr.mxu0 0.0
        %2770 = vmatpush1.msra.mxu0 0.0
        %2771 = vmatprep.subr.mxu0 0.0
        %2772 = vmatpush1.msra.mxu0 0.0
        %2773 = vmatprep.subr.mxu0 0.0
        %2774 = vmatpush1.msra.mxu0 0.0
        %2775 = vmatprep.subr.mxu0 0.0
        %2776 = vmatpush1.msra.mxu0 0.0
        %2777 = vmatprep.subr.mxu0 0.0
        %2778 = vmatpush1.msra.mxu0 0.0
        %2779 = vmatprep.subr.mxu0 0.0
        %2780 = vmatpush1.msra.mxu0 0.0
        %2781 = vmatprep.subr.mxu0 0.0
        %2782 = vmatpush1.msra.mxu0 0.0
        %2783 = vmatprep.subr.mxu0 0.0
        %2784 = vmatpush1.msra.mxu0 0.0
        %2785 = vmatprep.subr.mxu0 0.0
        %2786 = vmatpush1.msra.mxu0 0.0
        %2787 = vmatprep.subr.mxu0 0.0
        %2788 = vmatpush1.msra.mxu0 0.0
        %2789 = vmatprep.subr.mxu0 0.0
        %2790 = vmatpush1.msra.mxu0 0.0
        %2791 = vmatprep.subr.mxu0 0.0
        %2792 = vmatpush1.msra.mxu0 0.0
        %2793 = vmatprep.subr.mxu0 0.0
        %2794 = vmatpush1.msra.mxu0 0.0
        %2795 = vmatprep.subr.mxu0 0.0
        %2796 = vmatpush1.msra.mxu0 0.0
        %2797 = vmatprep.subr.mxu0 0.0
        %2798 = vmatpush1.msra.mxu0 0.0
        %2799 = vmatprep.subr.mxu0 0.0
        %2800 = vmatpush1.msra.mxu0 0.0
        %2801 = vmatprep.subr.mxu0 0.0
        %2802 = vmatpush1.msra.mxu0 0.0
        %2803 = vmatprep.mubr.f32.mxu0 0.0
        %2804 = vmatmul.mubr.f32.gmra.mrb[0].mxu0 %v2737
        %v2805 = vpop.f32.mrb[0].mxu0
        %v2806 = vadd.f32 %v2732, %v2805
        %v2807 = vpop.f32.mrb[0].mxu0
        %2808 = vdwg.mxu0
        %v2810 = vsel %vm1155, %v2643, 0
        %2812 = vmatprep.subr.mxu0 0.0
        %2813 = vmatpush1.msra.mxu0 %v1908
        %2814 = vmatprep.subr.mxu0 0.0
        %2815 = vmatpush1.msra.mxu0 0.0
        %2816 = vmatprep.subr.mxu0 0.0
        %2817 = vmatpush1.msra.mxu0 0.0
        %2818 = vmatprep.subr.mxu0 0.0
        %2819 = vmatpush1.msra.mxu0 0.0
        %2820 = vmatprep.subr.mxu0 0.0
        %2821 = vmatpush1.msra.mxu0 0.0
        %2822 = vmatprep.subr.mxu0 0.0
        %2823 = vmatpush1.msra.mxu0 0.0
        %2824 = vmatprep.subr.mxu0 0.0
        %2825 = vmatpush1.msra.mxu0 0.0
        %2826 = vmatprep.subr.mxu0 0.0
        %2827 = vmatpush1.msra.mxu0 0.0
        %2828 = vmatprep.subr.mxu0 0.0
        %2829 = vmatpush1.msra.mxu0 0.0
        %2830 = vmatprep.subr.mxu0 0.0
        %2831 = vmatpush1.msra.mxu0 0.0
        %2832 = vmatprep.subr.mxu0 0.0
        %2833 = vmatpush1.msra.mxu0 0.0
        %2834 = vmatprep.subr.mxu0 0.0
        %2835 = vmatpush1.msra.mxu0 0.0
        %2836 = vmatprep.subr.mxu0 0.0
        %2837 = vmatpush1.msra.mxu0 0.0
        %2838 = vmatprep.subr.mxu0 0.0
        %2839 = vmatpush1.msra.mxu0 0.0
        %2840 = vmatprep.subr.mxu0 0.0
        %2841 = vmatpush1.msra.mxu0 0.0
        %2842 = vmatprep.subr.mxu0 0.0
        %2843 = vmatpush1.msra.mxu0 0.0
        %2844 = vmatprep.subr.mxu0 0.0
        %2845 = vmatpush1.msra.mxu0 0.0
        %2846 = vmatprep.subr.mxu0 0.0
        %2847 = vmatpush1.msra.mxu0 0.0
        %2848 = vmatprep.subr.mxu0 0.0
        %2849 = vmatpush1.msra.mxu0 0.0
        %2850 = vmatprep.subr.mxu0 0.0
        %2851 = vmatpush1.msra.mxu0 0.0
        %2852 = vmatprep.subr.mxu0 0.0
        %2853 = vmatpush1.msra.mxu0 0.0
        %2854 = vmatprep.subr.mxu0 0.0
        %2855 = vmatpush1.msra.mxu0 0.0
        %2856 = vmatprep.subr.mxu0 0.0
        %2857 = vmatpush1.msra.mxu0 0.0
        %2858 = vmatprep.subr.mxu0 0.0
        %2859 = vmatpush1.msra.mxu0 0.0
        %2860 = vmatprep.subr.mxu0 0.0
        %2861 = vmatpush1.msra.mxu0 0.0
        %2862 = vmatprep.subr.mxu0 0.0
        %2863 = vmatpush1.msra.mxu0 0.0
        %2864 = vmatprep.subr.mxu0 0.0
        %2865 = vmatpush1.msra.mxu0 0.0
        %2866 = vmatprep.subr.mxu0 0.0
        %2867 = vmatpush1.msra.mxu0 0.0
        %2868 = vmatprep.subr.mxu0 0.0
        %2869 = vmatpush1.msra.mxu0 0.0
        %2870 = vmatprep.subr.mxu0 0.0
        %2871 = vmatpush1.msra.mxu0 0.0
        %2872 = vmatprep.subr.mxu0 0.0
        %2873 = vmatpush1.msra.mxu0 0.0
        %2874 = vmatprep.subr.mxu0 0.0
        %2875 = vmatpush1.msra.mxu0 0.0
        %2876 = vmatprep.mubr.f32.mxu0 0.0
        %2877 = vmatmul.mubr.f32.gmra.mrb[0].mxu0 %v2810
        %v2878 = vpop.f32.mrb[0].mxu0
        %v2879 = vadd.f32 0.0, %v2878
        %v2880 = vpop.f32.mrb[0].mxu0
        %2881 = vdwg.mxu0
        %v2882 = vadd.f32 %v2806, %v2879
        %2884 = vset.pattern.permute.xlu0 0
        %2885 = vperm.xlu0 %2884, %v2661
        %v2886 = vpop.permute.xlu0 %2885
        %v2887 = vrot.slane %v2886, 4
        %v2889 = vmul.f32 %v2882, %v2887
        %2890 = vrot.lane.b32.xlu0 %v719, 112
        %v2891 = vpop.permute.xlu0 %2890
        %2892 = vrot.lane.b32.xlu0 %v721, 112
        %v2893 = vpop.permute.xlu0 %2892
        %2894 = vrot.lane.b32.xlu0 %v722, 112
        %v2895 = vpop.permute.xlu0 %2894
        %v2896 = vsel %vm725, %v2891, 0
        %v2898 = vsel %vm725, %v2893, 0
        %v2900 = vsel %vm725, %v2895, 0
        %2902 = vmatprep.subr.mxu0 0.0
        %2903 = vmatpush1.xpose.msra.mxu0 %v2898
        %2904 = vmatprep.subr.mxu0 0.0
        %2905 = vmatpush1.xpose.msra.mxu0 %v2900
        %2906 = vmatprep.subr.mxu0 0.0
        %2907 = vmatpush1.xpose.msra.mxu0 0.0
        %2908 = vmatprep.subr.mxu0 0.0
        %2909 = vmatpush1.xpose.msra.mxu0 0.0
        %2910 = vmatprep.subr.mxu0 0.0
        %2911 = vmatpush1.xpose.msra.mxu0 0.0
        %2912 = vmatprep.subr.mxu0 0.0
        %2913 = vmatpush1.xpose.msra.mxu0 0.0
        %2914 = vmatprep.subr.mxu0 0.0
        %2915 = vmatpush1.xpose.msra.mxu0 0.0
        %2916 = vmatprep.subr.mxu0 0.0
        %2917 = vmatpush1.xpose.msra.mxu0 0.0
        %2918 = vmatprep.subr.mxu0 0.0
        %2919 = vmatpush1.xpose.msra.mxu0 0.0
        %2920 = vmatprep.subr.mxu0 0.0
        %2921 = vmatpush1.xpose.msra.mxu0 0.0
        %2922 = vmatprep.subr.mxu0 0.0
        %2923 = vmatpush1.xpose.msra.mxu0 0.0
        %2924 = vmatprep.subr.mxu0 0.0
        %2925 = vmatpush1.xpose.msra.mxu0 0.0
        %2926 = vmatprep.subr.mxu0 0.0
        %2927 = vmatpush1.xpose.msra.mxu0 0.0
        %2928 = vmatprep.subr.mxu0 0.0
        %2929 = vmatpush1.xpose.msra.mxu0 0.0
        %2930 = vmatprep.subr.mxu0 0.0
        %2931 = vmatpush1.xpose.msra.mxu0 0.0
        %2932 = vmatprep.subr.mxu0 0.0
        %2933 = vmatpush1.xpose.msra.mxu0 0.0
        %2934 = vmatprep.subr.mxu0 0.0
        %2935 = vmatpush1.xpose.msra.mxu0 0.0
        %2936 = vmatprep.subr.mxu0 0.0
        %2937 = vmatpush1.xpose.msra.mxu0 0.0
        %2938 = vmatprep.subr.mxu0 0.0
        %2939 = vmatpush1.xpose.msra.mxu0 0.0
        %2940 = vmatprep.subr.mxu0 0.0
        %2941 = vmatpush1.xpose.msra.mxu0 0.0
        %2942 = vmatprep.subr.mxu0 0.0
        %2943 = vmatpush1.xpose.msra.mxu0 0.0
        %2944 = vmatprep.subr.mxu0 0.0
        %2945 = vmatpush1.xpose.msra.mxu0 0.0
        %2946 = vmatprep.subr.mxu0 0.0
        %2947 = vmatpush1.xpose.msra.mxu0 0.0
        %2948 = vmatprep.subr.mxu0 0.0
        %2949 = vmatpush1.xpose.msra.mxu0 0.0
        %2950 = vmatprep.subr.mxu0 0.0
        %2951 = vmatpush1.xpose.msra.mxu0 0.0
        %2952 = vmatprep.subr.mxu0 0.0
        %2953 = vmatpush1.xpose.msra.mxu0 0.0
        %2954 = vmatprep.subr.mxu0 0.0
        %2955 = vmatpush1.xpose.msra.mxu0 0.0
        %2956 = vmatprep.subr.mxu0 0.0
        %2957 = vmatpush1.xpose.msra.mxu0 0.0
        %2958 = vmatprep.subr.mxu0 0.0
        %2959 = vmatpush1.xpose.msra.mxu0 0.0
        %2960 = vmatprep.subr.mxu0 0.0
        %2961 = vmatpush1.xpose.msra.mxu0 0.0
        %2962 = vmatprep.subr.mxu0 0.0
        %2963 = vmatpush1.xpose.msra.mxu0 0.0
        %2964 = vmatprep.subr.mxu0 0.0
        %2965 = vmatpush1.xpose.msra.mxu0 0.0
        %2966 = vmatprep.mubr.f32.mxu0 0.0
        %2967 = vmatmul.mubr.f32.gmra.mrb[0].mxu0 %v2896
        %v2968 = vpop.f32.mrb[0].mxu0
        %v2969 = vadd.f32 0.0, %v2968
        %v2970 = vpop.f32.mrb[0].mxu0
        %2971 = vdwg.mxu0
        %v2972 = vmul.f32 %v2969, 0.35355338
        %v2973 = vsel %vm806, %v2972, -inf
        %2974 = vmax.xlane.f32.xlu0 %v2973
        %v2975 = vpop.xlane.xlu0 %2974
        %v2976 = vsub.f32 %v2972, %v2975
        %v2977 = vmul.f32 %v2976, 1.442695
        %v2978 = vpow.pop %v2977
        %v2979 = vsel %vm806, %v2978, 0.0
        %2980 = vadd.xlane.f32.xlu0 %v2979
        %v2981 = vpop.xlane.xlu0 %2980
        %v2982 = vrcp.pop %v2981
        %v2983 = vmul.f32 %v2978, %v2982
        %2984 = vrot.lane.b32.xlu0 %v723, 112
        %v2985 = vpop.permute.xlu0 %2984
        %2986 = vrot.lane.b32.xlu0 %v724, 112
        %v2987 = vpop.permute.xlu0 %2986
        %v2990 = vsel %vm818, %v2983, 0
        %v2992 = vsel %vm822, %v2987, 0
        %2994 = vmatprep.subr.mxu0 0.0
        %2995 = vmatpush1.msra.mxu0 %v2985
        %2996 = vmatprep.subr.mxu0 0.0
        %2997 = vmatpush1.msra.mxu0 %v2992
        %2998 = vmatprep.subr.mxu0 0.0
        %2999 = vmatpush1.msra.mxu0 0.0
        %3000 = vmatprep.subr.mxu0 0.0
        %3001 = vmatpush1.msra.mxu0 0.0
        %3002 = vmatprep.subr.mxu0 0.0
        %3003 = vmatpush1.msra.mxu0 0.0
        %3004 = vmatprep.subr.mxu0 0.0
        %3005 = vmatpush1.msra.mxu0 0.0
        %3006 = vmatprep.subr.mxu0 0.0
        %3007 = vmatpush1.msra.mxu0 0.0
        %3008 = vmatprep.subr.mxu0 0.0
        %3009 = vmatpush1.msra.mxu0 0.0
        %3010 = vmatprep.subr.mxu0 0.0
        %3011 = vmatpush1.msra.mxu0 0.0
        %3012 = vmatprep.subr.mxu0 0.0
        %3013 = vmatpush1.msra.mxu0 0.0
        %3014 = vmatprep.subr.mxu0 0.0
        %3015 = vmatpush1.msra.mxu0 0.0
        %3016 = vmatprep.subr.mxu0 0.0
        %3017 = vmatpush1.msra.mxu0 0.0
        %3018 = vmatprep.subr.mxu0 0.0
        %3019 = vmatpush1.msra.mxu0 0.0
        %3020 = vmatprep.subr.mxu0 0.0
        %3021 = vmatpush1.msra.mxu0 0.0
        %3022 = vmatprep.subr.mxu0 0.0
        %3023 = vmatpush1.msra.mxu0 0.0
        %3024 = vmatprep.subr.mxu0 0.0
        %3025 = vmatpush1.msra.mxu0 0.0
        %3026 = vmatprep.subr.mxu0 0.0
        %3027 = vmatpush1.msra.mxu0 0.0
        %3028 = vmatprep.subr.mxu0 0.0
        %3029 = vmatpush1.msra.mxu0 0.0
        %3030 = vmatprep.subr.mxu0 0.0
        %3031 = vmatpush1.msra.mxu0 0.0
        %3032 = vmatprep.subr.mxu0 0.0
        %3033 = vmatpush1.msra.mxu0 0.0
        %3034 = vmatprep.subr.mxu0 0.0
        %3035 = vmatpush1.msra.mxu0 0.0
        %3036 = vmatprep.subr.mxu0 0.0
        %3037 = vmatpush1.msra.mxu0 0.0
        %3038 = vmatprep.subr.mxu0 0.0
        %3039 = vmatpush1.msra.mxu0 0.0
        %3040 = vmatprep.subr.mxu0 0.0
        %3041 = vmatpush1.msra.mxu0 0.0
        %3042 = vmatprep.subr.mxu0 0.0
        %3043 = vmatpush1.msra.mxu0 0.0
        %3044 = vmatprep.subr.mxu0 0.0
        %3045 = vmatpush1.msra.mxu0 0.0
        %3046 = vmatprep.subr.mxu0 0.0
        %3047 = vmatpush1.msra.mxu0 0.0
        %3048 = vmatprep.subr.mxu0 0.0
        %3049 = vmatpush1.msra.mxu0 0.0
        %3050 = vmatprep.subr.mxu0 0.0
        %3051 = vmatpush1.msra.mxu0 0.0
        %3052 = vmatprep.subr.mxu0 0.0
        %3053 = vmatpush1.msra.mxu0 0.0
        %3054 = vmatprep.subr.mxu0 0.0
        %3055 = vmatpush1.msra.mxu0 0.0
        %3056 = vmatprep.subr.mxu0 0.0
        %3057 = vmatpush1.msra.mxu0 0.0
        %3058 = vmatprep.mubr.f32.mxu0 0.0
        %3059 = vmatmul.mubr.f32.gmra.mrb[0].mxu0 %v2990
        %v3060 = vpop.f32.mrb[0].mxu0
        %v3061 = vadd.f32 0.0, %v3060
        %v3062 = vpop.f32.mrb[0].mxu0
        %3063 = vdwg.mxu0
        %3064 = vrot.lane.b32.xlu0 %v899, 112
        %v3065 = vpop.permute.xlu0 %3064
        %v3066 = vsel %vm725, %v3065, 0
        %3068 = vmatprep.subr.mxu0 0.0
        %3069 = vmatpush1.xpose.msra.mxu0 %v2898
        %3070 = vmatprep.subr.mxu0 0.0
        %3071 = vmatpush1.xpose.msra.mxu0 0.0
        %3072 = vmatprep.subr.mxu0 0.0
        %3073 = vmatpush1.xpose.msra.mxu0 0.0
        %3074 = vmatprep.subr.mxu0 0.0
        %3075 = vmatpush1.xpose.msra.mxu0 0.0
        %3076 = vmatprep.subr.mxu0 0.0
        %3077 = vmatpush1.xpose.msra.mxu0 0.0
        %3078 = vmatprep.subr.mxu0 0.0
        %3079 = vmatpush1.xpose.msra.mxu0 0.0
        %3080 = vmatprep.subr.mxu0 0.0
        %3081 = vmatpush1.xpose.msra.mxu0 0.0
        %3082 = vmatprep.subr.mxu0 0.0
        %3083 = vmatpush1.xpose.msra.mxu0 0.0
        %3084 = vmatprep.subr.mxu0 0.0
        %3085 = vmatpush1.xpose.msra.mxu0 0.0
        %3086 = vmatprep.subr.mxu0 0.0
        %3087 = vmatpush1.xpose.msra.mxu0 0.0
        %3088 = vmatprep.subr.mxu0 0.0
        %3089 = vmatpush1.xpose.msra.mxu0 0.0
        %3090 = vmatprep.subr.mxu0 0.0
        %3091 = vmatpush1.xpose.msra.mxu0 0.0
        %3092 = vmatprep.subr.mxu0 0.0
        %3093 = vmatpush1.xpose.msra.mxu0 0.0
        %3094 = vmatprep.subr.mxu0 0.0
        %3095 = vmatpush1.xpose.msra.mxu0 0.0
        %3096 = vmatprep.subr.mxu0 0.0
        %3097 = vmatpush1.xpose.msra.mxu0 0.0
        %3098 = vmatprep.subr.mxu0 0.0
        %3099 = vmatpush1.xpose.msra.mxu0 0.0
        %3100 = vmatprep.subr.mxu0 0.0
        %3101 = vmatpush1.xpose.msra.mxu0 0.0
        %3102 = vmatprep.subr.mxu0 0.0
        %3103 = vmatpush1.xpose.msra.mxu0 0.0
        %3104 = vmatprep.subr.mxu0 0.0
        %3105 = vmatpush1.xpose.msra.mxu0 0.0
        %3106 = vmatprep.subr.mxu0 0.0
        %3107 = vmatpush1.xpose.msra.mxu0 0.0
        %3108 = vmatprep.subr.mxu0 0.0
        %3109 = vmatpush1.xpose.msra.mxu0 0.0
        %3110 = vmatprep.subr.mxu0 0.0
        %3111 = vmatpush1.xpose.msra.mxu0 0.0
        %3112 = vmatprep.subr.mxu0 0.0
        %3113 = vmatpush1.xpose.msra.mxu0 0.0
        %3114 = vmatprep.subr.mxu0 0.0
        %3115 = vmatpush1.xpose.msra.mxu0 0.0
        %3116 = vmatprep.subr.mxu0 0.0
        %3117 = vmatpush1.xpose.msra.mxu0 0.0
        %3118 = vmatprep.subr.mxu0 0.0
        %3119 = vmatpush1.xpose.msra.mxu0 0.0
        %3120 = vmatprep.subr.mxu0 0.0
        %3121 = vmatpush1.xpose.msra.mxu0 0.0
        %3122 = vmatprep.subr.mxu0 0.0
        %3123 = vmatpush1.xpose.msra.mxu0 0.0
        %3124 = vmatprep.subr.mxu0 0.0
        %3125 = vmatpush1.xpose.msra.mxu0 0.0
        %3126 = vmatprep.subr.mxu0 0.0
        %3127 = vmatpush1.xpose.msra.mxu0 0.0
        %3128 = vmatprep.subr.mxu0 0.0
        %3129 = vmatpush1.xpose.msra.mxu0 0.0
        %3130 = vmatprep.subr.mxu0 0.0
        %3131 = vmatpush1.xpose.msra.mxu0 0.0
        %3132 = vmatprep.mubr.f32.mxu0 0.0
        %3133 = vmatmul.mubr.f32.gmra.mrb[0].mxu0 %v3066
        %v3134 = vpop.f32.mrb[0].mxu0
        %v3135 = vadd.f32 0.0, %v3134
        %v3136 = vpop.f32.mrb[0].mxu0
        %3137 = vdwg.mxu0
        %v3138 = vmul.f32 %v3135, 0.35355338
        %3139 = vrot.lane.b32.xlu0 %v897, 112
        %v3140 = vpop.permute.xlu0 %3139
        %v3141 = vsel %vm725, %v3140, 0
        %3143 = vmatprep.subr.mxu0 0.0
        %3144 = vmatpush1.xpose.msra.mxu0 %v2900
        %3145 = vmatprep.subr.mxu0 0.0
        %3146 = vmatpush1.xpose.msra.mxu0 0.0
        %3147 = vmatprep.subr.mxu0 0.0
        %3148 = vmatpush1.xpose.msra.mxu0 0.0
        %3149 = vmatprep.subr.mxu0 0.0
        %3150 = vmatpush1.xpose.msra.mxu0 0.0
        %3151 = vmatprep.subr.mxu0 0.0
        %3152 = vmatpush1.xpose.msra.mxu0 0.0
        %3153 = vmatprep.subr.mxu0 0.0
        %3154 = vmatpush1.xpose.msra.mxu0 0.0
        %3155 = vmatprep.subr.mxu0 0.0
        %3156 = vmatpush1.xpose.msra.mxu0 0.0
        %3157 = vmatprep.subr.mxu0 0.0
        %3158 = vmatpush1.xpose.msra.mxu0 0.0
        %3159 = vmatprep.subr.mxu0 0.0
        %3160 = vmatpush1.xpose.msra.mxu0 0.0
        %3161 = vmatprep.subr.mxu0 0.0
        %3162 = vmatpush1.xpose.msra.mxu0 0.0
        %3163 = vmatprep.subr.mxu0 0.0
        %3164 = vmatpush1.xpose.msra.mxu0 0.0
        %3165 = vmatprep.subr.mxu0 0.0
        %3166 = vmatpush1.xpose.msra.mxu0 0.0
        %3167 = vmatprep.subr.mxu0 0.0
        %3168 = vmatpush1.xpose.msra.mxu0 0.0
        %3169 = vmatprep.subr.mxu0 0.0
        %3170 = vmatpush1.xpose.msra.mxu0 0.0
        %3171 = vmatprep.subr.mxu0 0.0
        %3172 = vmatpush1.xpose.msra.mxu0 0.0
        %3173 = vmatprep.subr.mxu0 0.0
        %3174 = vmatpush1.xpose.msra.mxu0 0.0
        %3175 = vmatprep.subr.mxu0 0.0
        %3176 = vmatpush1.xpose.msra.mxu0 0.0
        %3177 = vmatprep.subr.mxu0 0.0
        %3178 = vmatpush1.xpose.msra.mxu0 0.0
        %3179 = vmatprep.subr.mxu0 0.0
        %3180 = vmatpush1.xpose.msra.mxu0 0.0
        %3181 = vmatprep.subr.mxu0 0.0
        %3182 = vmatpush1.xpose.msra.mxu0 0.0
        %3183 = vmatprep.subr.mxu0 0.0
        %3184 = vmatpush1.xpose.msra.mxu0 0.0
        %3185 = vmatprep.subr.mxu0 0.0
        %3186 = vmatpush1.xpose.msra.mxu0 0.0
        %3187 = vmatprep.subr.mxu0 0.0
        %3188 = vmatpush1.xpose.msra.mxu0 0.0
        %3189 = vmatprep.subr.mxu0 0.0
        %3190 = vmatpush1.xpose.msra.mxu0 0.0
        %3191 = vmatprep.subr.mxu0 0.0
        %3192 = vmatpush1.xpose.msra.mxu0 0.0
        %3193 = vmatprep.subr.mxu0 0.0
        %3194 = vmatpush1.xpose.msra.mxu0 0.0
        %3195 = vmatprep.subr.mxu0 0.0
        %3196 = vmatpush1.xpose.msra.mxu0 0.0
        %3197 = vmatprep.subr.mxu0 0.0
        %3198 = vmatpush1.xpose.msra.mxu0 0.0
        %3199 = vmatprep.subr.mxu0 0.0
        %3200 = vmatpush1.xpose.msra.mxu0 0.0
        %3201 = vmatprep.subr.mxu0 0.0
        %3202 = vmatpush1.xpose.msra.mxu0 0.0
        %3203 = vmatprep.subr.mxu0 0.0
        %3204 = vmatpush1.xpose.msra.mxu0 0.0
        %3205 = vmatprep.subr.mxu0 0.0
        %3206 = vmatpush1.xpose.msra.mxu0 0.0
        %3207 = vmatprep.mubr.f32.mxu0 0.0
        %3208 = vmatmul.mubr.f32.gmra.mrb[0].mxu0 %v3141
        %v3209 = vpop.f32.mrb[0].mxu0
        %v3210 = vadd.f32 0.0, %v3209
        %v3211 = vpop.f32.mrb[0].mxu0
        %3212 = vdwg.mxu0
        %v3213 = vmul.f32 %v3210, 0.35355338
        %3214 = vrot.lane.b32.xlu0 %v1046, 112
        %v3215 = vpop.permute.xlu0 %3214
        %v3216 = vsel %vm725, %v3215, 0
        %3218 = vmatprep.subr.mxu0 0.0
        %3219 = vmatpush1.xpose.msra.mxu0 %v3216
        %3220 = vmatprep.subr.mxu0 0.0
        %3221 = vmatpush1.xpose.msra.mxu0 0.0
        %3222 = vmatprep.subr.mxu0 0.0
        %3223 = vmatpush1.xpose.msra.mxu0 0.0
        %3224 = vmatprep.subr.mxu0 0.0
        %3225 = vmatpush1.xpose.msra.mxu0 0.0
        %3226 = vmatprep.subr.mxu0 0.0
        %3227 = vmatpush1.xpose.msra.mxu0 0.0
        %3228 = vmatprep.subr.mxu0 0.0
        %3229 = vmatpush1.xpose.msra.mxu0 0.0
        %3230 = vmatprep.subr.mxu0 0.0
        %3231 = vmatpush1.xpose.msra.mxu0 0.0
        %3232 = vmatprep.subr.mxu0 0.0
        %3233 = vmatpush1.xpose.msra.mxu0 0.0
        %3234 = vmatprep.subr.mxu0 0.0
        %3235 = vmatpush1.xpose.msra.mxu0 0.0
        %3236 = vmatprep.subr.mxu0 0.0
        %3237 = vmatpush1.xpose.msra.mxu0 0.0
        %3238 = vmatprep.subr.mxu0 0.0
        %3239 = vmatpush1.xpose.msra.mxu0 0.0
        %3240 = vmatprep.subr.mxu0 0.0
        %3241 = vmatpush1.xpose.msra.mxu0 0.0
        %3242 = vmatprep.subr.mxu0 0.0
        %3243 = vmatpush1.xpose.msra.mxu0 0.0
        %3244 = vmatprep.subr.mxu0 0.0
        %3245 = vmatpush1.xpose.msra.mxu0 0.0
        %3246 = vmatprep.subr.mxu0 0.0
        %3247 = vmatpush1.xpose.msra.mxu0 0.0
        %3248 = vmatprep.subr.mxu0 0.0
        %3249 = vmatpush1.xpose.msra.mxu0 0.0
        %3250 = vmatprep.subr.mxu0 0.0
        %3251 = vmatpush1.xpose.msra.mxu0 0.0
        %3252 = vmatprep.subr.mxu0 0.0
        %3253 = vmatpush1.xpose.msra.mxu0 0.0
        %3254 = vmatprep.subr.mxu0 0.0
        %3255 = vmatpush1.xpose.msra.mxu0 0.0
        %3256 = vmatprep.subr.mxu0 0.0
        %3257 = vmatpush1.xpose.msra.mxu0 0.0
        %3258 = vmatprep.subr.mxu0 0.0
        %3259 = vmatpush1.xpose.msra.mxu0 0.0
        %3260 = vmatprep.subr.mxu0 0.0
        %3261 = vmatpush1.xpose.msra.mxu0 0.0
        %3262 = vmatprep.subr.mxu0 0.0
        %3263 = vmatpush1.xpose.msra.mxu0 0.0
        %3264 = vmatprep.subr.mxu0 0.0
        %3265 = vmatpush1.xpose.msra.mxu0 0.0
        %3266 = vmatprep.subr.mxu0 0.0
        %3267 = vmatpush1.xpose.msra.mxu0 0.0
        %3268 = vmatprep.subr.mxu0 0.0
        %3269 = vmatpush1.xpose.msra.mxu0 0.0
        %3270 = vmatprep.subr.mxu0 0.0
        %3271 = vmatpush1.xpose.msra.mxu0 0.0
        %3272 = vmatprep.subr.mxu0 0.0
        %3273 = vmatpush1.xpose.msra.mxu0 0.0
        %3274 = vmatprep.subr.mxu0 0.0
        %3275 = vmatpush1.xpose.msra.mxu0 0.0
        %3276 = vmatprep.subr.mxu0 0.0
        %3277 = vmatpush1.xpose.msra.mxu0 0.0
        %3278 = vmatprep.subr.mxu0 0.0
        %3279 = vmatpush1.xpose.msra.mxu0 0.0
        %3280 = vmatprep.subr.mxu0 0.0
        %3281 = vmatpush1.xpose.msra.mxu0 0.0
        %3282 = vmatprep.mubr.f32.mxu0 0.0
        %3283 = vmatmul.mubr.f32.gmra.mrb[0].mxu0 %v3141
        %v3284 = vpop.f32.mrb[0].mxu0
        %v3285 = vadd.f32 0.0, %v3284
        %v3286 = vpop.f32.mrb[0].mxu0
        %3287 = vdwg.mxu0
        %v3288 = vmul.f32 %v3285, 0.35355338
        %v3289 = vsel %vm711, -2.3819763e+38, %v3213
        %v3290 = vsel %vm704, -2.3819763e+38, %v3288
        %v3291 = vsel %vm1122, %v3138, -inf
        %3292 = vmax.xlane.f32.xlu0 %v3291
        %v3293 = vpop.xlane.xlu0 %3292
        %v3294 = vsel %vm1122, %v3289, -inf
        %3295 = vmax.xlane.f32.xlu0 %v3294
        %v3296 = vpop.xlane.xlu0 %3295
        %v3297 = vsel %vm1122, %v3290, -inf
        %3298 = vmax.xlane.f32.xlu0 %v3297
        %v3299 = vpop.xlane.xlu0 %3298
        %v3300 = vmax.f32 %v3296, %v3299
        %v3301 = vmax.f32 %v3293, %v3300
        %v3302 = vsub.f32 %v3138, %v3301
        %v3303 = vmul.f32 %v3302, 1.442695
        %v3304 = vpow.pop %v3303
        %v3305 = vsub.f32 %v3289, %v3301
        %v3306 = vmul.f32 %v3305, 1.442695
        %v3307 = vpow.pop %v3306
        %v3308 = vsub.f32 %v3290, %v3301
        %v3309 = vmul.f32 %v3308, 1.442695
        %v3310 = vpow.pop %v3309
        %v3311 = vsel %vm1122, %v3304, 0.0
        %3312 = vadd.xlane.f32.xlu0 %v3311
        %v3313 = vpop.xlane.xlu0 %3312
        %v3314 = vsel %vm1122, %v3307, 0.0
        %3315 = vadd.xlane.f32.xlu0 %v3314
        %v3316 = vpop.xlane.xlu0 %3315
        %v3317 = vadd.f32 %v3313, %v3316
        %v3318 = vsel %vm1122, %v3310, 0.0
        %3319 = vadd.xlane.f32.xlu0 %v3318
        %v3320 = vpop.xlane.xlu0 %3319
        %v3321 = vadd.f32 %v3317, %v3320
        %v3322 = vrcp.pop %v3321
        %v3324 = vsel %vm1155, %v3307, 0
        %3326 = vmatprep.subr.mxu0 0.0
        %3327 = vmatpush1.msra.mxu0 %v2992
        %3328 = vmatprep.subr.mxu0 0.0
        %3329 = vmatpush1.msra.mxu0 0.0
        %3330 = vmatprep.subr.mxu0 0.0
        %3331 = vmatpush1.msra.mxu0 0.0
        %3332 = vmatprep.subr.mxu0 0.0
        %3333 = vmatpush1.msra.mxu0 0.0
        %3334 = vmatprep.subr.mxu0 0.0
        %3335 = vmatpush1.msra.mxu0 0.0
        %3336 = vmatprep.subr.mxu0 0.0
        %3337 = vmatpush1.msra.mxu0 0.0
        %3338 = vmatprep.subr.mxu0 0.0
        %3339 = vmatpush1.msra.mxu0 0.0
        %3340 = vmatprep.subr.mxu0 0.0
        %3341 = vmatpush1.msra.mxu0 0.0
        %3342 = vmatprep.subr.mxu0 0.0
        %3343 = vmatpush1.msra.mxu0 0.0
        %3344 = vmatprep.subr.mxu0 0.0
        %3345 = vmatpush1.msra.mxu0 0.0
        %3346 = vmatprep.subr.mxu0 0.0
        %3347 = vmatpush1.msra.mxu0 0.0
        %3348 = vmatprep.subr.mxu0 0.0
        %3349 = vmatpush1.msra.mxu0 0.0
        %3350 = vmatprep.subr.mxu0 0.0
        %3351 = vmatpush1.msra.mxu0 0.0
        %3352 = vmatprep.subr.mxu0 0.0
        %3353 = vmatpush1.msra.mxu0 0.0
        %3354 = vmatprep.subr.mxu0 0.0
        %3355 = vmatpush1.msra.mxu0 0.0
        %3356 = vmatprep.subr.mxu0 0.0
        %3357 = vmatpush1.msra.mxu0 0.0
        %3358 = vmatprep.subr.mxu0 0.0
        %3359 = vmatpush1.msra.mxu0 0.0
        %3360 = vmatprep.subr.mxu0 0.0
        %3361 = vmatpush1.msra.mxu0 0.0
        %3362 = vmatprep.subr.mxu0 0.0
        %3363 = vmatpush1.msra.mxu0 0.0
        %3364 = vmatprep.subr.mxu0 0.0
        %3365 = vmatpush1.msra.mxu0 0.0
        %3366 = vmatprep.subr.mxu0 0.0
        %3367 = vmatpush1.msra.mxu0 0.0
        %3368 = vmatprep.subr.mxu0 0.0
        %3369 = vmatpush1.msra.mxu0 0.0
        %3370 = vmatprep.subr.mxu0 0.0
        %3371 = vmatpush1.msra.mxu0 0.0
        %3372 = vmatprep.subr.mxu0 0.0
        %3373 = vmatpush1.msra.mxu0 0.0
        %3374 = vmatprep.subr.mxu0 0.0
        %3375 = vmatpush1.msra.mxu0 0.0
        %3376 = vmatprep.subr.mxu0 0.0
        %3377 = vmatpush1.msra.mxu0 0.0
        %3378 = vmatprep.subr.mxu0 0.0
        %3379 = vmatpush1.msra.mxu0 0.0
        %3380 = vmatprep.subr.mxu0 0.0
        %3381 = vmatpush1.msra.mxu0 0.0
        %3382 = vmatprep.subr.mxu0 0.0
        %3383 = vmatpush1.msra.mxu0 0.0
        %3384 = vmatprep.subr.mxu0 0.0
        %3385 = vmatpush1.msra.mxu0 0.0
        %3386 = vmatprep.subr.mxu0 0.0
        %3387 = vmatpush1.msra.mxu0 0.0
        %3388 = vmatprep.subr.mxu0 0.0
        %3389 = vmatpush1.msra.mxu0 0.0
        %3390 = vmatprep.mubr.f32.mxu0 0.0
        %3391 = vmatmul.mubr.f32.gmra.mrb[0].mxu0 %v3324
        %v3392 = vpop.f32.mrb[0].mxu0
        %v3393 = vadd.f32 0.0, %v3392
        %v3394 = vpop.f32.mrb[0].mxu0
        %3395 = vdwg.mxu0
        %v3397 = vsel %vm1155, %v3304, 0
        %v3399 = vsel %vm822, %v2985, 0
        %3401 = vmatprep.subr.mxu0 0.0
        %3402 = vmatpush1.msra.mxu0 %v3399
        %3403 = vmatprep.subr.mxu0 0.0
        %3404 = vmatpush1.msra.mxu0 0.0
        %3405 = vmatprep.subr.mxu0 0.0
        %3406 = vmatpush1.msra.mxu0 0.0
        %3407 = vmatprep.subr.mxu0 0.0
        %3408 = vmatpush1.msra.mxu0 0.0
        %3409 = vmatprep.subr.mxu0 0.0
        %3410 = vmatpush1.msra.mxu0 0.0
        %3411 = vmatprep.subr.mxu0 0.0
        %3412 = vmatpush1.msra.mxu0 0.0
        %3413 = vmatprep.subr.mxu0 0.0
        %3414 = vmatpush1.msra.mxu0 0.0
        %3415 = vmatprep.subr.mxu0 0.0
        %3416 = vmatpush1.msra.mxu0 0.0
        %3417 = vmatprep.subr.mxu0 0.0
        %3418 = vmatpush1.msra.mxu0 0.0
        %3419 = vmatprep.subr.mxu0 0.0
        %3420 = vmatpush1.msra.mxu0 0.0
        %3421 = vmatprep.subr.mxu0 0.0
        %3422 = vmatpush1.msra.mxu0 0.0
        %3423 = vmatprep.subr.mxu0 0.0
        %3424 = vmatpush1.msra.mxu0 0.0
        %3425 = vmatprep.subr.mxu0 0.0
        %3426 = vmatpush1.msra.mxu0 0.0
        %3427 = vmatprep.subr.mxu0 0.0
        %3428 = vmatpush1.msra.mxu0 0.0
        %3429 = vmatprep.subr.mxu0 0.0
        %3430 = vmatpush1.msra.mxu0 0.0
        %3431 = vmatprep.subr.mxu0 0.0
        %3432 = vmatpush1.msra.mxu0 0.0
        %3433 = vmatprep.subr.mxu0 0.0
        %3434 = vmatpush1.msra.mxu0 0.0
        %3435 = vmatprep.subr.mxu0 0.0
        %3436 = vmatpush1.msra.mxu0 0.0
        %3437 = vmatprep.subr.mxu0 0.0
        %3438 = vmatpush1.msra.mxu0 0.0
        %3439 = vmatprep.subr.mxu0 0.0
        %3440 = vmatpush1.msra.mxu0 0.0
        %3441 = vmatprep.subr.mxu0 0.0
        %3442 = vmatpush1.msra.mxu0 0.0
        %3443 = vmatprep.subr.mxu0 0.0
        %3444 = vmatpush1.msra.mxu0 0.0
        %3445 = vmatprep.subr.mxu0 0.0
        %3446 = vmatpush1.msra.mxu0 0.0
        %3447 = vmatprep.subr.mxu0 0.0
        %3448 = vmatpush1.msra.mxu0 0.0
        %3449 = vmatprep.subr.mxu0 0.0
        %3450 = vmatpush1.msra.mxu0 0.0
        %3451 = vmatprep.subr.mxu0 0.0
        %3452 = vmatpush1.msra.mxu0 0.0
        %3453 = vmatprep.subr.mxu0 0.0
        %3454 = vmatpush1.msra.mxu0 0.0
        %3455 = vmatprep.subr.mxu0 0.0
        %3456 = vmatpush1.msra.mxu0 0.0
        %3457 = vmatprep.subr.mxu0 0.0
        %3458 = vmatpush1.msra.mxu0 0.0
        %3459 = vmatprep.subr.mxu0 0.0
        %3460 = vmatpush1.msra.mxu0 0.0
        %3461 = vmatprep.subr.mxu0 0.0
        %3462 = vmatpush1.msra.mxu0 0.0
        %3463 = vmatprep.subr.mxu0 0.0
        %3464 = vmatpush1.msra.mxu0 0.0
        %3465 = vmatprep.mubr.f32.mxu0 0.0
        %3466 = vmatmul.mubr.f32.gmra.mrb[0].mxu0 %v3397
        %v3467 = vpop.f32.mrb[0].mxu0
        %v3468 = vadd.f32 %v3393, %v3467
        %v3469 = vpop.f32.mrb[0].mxu0
        %3470 = vdwg.mxu0
        %3471 = vrot.lane.b32.xlu0 %v1305, 112
        %v3472 = vpop.permute.xlu0 %3471
        %v3474 = vsel %vm1155, %v3310, 0
        %v3476 = vsel %vm822, %v3472, 0
        %3478 = vmatprep.subr.mxu0 0.0
        %3479 = vmatpush1.msra.mxu0 %v3476
        %3480 = vmatprep.subr.mxu0 0.0
        %3481 = vmatpush1.msra.mxu0 0.0
        %3482 = vmatprep.subr.mxu0 0.0
        %3483 = vmatpush1.msra.mxu0 0.0
        %3484 = vmatprep.subr.mxu0 0.0
        %3485 = vmatpush1.msra.mxu0 0.0
        %3486 = vmatprep.subr.mxu0 0.0
        %3487 = vmatpush1.msra.mxu0 0.0
        %3488 = vmatprep.subr.mxu0 0.0
        %3489 = vmatpush1.msra.mxu0 0.0
        %3490 = vmatprep.subr.mxu0 0.0
        %3491 = vmatpush1.msra.mxu0 0.0
        %3492 = vmatprep.subr.mxu0 0.0
        %3493 = vmatpush1.msra.mxu0 0.0
        %3494 = vmatprep.subr.mxu0 0.0
        %3495 = vmatpush1.msra.mxu0 0.0
        %3496 = vmatprep.subr.mxu0 0.0
        %3497 = vmatpush1.msra.mxu0 0.0
        %3498 = vmatprep.subr.mxu0 0.0
        %3499 = vmatpush1.msra.mxu0 0.0
        %3500 = vmatprep.subr.mxu0 0.0
        %3501 = vmatpush1.msra.mxu0 0.0
        %3502 = vmatprep.subr.mxu0 0.0
        %3503 = vmatpush1.msra.mxu0 0.0
        %3504 = vmatprep.subr.mxu0 0.0
        %3505 = vmatpush1.msra.mxu0 0.0
        %3506 = vmatprep.subr.mxu0 0.0
        %3507 = vmatpush1.msra.mxu0 0.0
        %3508 = vmatprep.subr.mxu0 0.0
        %3509 = vmatpush1.msra.mxu0 0.0
        %3510 = vmatprep.subr.mxu0 0.0
        %3511 = vmatpush1.msra.mxu0 0.0
        %3512 = vmatprep.subr.mxu0 0.0
        %3513 = vmatpush1.msra.mxu0 0.0
        %3514 = vmatprep.subr.mxu0 0.0
        %3515 = vmatpush1.msra.mxu0 0.0
        %3516 = vmatprep.subr.mxu0 0.0
        %3517 = vmatpush1.msra.mxu0 0.0
        %3518 = vmatprep.subr.mxu0 0.0
        %3519 = vmatpush1.msra.mxu0 0.0
        %3520 = vmatprep.subr.mxu0 0.0
        %3521 = vmatpush1.msra.mxu0 0.0
        %3522 = vmatprep.subr.mxu0 0.0
        %3523 = vmatpush1.msra.mxu0 0.0
        %3524 = vmatprep.subr.mxu0 0.0
        %3525 = vmatpush1.msra.mxu0 0.0
        %3526 = vmatprep.subr.mxu0 0.0
        %3527 = vmatpush1.msra.mxu0 0.0
        %3528 = vmatprep.subr.mxu0 0.0
        %3529 = vmatpush1.msra.mxu0 0.0
        %3530 = vmatprep.subr.mxu0 0.0
        %3531 = vmatpush1.msra.mxu0 0.0
        %3532 = vmatprep.subr.mxu0 0.0
        %3533 = vmatpush1.msra.mxu0 0.0
        %3534 = vmatprep.subr.mxu0 0.0
        %3535 = vmatpush1.msra.mxu0 0.0
        %3536 = vmatprep.subr.mxu0 0.0
        %3537 = vmatpush1.msra.mxu0 0.0
        %3538 = vmatprep.subr.mxu0 0.0
        %3539 = vmatpush1.msra.mxu0 0.0
        %3540 = vmatprep.subr.mxu0 0.0
        %3541 = vmatpush1.msra.mxu0 0.0
        %3542 = vmatprep.mubr.f32.mxu0 0.0
        %3543 = vmatmul.mubr.f32.gmra.mrb[0].mxu0 %v3474
        %v3544 = vpop.f32.mrb[0].mxu0
        %v3545 = vadd.f32 0.0, %v3544
        %v3546 = vpop.f32.mrb[0].mxu0
        %3547 = vdwg.mxu0
        %v3548 = vadd.f32 %v3468, %v3545
        %v3549 = vmul.f32 %v3548, %v3322
        %3550 = vrot.lane.b32.xlu0 %v720, 112
        %v3551 = vpop.permute.xlu0 %3550
        %v3552 = vsel %vm725, %v3551, 0
        %3554 = vmatprep.subr.mxu0 0.0
        %3555 = vmatpush1.xpose.msra.mxu0 %v3216
        %3556 = vmatprep.subr.mxu0 0.0
        %3557 = vmatpush1.xpose.msra.mxu0 0.0
        %3558 = vmatprep.subr.mxu0 0.0
        %3559 = vmatpush1.xpose.msra.mxu0 0.0
        %3560 = vmatprep.subr.mxu0 0.0
        %3561 = vmatpush1.xpose.msra.mxu0 0.0
        %3562 = vmatprep.subr.mxu0 0.0
        %3563 = vmatpush1.xpose.msra.mxu0 0.0
        %3564 = vmatprep.subr.mxu0 0.0
        %3565 = vmatpush1.xpose.msra.mxu0 0.0
        %3566 = vmatprep.subr.mxu0 0.0
        %3567 = vmatpush1.xpose.msra.mxu0 0.0
        %3568 = vmatprep.subr.mxu0 0.0
        %3569 = vmatpush1.xpose.msra.mxu0 0.0
        %3570 = vmatprep.subr.mxu0 0.0
        %3571 = vmatpush1.xpose.msra.mxu0 0.0
        %3572 = vmatprep.subr.mxu0 0.0
        %3573 = vmatpush1.xpose.msra.mxu0 0.0
        %3574 = vmatprep.subr.mxu0 0.0
        %3575 = vmatpush1.xpose.msra.mxu0 0.0
        %3576 = vmatprep.subr.mxu0 0.0
        %3577 = vmatpush1.xpose.msra.mxu0 0.0
        %3578 = vmatprep.subr.mxu0 0.0
        %3579 = vmatpush1.xpose.msra.mxu0 0.0
        %3580 = vmatprep.subr.mxu0 0.0
        %3581 = vmatpush1.xpose.msra.mxu0 0.0
        %3582 = vmatprep.subr.mxu0 0.0
        %3583 = vmatpush1.xpose.msra.mxu0 0.0
        %3584 = vmatprep.subr.mxu0 0.0
        %3585 = vmatpush1.xpose.msra.mxu0 0.0
        %3586 = vmatprep.subr.mxu0 0.0
        %3587 = vmatpush1.xpose.msra.mxu0 0.0
        %3588 = vmatprep.subr.mxu0 0.0
        %3589 = vmatpush1.xpose.msra.mxu0 0.0
        %3590 = vmatprep.subr.mxu0 0.0
        %3591 = vmatpush1.xpose.msra.mxu0 0.0
        %3592 = vmatprep.subr.mxu0 0.0
        %3593 = vmatpush1.xpose.msra.mxu0 0.0
        %3594 = vmatprep.subr.mxu0 0.0
        %3595 = vmatpush1.xpose.msra.mxu0 0.0
        %3596 = vmatprep.subr.mxu0 0.0
        %3597 = vmatpush1.xpose.msra.mxu0 0.0
        %3598 = vmatprep.subr.mxu0 0.0
        %3599 = vmatpush1.xpose.msra.mxu0 0.0
        %3600 = vmatprep.subr.mxu0 0.0
        %3601 = vmatpush1.xpose.msra.mxu0 0.0
        %3602 = vmatprep.subr.mxu0 0.0
        %3603 = vmatpush1.xpose.msra.mxu0 0.0
        %3604 = vmatprep.subr.mxu0 0.0
        %3605 = vmatpush1.xpose.msra.mxu0 0.0
        %3606 = vmatprep.subr.mxu0 0.0
        %3607 = vmatpush1.xpose.msra.mxu0 0.0
        %3608 = vmatprep.subr.mxu0 0.0
        %3609 = vmatpush1.xpose.msra.mxu0 0.0
        %3610 = vmatprep.subr.mxu0 0.0
        %3611 = vmatpush1.xpose.msra.mxu0 0.0
        %3612 = vmatprep.subr.mxu0 0.0
        %3613 = vmatpush1.xpose.msra.mxu0 0.0
        %3614 = vmatprep.subr.mxu0 0.0
        %3615 = vmatpush1.xpose.msra.mxu0 0.0
        %3616 = vmatprep.subr.mxu0 0.0
        %3617 = vmatpush1.xpose.msra.mxu0 0.0
        %3618 = vmatprep.mubr.f32.mxu0 0.0
        %3619 = vmatmul.mubr.f32.gmra.mrb[0].mxu0 %v3552
        %v3620 = vpop.f32.mrb[0].mxu0
        %v3621 = vadd.f32 0.0, %v3620
        %v3622 = vpop.f32.mrb[0].mxu0
        %3623 = vdwg.mxu0
        %v3624 = vmul.f32 %v3621, 0.35355338
        %3625 = vmatprep.subr.mxu0 0.0
        %3626 = vmatpush1.xpose.msra.mxu0 %v2900
        %3627 = vmatprep.subr.mxu0 0.0
        %3628 = vmatpush1.xpose.msra.mxu0 0.0
        %3629 = vmatprep.subr.mxu0 0.0
        %3630 = vmatpush1.xpose.msra.mxu0 0.0
        %3631 = vmatprep.subr.mxu0 0.0
        %3632 = vmatpush1.xpose.msra.mxu0 0.0
        %3633 = vmatprep.subr.mxu0 0.0
        %3634 = vmatpush1.xpose.msra.mxu0 0.0
        %3635 = vmatprep.subr.mxu0 0.0
        %3636 = vmatpush1.xpose.msra.mxu0 0.0
        %3637 = vmatprep.subr.mxu0 0.0
        %3638 = vmatpush1.xpose.msra.mxu0 0.0
        %3639 = vmatprep.subr.mxu0 0.0
        %3640 = vmatpush1.xpose.msra.mxu0 0.0
        %3641 = vmatprep.subr.mxu0 0.0
        %3642 = vmatpush1.xpose.msra.mxu0 0.0
        %3643 = vmatprep.subr.mxu0 0.0
        %3644 = vmatpush1.xpose.msra.mxu0 0.0
        %3645 = vmatprep.subr.mxu0 0.0
        %3646 = vmatpush1.xpose.msra.mxu0 0.0
        %3647 = vmatprep.subr.mxu0 0.0
        %3648 = vmatpush1.xpose.msra.mxu0 0.0
        %3649 = vmatprep.subr.mxu0 0.0
        %3650 = vmatpush1.xpose.msra.mxu0 0.0
        %3651 = vmatprep.subr.mxu0 0.0
        %3652 = vmatpush1.xpose.msra.mxu0 0.0
        %3653 = vmatprep.subr.mxu0 0.0
        %3654 = vmatpush1.xpose.msra.mxu0 0.0
        %3655 = vmatprep.subr.mxu0 0.0
        %3656 = vmatpush1.xpose.msra.mxu0 0.0
        %3657 = vmatprep.subr.mxu0 0.0
        %3658 = vmatpush1.xpose.msra.mxu0 0.0
        %3659 = vmatprep.subr.mxu0 0.0
        %3660 = vmatpush1.xpose.msra.mxu0 0.0
        %3661 = vmatprep.subr.mxu0 0.0
        %3662 = vmatpush1.xpose.msra.mxu0 0.0
        %3663 = vmatprep.subr.mxu0 0.0
        %3664 = vmatpush1.xpose.msra.mxu0 0.0
        %3665 = vmatprep.subr.mxu0 0.0
        %3666 = vmatpush1.xpose.msra.mxu0 0.0
        %3667 = vmatprep.subr.mxu0 0.0
        %3668 = vmatpush1.xpose.msra.mxu0 0.0
        %3669 = vmatprep.subr.mxu0 0.0
        %3670 = vmatpush1.xpose.msra.mxu0 0.0
        %3671 = vmatprep.subr.mxu0 0.0
        %3672 = vmatpush1.xpose.msra.mxu0 0.0
        %3673 = vmatprep.subr.mxu0 0.0
        %3674 = vmatpush1.xpose.msra.mxu0 0.0
        %3675 = vmatprep.subr.mxu0 0.0
        %3676 = vmatpush1.xpose.msra.mxu0 0.0
        %3677 = vmatprep.subr.mxu0 0.0
        %3678 = vmatpush1.xpose.msra.mxu0 0.0
        %3679 = vmatprep.subr.mxu0 0.0
        %3680 = vmatpush1.xpose.msra.mxu0 0.0
        %3681 = vmatprep.subr.mxu0 0.0
        %3682 = vmatpush1.xpose.msra.mxu0 0.0
        %3683 = vmatprep.subr.mxu0 0.0
        %3684 = vmatpush1.xpose.msra.mxu0 0.0
        %3685 = vmatprep.subr.mxu0 0.0
        %3686 = vmatpush1.xpose.msra.mxu0 0.0
        %3687 = vmatprep.subr.mxu0 0.0
        %3688 = vmatpush1.xpose.msra.mxu0 0.0
        %3689 = vmatprep.mubr.f32.mxu0 0.0
        %3690 = vmatmul.mubr.f32.gmra.mrb[0].mxu0 %v3552
        %v3691 = vpop.f32.mrb[0].mxu0
        %v3692 = vadd.f32 0.0, %v3691
        %v3693 = vpop.f32.mrb[0].mxu0
        %3694 = vdwg.mxu0
        %v3695 = vmul.f32 %v3692, 0.35355338
        %v3696 = vsel %vm718, -2.3819763e+38, %v3624
        %v3697 = vsel %vm717, -2.3819763e+38, %v3695
        %v3698 = vsel %vm1529, %v3138, -inf
        %3699 = vmax.xlane.f32.xlu0 %v3698
        %v3700 = vpop.xlane.xlu0 %3699
        %v3701 = vsel %vm1122, %v3696, -inf
        %3702 = vmax.xlane.f32.xlu0 %v3701
        %v3703 = vpop.xlane.xlu0 %3702
        %v3704 = vsel %vm1122, %v3697, -inf
        %3705 = vmax.xlane.f32.xlu0 %v3704
        %v3706 = vpop.xlane.xlu0 %3705
        %v3707 = vmax.f32 %v3703, %v3706
        %v3709 = vrot.slane %v3707, 4
        %v3711 = vmax.f32 %v3700, %v3709
        %3713 = vset.pattern.permute.xlu0 0
        %3714 = vperm.xlu0 %3713, %v3711
        %v3715 = vpop.permute.xlu0 %3714
        %v3717 = vsub.f32 %v3138, %v3715
        %v3718 = vmul.f32 %v3717, 1.442695
        %v3719 = vpow.pop %v3718
        %v3720 = vrot.slane %v3715, 4
        %v3722 = vsub.f32 %v3696, %v3720
        %v3723 = vmul.f32 %v3722, 1.442695
        %v3724 = vpow.pop %v3723
        %v3725 = vsub.f32 %v3697, %v3720
        %v3726 = vmul.f32 %v3725, 1.442695
        %v3727 = vpow.pop %v3726
        %v3728 = vsel %vm1529, %v3719, 0.0
        %3729 = vadd.xlane.f32.xlu0 %v3728
        %v3730 = vpop.xlane.xlu0 %3729
        %v3731 = vsel %vm1122, %v3724, 0.0
        %3732 = vadd.xlane.f32.xlu0 %v3731
        %v3733 = vpop.xlane.xlu0 %3732
        %v3735 = vrot.slane %v3733, 4
        %v3737 = vadd.f32 %v3730, %v3735
        %v3738 = vsel %vm1122, %v3727, 0.0
        %3739 = vadd.xlane.f32.xlu0 %v3738
        %v3740 = vpop.xlane.xlu0 %3739
        %v3742 = vrot.slane %v3740, 4
        %v3744 = vadd.f32 %v3737, %v3742
        %v3745 = vrcp.pop %v3744
        %v3747 = vsel %vm1155, %v3724, 0
        %3749 = vmatprep.subr.mxu0 0.0
        %3750 = vmatpush1.msra.mxu0 %v3476
        %3751 = vmatprep.subr.mxu0 0.0
        %3752 = vmatpush1.msra.mxu0 0.0
        %3753 = vmatprep.subr.mxu0 0.0
        %3754 = vmatpush1.msra.mxu0 0.0
        %3755 = vmatprep.subr.mxu0 0.0
        %3756 = vmatpush1.msra.mxu0 0.0
        %3757 = vmatprep.subr.mxu0 0.0
        %3758 = vmatpush1.msra.mxu0 0.0
        %3759 = vmatprep.subr.mxu0 0.0
        %3760 = vmatpush1.msra.mxu0 0.0
        %3761 = vmatprep.subr.mxu0 0.0
        %3762 = vmatpush1.msra.mxu0 0.0
        %3763 = vmatprep.subr.mxu0 0.0
        %3764 = vmatpush1.msra.mxu0 0.0
        %3765 = vmatprep.subr.mxu0 0.0
        %3766 = vmatpush1.msra.mxu0 0.0
        %3767 = vmatprep.subr.mxu0 0.0
        %3768 = vmatpush1.msra.mxu0 0.0
        %3769 = vmatprep.subr.mxu0 0.0
        %3770 = vmatpush1.msra.mxu0 0.0
        %3771 = vmatprep.subr.mxu0 0.0
        %3772 = vmatpush1.msra.mxu0 0.0
        %3773 = vmatprep.subr.mxu0 0.0
        %3774 = vmatpush1.msra.mxu0 0.0
        %3775 = vmatprep.subr.mxu0 0.0
        %3776 = vmatpush1.msra.mxu0 0.0
        %3777 = vmatprep.subr.mxu0 0.0
        %3778 = vmatpush1.msra.mxu0 0.0
        %3779 = vmatprep.subr.mxu0 0.0
        %3780 = vmatpush1.msra.mxu0 0.0
        %3781 = vmatprep.subr.mxu0 0.0
        %3782 = vmatpush1.msra.mxu0 0.0
        %3783 = vmatprep.subr.mxu0 0.0
        %3784 = vmatpush1.msra.mxu0 0.0
        %3785 = vmatprep.subr.mxu0 0.0
        %3786 = vmatpush1.msra.mxu0 0.0
        %3787 = vmatprep.subr.mxu0 0.0
        %3788 = vmatpush1.msra.mxu0 0.0
        %3789 = vmatprep.subr.mxu0 0.0
        %3790 = vmatpush1.msra.mxu0 0.0
        %3791 = vmatprep.subr.mxu0 0.0
        %3792 = vmatpush1.msra.mxu0 0.0
        %3793 = vmatprep.subr.mxu0 0.0
        %3794 = vmatpush1.msra.mxu0 0.0
        %3795 = vmatprep.subr.mxu0 0.0
        %3796 = vmatpush1.msra.mxu0 0.0
        %3797 = vmatprep.subr.mxu0 0.0
        %3798 = vmatpush1.msra.mxu0 0.0
        %3799 = vmatprep.subr.mxu0 0.0
        %3800 = vmatpush1.msra.mxu0 0.0
        %3801 = vmatprep.subr.mxu0 0.0
        %3802 = vmatpush1.msra.mxu0 0.0
        %3803 = vmatprep.subr.mxu0 0.0
        %3804 = vmatpush1.msra.mxu0 0.0
        %3805 = vmatprep.subr.mxu0 0.0
        %3806 = vmatpush1.msra.mxu0 0.0
        %3807 = vmatprep.subr.mxu0 0.0
        %3808 = vmatpush1.msra.mxu0 0.0
        %3809 = vmatprep.subr.mxu0 0.0
        %3810 = vmatpush1.msra.mxu0 0.0
        %3811 = vmatprep.subr.mxu0 0.0
        %3812 = vmatpush1.msra.mxu0 0.0
        %3813 = vmatprep.mubr.f32.mxu0 0.0
        %3814 = vmatmul.mubr.f32.gmra.mrb[0].mxu0 %v3747
        %v3815 = vpop.f32.mrb[0].mxu0
        %v3816 = vadd.f32 0.0, %v3815
        %v3817 = vpop.f32.mrb[0].mxu0
        %3818 = vdwg.mxu0
        %v3820 = vrot.slane %v3719, 4
        %v3821 = vsel %vm1155, %v3820, 0
        %3823 = vmatprep.subr.mxu0 0.0
        %3824 = vmatpush1.msra.mxu0 %v3399
        %3825 = vmatprep.subr.mxu0 0.0
        %3826 = vmatpush1.msra.mxu0 0.0
        %3827 = vmatprep.subr.mxu0 0.0
        %3828 = vmatpush1.msra.mxu0 0.0
        %3829 = vmatprep.subr.mxu0 0.0
        %3830 = vmatpush1.msra.mxu0 0.0
        %3831 = vmatprep.subr.mxu0 0.0
        %3832 = vmatpush1.msra.mxu0 0.0
        %3833 = vmatprep.subr.mxu0 0.0
        %3834 = vmatpush1.msra.mxu0 0.0
        %3835 = vmatprep.subr.mxu0 0.0
        %3836 = vmatpush1.msra.mxu0 0.0
        %3837 = vmatprep.subr.mxu0 0.0
        %3838 = vmatpush1.msra.mxu0 0.0
        %3839 = vmatprep.subr.mxu0 0.0
        %3840 = vmatpush1.msra.mxu0 0.0
        %3841 = vmatprep.subr.mxu0 0.0
        %3842 = vmatpush1.msra.mxu0 0.0
        %3843 = vmatprep.subr.mxu0 0.0
        %3844 = vmatpush1.msra.mxu0 0.0
        %3845 = vmatprep.subr.mxu0 0.0
        %3846 = vmatpush1.msra.mxu0 0.0
        %3847 = vmatprep.subr.mxu0 0.0
        %3848 = vmatpush1.msra.mxu0 0.0
        %3849 = vmatprep.subr.mxu0 0.0
        %3850 = vmatpush1.msra.mxu0 0.0
        %3851 = vmatprep.subr.mxu0 0.0
        %3852 = vmatpush1.msra.mxu0 0.0
        %3853 = vmatprep.subr.mxu0 0.0
        %3854 = vmatpush1.msra.mxu0 0.0
        %3855 = vmatprep.subr.mxu0 0.0
        %3856 = vmatpush1.msra.mxu0 0.0
        %3857 = vmatprep.subr.mxu0 0.0
        %3858 = vmatpush1.msra.mxu0 0.0
        %3859 = vmatprep.subr.mxu0 0.0
        %3860 = vmatpush1.msra.mxu0 0.0
        %3861 = vmatprep.subr.mxu0 0.0
        %3862 = vmatpush1.msra.mxu0 0.0
        %3863 = vmatprep.subr.mxu0 0.0
        %3864 = vmatpush1.msra.mxu0 0.0
        %3865 = vmatprep.subr.mxu0 0.0
        %3866 = vmatpush1.msra.mxu0 0.0
        %3867 = vmatprep.subr.mxu0 0.0
        %3868 = vmatpush1.msra.mxu0 0.0
        %3869 = vmatprep.subr.mxu0 0.0
        %3870 = vmatpush1.msra.mxu0 0.0
        %3871 = vmatprep.subr.mxu0 0.0
        %3872 = vmatpush1.msra.mxu0 0.0
        %3873 = vmatprep.subr.mxu0 0.0
        %3874 = vmatpush1.msra.mxu0 0.0
        %3875 = vmatprep.subr.mxu0 0.0
        %3876 = vmatpush1.msra.mxu0 0.0
        %3877 = vmatprep.subr.mxu0 0.0
        %3878 = vmatpush1.msra.mxu0 0.0
        %3879 = vmatprep.subr.mxu0 0.0
        %3880 = vmatpush1.msra.mxu0 0.0
        %3881 = vmatprep.subr.mxu0 0.0
        %3882 = vmatpush1.msra.mxu0 0.0
        %3883 = vmatprep.subr.mxu0 0.0
        %3884 = vmatpush1.msra.mxu0 0.0
        %3885 = vmatprep.subr.mxu0 0.0
        %3886 = vmatpush1.msra.mxu0 0.0
        %3887 = vmatprep.mubr.f32.mxu0 0.0
        %3888 = vmatmul.mubr.f32.gmra.mrb[0].mxu0 %v3821
        %v3889 = vpop.f32.mrb[0].mxu0
        %v3890 = vadd.f32 %v3816, %v3889
        %v3891 = vpop.f32.mrb[0].mxu0
        %3892 = vdwg.mxu0
        %v3894 = vsel %vm1155, %v3727, 0
        %3896 = vmatprep.subr.mxu0 0.0
        %3897 = vmatpush1.msra.mxu0 %v2992
        %3898 = vmatprep.subr.mxu0 0.0
        %3899 = vmatpush1.msra.mxu0 0.0
        %3900 = vmatprep.subr.mxu0 0.0
        %3901 = vmatpush1.msra.mxu0 0.0
        %3902 = vmatprep.subr.mxu0 0.0
        %3903 = vmatpush1.msra.mxu0 0.0
        %3904 = vmatprep.subr.mxu0 0.0
        %3905 = vmatpush1.msra.mxu0 0.0
        %3906 = vmatprep.subr.mxu0 0.0
        %3907 = vmatpush1.msra.mxu0 0.0
        %3908 = vmatprep.subr.mxu0 0.0
        %3909 = vmatpush1.msra.mxu0 0.0
        %3910 = vmatprep.subr.mxu0 0.0
        %3911 = vmatpush1.msra.mxu0 0.0
        %3912 = vmatprep.subr.mxu0 0.0
        %3913 = vmatpush1.msra.mxu0 0.0
        %3914 = vmatprep.subr.mxu0 0.0
        %3915 = vmatpush1.msra.mxu0 0.0
        %3916 = vmatprep.subr.mxu0 0.0
        %3917 = vmatpush1.msra.mxu0 0.0
        %3918 = vmatprep.subr.mxu0 0.0
        %3919 = vmatpush1.msra.mxu0 0.0
        %3920 = vmatprep.subr.mxu0 0.0
        %3921 = vmatpush1.msra.mxu0 0.0
        %3922 = vmatprep.subr.mxu0 0.0
        %3923 = vmatpush1.msra.mxu0 0.0
        %3924 = vmatprep.subr.mxu0 0.0
        %3925 = vmatpush1.msra.mxu0 0.0
        %3926 = vmatprep.subr.mxu0 0.0
        %3927 = vmatpush1.msra.mxu0 0.0
        %3928 = vmatprep.subr.mxu0 0.0
        %3929 = vmatpush1.msra.mxu0 0.0
        %3930 = vmatprep.subr.mxu0 0.0
        %3931 = vmatpush1.msra.mxu0 0.0
        %3932 = vmatprep.subr.mxu0 0.0
        %3933 = vmatpush1.msra.mxu0 0.0
        %3934 = vmatprep.subr.mxu0 0.0
        %3935 = vmatpush1.msra.mxu0 0.0
        %3936 = vmatprep.subr.mxu0 0.0
        %3937 = vmatpush1.msra.mxu0 0.0
        %3938 = vmatprep.subr.mxu0 0.0
        %3939 = vmatpush1.msra.mxu0 0.0
        %3940 = vmatprep.subr.mxu0 0.0
        %3941 = vmatpush1.msra.mxu0 0.0
        %3942 = vmatprep.subr.mxu0 0.0
        %3943 = vmatpush1.msra.mxu0 0.0
        %3944 = vmatprep.subr.mxu0 0.0
        %3945 = vmatpush1.msra.mxu0 0.0
        %3946 = vmatprep.subr.mxu0 0.0
        %3947 = vmatpush1.msra.mxu0 0.0
        %3948 = vmatprep.subr.mxu0 0.0
        %3949 = vmatpush1.msra.mxu0 0.0
        %3950 = vmatprep.subr.mxu0 0.0
        %3951 = vmatpush1.msra.mxu0 0.0
        %3952 = vmatprep.subr.mxu0 0.0
        %3953 = vmatpush1.msra.mxu0 0.0
        %3954 = vmatprep.subr.mxu0 0.0
        %3955 = vmatpush1.msra.mxu0 0.0
        %3956 = vmatprep.subr.mxu0 0.0
        %3957 = vmatpush1.msra.mxu0 0.0
        %3958 = vmatprep.subr.mxu0 0.0
        %3959 = vmatpush1.msra.mxu0 0.0
        %3960 = vmatprep.mubr.f32.mxu0 0.0
        %3961 = vmatmul.mubr.f32.gmra.mrb[0].mxu0 %v3894
        %v3962 = vpop.f32.mrb[0].mxu0
        %v3963 = vadd.f32 0.0, %v3962
        %v3964 = vpop.f32.mrb[0].mxu0
        %3965 = vdwg.mxu0
        %v3966 = vadd.f32 %v3890, %v3963
        %3968 = vset.pattern.permute.xlu0 0
        %3969 = vperm.xlu0 %3968, %v3745
        %v3970 = vpop.permute.xlu0 %3969
        %v3971 = vrot.slane %v3970, 4
        %v3973 = vmul.f32 %v3966, %v3971
        %3974 = vrot.lane.b32.xlu0 %v719, 104
        %v3975 = vpop.permute.xlu0 %3974
        %3976 = vrot.lane.b32.xlu0 %v721, 104
        %v3977 = vpop.permute.xlu0 %3976
        %3978 = vrot.lane.b32.xlu0 %v722, 104
        %v3979 = vpop.permute.xlu0 %3978
        %v3980 = vsel %vm725, %v3975, 0
        %v3982 = vsel %vm725, %v3977, 0
        %v3984 = vsel %vm725, %v3979, 0
        %3986 = vmatprep.subr.mxu0 0.0
        %3987 = vmatpush1.xpose.msra.mxu0 %v3982
        %3988 = vmatprep.subr.mxu0 0.0
        %3989 = vmatpush1.xpose.msra.mxu0 %v3984
        %3990 = vmatprep.subr.mxu0 0.0
        %3991 = vmatpush1.xpose.msra.mxu0 0.0
        %3992 = vmatprep.subr.mxu0 0.0
        %3993 = vmatpush1.xpose.msra.mxu0 0.0
        %3994 = vmatprep.subr.mxu0 0.0
        %3995 = vmatpush1.xpose.msra.mxu0 0.0
        %3996 = vmatprep.subr.mxu0 0.0
        %3997 = vmatpush1.xpose.msra.mxu0 0.0
        %3998 = vmatprep.subr.mxu0 0.0
        %3999 = vmatpush1.xpose.msra.mxu0 0.0
        %4000 = vmatprep.subr.mxu0 0.0
        %4001 = vmatpush1.xpose.msra.mxu0 0.0
        %4002 = vmatprep.subr.mxu0 0.0
        %4003 = vmatpush1.xpose.msra.mxu0 0.0
        %4004 = vmatprep.subr.mxu0 0.0
        %4005 = vmatpush1.xpose.msra.mxu0 0.0
        %4006 = vmatprep.subr.mxu0 0.0
        %4007 = vmatpush1.xpose.msra.mxu0 0.0
        %4008 = vmatprep.subr.mxu0 0.0
        %4009 = vmatpush1.xpose.msra.mxu0 0.0
        %4010 = vmatprep.subr.mxu0 0.0
        %4011 = vmatpush1.xpose.msra.mxu0 0.0
        %4012 = vmatprep.subr.mxu0 0.0
        %4013 = vmatpush1.xpose.msra.mxu0 0.0
        %4014 = vmatprep.subr.mxu0 0.0
        %4015 = vmatpush1.xpose.msra.mxu0 0.0
        %4016 = vmatprep.subr.mxu0 0.0
        %4017 = vmatpush1.xpose.msra.mxu0 0.0
        %4018 = vmatprep.subr.mxu0 0.0
        %4019 = vmatpush1.xpose.msra.mxu0 0.0
        %4020 = vmatprep.subr.mxu0 0.0
        %4021 = vmatpush1.xpose.msra.mxu0 0.0
        %4022 = vmatprep.subr.mxu0 0.0
        %4023 = vmatpush1.xpose.msra.mxu0 0.0
        %4024 = vmatprep.subr.mxu0 0.0
        %4025 = vmatpush1.xpose.msra.mxu0 0.0
        %4026 = vmatprep.subr.mxu0 0.0
        %4027 = vmatpush1.xpose.msra.mxu0 0.0
        %4028 = vmatprep.subr.mxu0 0.0
        %4029 = vmatpush1.xpose.msra.mxu0 0.0
        %4030 = vmatprep.subr.mxu0 0.0
        %4031 = vmatpush1.xpose.msra.mxu0 0.0
        %4032 = vmatprep.subr.mxu0 0.0
        %4033 = vmatpush1.xpose.msra.mxu0 0.0
        %4034 = vmatprep.subr.mxu0 0.0
        %4035 = vmatpush1.xpose.msra.mxu0 0.0
        %4036 = vmatprep.subr.mxu0 0.0
        %4037 = vmatpush1.xpose.msra.mxu0 0.0
        %4038 = vmatprep.subr.mxu0 0.0
        %4039 = vmatpush1.xpose.msra.mxu0 0.0
        %4040 = vmatprep.subr.mxu0 0.0
        %4041 = vmatpush1.xpose.msra.mxu0 0.0
        %4042 = vmatprep.subr.mxu0 0.0
        %4043 = vmatpush1.xpose.msra.mxu0 0.0
        %4044 = vmatprep.subr.mxu0 0.0
        %4045 = vmatpush1.xpose.msra.mxu0 0.0
        %4046 = vmatprep.subr.mxu0 0.0
        %4047 = vmatpush1.xpose.msra.mxu0 0.0
        %4048 = vmatprep.subr.mxu0 0.0
        %4049 = vmatpush1.xpose.msra.mxu0 0.0
        %4050 = vmatprep.mubr.f32.mxu0 0.0
        %4051 = vmatmul.mubr.f32.gmra.mrb[0].mxu0 %v3980
        %v4052 = vpop.f32.mrb[0].mxu0
        %v4053 = vadd.f32 0.0, %v4052
        %v4054 = vpop.f32.mrb[0].mxu0
        %4055 = vdwg.mxu0
        %v4056 = vmul.f32 %v4053, 0.35355338
        %v4057 = vsel %vm806, %v4056, -inf
        %4058 = vmax.xlane.f32.xlu0 %v4057
        %v4059 = vpop.xlane.xlu0 %4058
        %v4060 = vsub.f32 %v4056, %v4059
        %v4061 = vmul.f32 %v4060, 1.442695
        %v4062 = vpow.pop %v4061
        %v4063 = vsel %vm806, %v4062, 0.0
        %4064 = vadd.xlane.f32.xlu0 %v4063
        %v4065 = vpop.xlane.xlu0 %4064
        %v4066 = vrcp.pop %v4065
        %v4067 = vmul.f32 %v4062, %v4066
        %4068 = vrot.lane.b32.xlu0 %v723, 104
        %v4069 = vpop.permute.xlu0 %4068
        %4070 = vrot.lane.b32.xlu0 %v724, 104
        %v4071 = vpop.permute.xlu0 %4070
        %v4074 = vsel %vm818, %v4067, 0
        %v4076 = vsel %vm822, %v4071, 0
        %4078 = vmatprep.subr.mxu0 0.0
        %4079 = vmatpush1.msra.mxu0 %v4069
        %4080 = vmatprep.subr.mxu0 0.0
        %4081 = vmatpush1.msra.mxu0 %v4076
        %4082 = vmatprep.subr.mxu0 0.0
        %4083 = vmatpush1.msra.mxu0 0.0
        %4084 = vmatprep.subr.mxu0 0.0
        %4085 = vmatpush1.msra.mxu0 0.0
        %4086 = vmatprep.subr.mxu0 0.0
        %4087 = vmatpush1.msra.mxu0 0.0
        %4088 = vmatprep.subr.mxu0 0.0
        %4089 = vmatpush1.msra.mxu0 0.0
        %4090 = vmatprep.subr.mxu0 0.0
        %4091 = vmatpush1.msra.mxu0 0.0
        %4092 = vmatprep.subr.mxu0 0.0
        %4093 = vmatpush1.msra.mxu0 0.0
        %4094 = vmatprep.subr.mxu0 0.0
        %4095 = vmatpush1.msra.mxu0 0.0
        %4096 = vmatprep.subr.mxu0 0.0
        %4097 = vmatpush1.msra.mxu0 0.0
        %4098 = vmatprep.subr.mxu0 0.0
        %4099 = vmatpush1.msra.mxu0 0.0
        %4100 = vmatprep.subr.mxu0 0.0
        %4101 = vmatpush1.msra.mxu0 0.0
        %4102 = vmatprep.subr.mxu0 0.0
        %4103 = vmatpush1.msra.mxu0 0.0
        %4104 = vmatprep.subr.mxu0 0.0
        %4105 = vmatpush1.msra.mxu0 0.0
        %4106 = vmatprep.subr.mxu0 0.0
        %4107 = vmatpush1.msra.mxu0 0.0
        %4108 = vmatprep.subr.mxu0 0.0
        %4109 = vmatpush1.msra.mxu0 0.0
        %4110 = vmatprep.subr.mxu0 0.0
        %4111 = vmatpush1.msra.mxu0 0.0
        %4112 = vmatprep.subr.mxu0 0.0
        %4113 = vmatpush1.msra.mxu0 0.0
        %4114 = vmatprep.subr.mxu0 0.0
        %4115 = vmatpush1.msra.mxu0 0.0
        %4116 = vmatprep.subr.mxu0 0.0
        %4117 = vmatpush1.msra.mxu0 0.0
        %4118 = vmatprep.subr.mxu0 0.0
        %4119 = vmatpush1.msra.mxu0 0.0
        %4120 = vmatprep.subr.mxu0 0.0
        %4121 = vmatpush1.msra.mxu0 0.0
        %4122 = vmatprep.subr.mxu0 0.0
        %4123 = vmatpush1.msra.mxu0 0.0
        %4124 = vmatprep.subr.mxu0 0.0
        %4125 = vmatpush1.msra.mxu0 0.0
        %4126 = vmatprep.subr.mxu0 0.0
        %4127 = vmatpush1.msra.mxu0 0.0
        %4128 = vmatprep.subr.mxu0 0.0
        %4129 = vmatpush1.msra.mxu0 0.0
        %4130 = vmatprep.subr.mxu0 0.0
        %4131 = vmatpush1.msra.mxu0 0.0
        %4132 = vmatprep.subr.mxu0 0.0
        %4133 = vmatpush1.msra.mxu0 0.0
        %4134 = vmatprep.subr.mxu0 0.0
        %4135 = vmatpush1.msra.mxu0 0.0
        %4136 = vmatprep.subr.mxu0 0.0
        %4137 = vmatpush1.msra.mxu0 0.0
        %4138 = vmatprep.subr.mxu0 0.0
        %4139 = vmatpush1.msra.mxu0 0.0
        %4140 = vmatprep.subr.mxu0 0.0
        %4141 = vmatpush1.msra.mxu0 0.0
        %4142 = vmatprep.mubr.f32.mxu0 0.0
        %4143 = vmatmul.mubr.f32.gmra.mrb[0].mxu0 %v4074
        %v4144 = vpop.f32.mrb[0].mxu0
        %v4145 = vadd.f32 0.0, %v4144
        %v4146 = vpop.f32.mrb[0].mxu0
        %4147 = vdwg.mxu0
        %4148 = vrot.lane.b32.xlu0 %v899, 104
        %v4149 = vpop.permute.xlu0 %4148
        %v4150 = vsel %vm725, %v4149, 0
        %4152 = vmatprep.subr.mxu0 0.0
        %4153 = vmatpush1.xpose.msra.mxu0 %v3982
        %4154 = vmatprep.subr.mxu0 0.0
        %4155 = vmatpush1.xpose.msra.mxu0 0.0
        %4156 = vmatprep.subr.mxu0 0.0
        %4157 = vmatpush1.xpose.msra.mxu0 0.0
        %4158 = vmatprep.subr.mxu0 0.0
        %4159 = vmatpush1.xpose.msra.mxu0 0.0
        %4160 = vmatprep.subr.mxu0 0.0
        %4161 = vmatpush1.xpose.msra.mxu0 0.0
        %4162 = vmatprep.subr.mxu0 0.0
        %4163 = vmatpush1.xpose.msra.mxu0 0.0
        %4164 = vmatprep.subr.mxu0 0.0
        %4165 = vmatpush1.xpose.msra.mxu0 0.0
        %4166 = vmatprep.subr.mxu0 0.0
        %4167 = vmatpush1.xpose.msra.mxu0 0.0
        %4168 = vmatprep.subr.mxu0 0.0
        %4169 = vmatpush1.xpose.msra.mxu0 0.0
        %4170 = vmatprep.subr.mxu0 0.0
        %4171 = vmatpush1.xpose.msra.mxu0 0.0
        %4172 = vmatprep.subr.mxu0 0.0
        %4173 = vmatpush1.xpose.msra.mxu0 0.0
        %4174 = vmatprep.subr.mxu0 0.0
        %4175 = vmatpush1.xpose.msra.mxu0 0.0
        %4176 = vmatprep.subr.mxu0 0.0
        %4177 = vmatpush1.xpose.msra.mxu0 0.0
        %4178 = vmatprep.subr.mxu0 0.0
        %4179 = vmatpush1.xpose.msra.mxu0 0.0
        %4180 = vmatprep.subr.mxu0 0.0
        %4181 = vmatpush1.xpose.msra.mxu0 0.0
        %4182 = vmatprep.subr.mxu0 0.0
        %4183 = vmatpush1.xpose.msra.mxu0 0.0
        %4184 = vmatprep.subr.mxu0 0.0
        %4185 = vmatpush1.xpose.msra.mxu0 0.0
        %4186 = vmatprep.subr.mxu0 0.0
        %4187 = vmatpush1.xpose.msra.mxu0 0.0
        %4188 = vmatprep.subr.mxu0 0.0
        %4189 = vmatpush1.xpose.msra.mxu0 0.0
        %4190 = vmatprep.subr.mxu0 0.0
        %4191 = vmatpush1.xpose.msra.mxu0 0.0
        %4192 = vmatprep.subr.mxu0 0.0
        %4193 = vmatpush1.xpose.msra.mxu0 0.0
        %4194 = vmatprep.subr.mxu0 0.0
        %4195 = vmatpush1.xpose.msra.mxu0 0.0
        %4196 = vmatprep.subr.mxu0 0.0
        %4197 = vmatpush1.xpose.msra.mxu0 0.0
        %4198 = vmatprep.subr.mxu0 0.0
        %4199 = vmatpush1.xpose.msra.mxu0 0.0
        %4200 = vmatprep.subr.mxu0 0.0
        %4201 = vmatpush1.xpose.msra.mxu0 0.0
        %4202 = vmatprep.subr.mxu0 0.0
        %4203 = vmatpush1.xpose.msra.mxu0 0.0
        %4204 = vmatprep.subr.mxu0 0.0
        %4205 = vmatpush1.xpose.msra.mxu0 0.0
        %4206 = vmatprep.subr.mxu0 0.0
        %4207 = vmatpush1.xpose.msra.mxu0 0.0
        %4208 = vmatprep.subr.mxu0 0.0
        %4209 = vmatpush1.xpose.msra.mxu0 0.0
        %4210 = vmatprep.subr.mxu0 0.0
        %4211 = vmatpush1.xpose.msra.mxu0 0.0
        %4212 = vmatprep.subr.mxu0 0.0
        %4213 = vmatpush1.xpose.msra.mxu0 0.0
        %4214 = vmatprep.subr.mxu0 0.0
        %4215 = vmatpush1.xpose.msra.mxu0 0.0
        %4216 = vmatprep.mubr.f32.mxu0 0.0
        %4217 = vmatmul.mubr.f32.gmra.mrb[0].mxu0 %v4150
        %v4218 = vpop.f32.mrb[0].mxu0
        %v4219 = vadd.f32 0.0, %v4218
        %v4220 = vpop.f32.mrb[0].mxu0
        %4221 = vdwg.mxu0
        %v4222 = vmul.f32 %v4219, 0.35355338
        %4223 = vrot.lane.b32.xlu0 %v897, 104
        %v4224 = vpop.permute.xlu0 %4223
        %v4225 = vsel %vm725, %v4224, 0
        %4227 = vmatprep.subr.mxu0 0.0
        %4228 = vmatpush1.xpose.msra.mxu0 %v3984
        %4229 = vmatprep.subr.mxu0 0.0
        %4230 = vmatpush1.xpose.msra.mxu0 0.0
        %4231 = vmatprep.subr.mxu0 0.0
        %4232 = vmatpush1.xpose.msra.mxu0 0.0
        %4233 = vmatprep.subr.mxu0 0.0
        %4234 = vmatpush1.xpose.msra.mxu0 0.0
        %4235 = vmatprep.subr.mxu0 0.0
        %4236 = vmatpush1.xpose.msra.mxu0 0.0
        %4237 = vmatprep.subr.mxu0 0.0
        %4238 = vmatpush1.xpose.msra.mxu0 0.0
        %4239 = vmatprep.subr.mxu0 0.0
        %4240 = vmatpush1.xpose.msra.mxu0 0.0
        %4241 = vmatprep.subr.mxu0 0.0
        %4242 = vmatpush1.xpose.msra.mxu0 0.0
        %4243 = vmatprep.subr.mxu0 0.0
        %4244 = vmatpush1.xpose.msra.mxu0 0.0
        %4245 = vmatprep.subr.mxu0 0.0
        %4246 = vmatpush1.xpose.msra.mxu0 0.0
        %4247 = vmatprep.subr.mxu0 0.0
        %4248 = vmatpush1.xpose.msra.mxu0 0.0
        %4249 = vmatprep.subr.mxu0 0.0
        %4250 = vmatpush1.xpose.msra.mxu0 0.0
        %4251 = vmatprep.subr.mxu0 0.0
        %4252 = vmatpush1.xpose.msra.mxu0 0.0
        %4253 = vmatprep.subr.mxu0 0.0
        %4254 = vmatpush1.xpose.msra.mxu0 0.0
        %4255 = vmatprep.subr.mxu0 0.0
        %4256 = vmatpush1.xpose.msra.mxu0 0.0
        %4257 = vmatprep.subr.mxu0 0.0
        %4258 = vmatpush1.xpose.msra.mxu0 0.0
        %4259 = vmatprep.subr.mxu0 0.0
        %4260 = vmatpush1.xpose.msra.mxu0 0.0
        %4261 = vmatprep.subr.mxu0 0.0
        %4262 = vmatpush1.xpose.msra.mxu0 0.0
        %4263 = vmatprep.subr.mxu0 0.0
        %4264 = vmatpush1.xpose.msra.mxu0 0.0
        %4265 = vmatprep.subr.mxu0 0.0
        %4266 = vmatpush1.xpose.msra.mxu0 0.0
        %4267 = vmatprep.subr.mxu0 0.0
        %4268 = vmatpush1.xpose.msra.mxu0 0.0
        %4269 = vmatprep.subr.mxu0 0.0
        %4270 = vmatpush1.xpose.msra.mxu0 0.0
        %4271 = vmatprep.subr.mxu0 0.0
        %4272 = vmatpush1.xpose.msra.mxu0 0.0
        %4273 = vmatprep.subr.mxu0 0.0
        %4274 = vmatpush1.xpose.msra.mxu0 0.0
        %4275 = vmatprep.subr.mxu0 0.0
        %4276 = vmatpush1.xpose.msra.mxu0 0.0
        %4277 = vmatprep.subr.mxu0 0.0
        %4278 = vmatpush1.xpose.msra.mxu0 0.0
        %4279 = vmatprep.subr.mxu0 0.0
        %4280 = vmatpush1.xpose.msra.mxu0 0.0
        %4281 = vmatprep.subr.mxu0 0.0
        %4282 = vmatpush1.xpose.msra.mxu0 0.0
        %4283 = vmatprep.subr.mxu0 0.0
        %4284 = vmatpush1.xpose.msra.mxu0 0.0
        %4285 = vmatprep.subr.mxu0 0.0
        %4286 = vmatpush1.xpose.msra.mxu0 0.0
        %4287 = vmatprep.subr.mxu0 0.0
        %4288 = vmatpush1.xpose.msra.mxu0 0.0
        %4289 = vmatprep.subr.mxu0 0.0
        %4290 = vmatpush1.xpose.msra.mxu0 0.0
        %4291 = vmatprep.mubr.f32.mxu0 0.0
        %4292 = vmatmul.mubr.f32.gmra.mrb[0].mxu0 %v4225
        %v4293 = vpop.f32.mrb[0].mxu0
        %v4294 = vadd.f32 0.0, %v4293
        %v4295 = vpop.f32.mrb[0].mxu0
        %4296 = vdwg.mxu0
        %v4297 = vmul.f32 %v4294, 0.35355338
        %4298 = vrot.lane.b32.xlu0 %v1046, 104
        %v4299 = vpop.permute.xlu0 %4298
        %v4300 = vsel %vm725, %v4299, 0
        %4302 = vmatprep.subr.mxu0 0.0
        %4303 = vmatpush1.xpose.msra.mxu0 %v4300
        %4304 = vmatprep.subr.mxu0 0.0
        %4305 = vmatpush1.xpose.msra.mxu0 0.0
        %4306 = vmatprep.subr.mxu0 0.0
        %4307 = vmatpush1.xpose.msra.mxu0 0.0
        %4308 = vmatprep.subr.mxu0 0.0
        %4309 = vmatpush1.xpose.msra.mxu0 0.0
        %4310 = vmatprep.subr.mxu0 0.0
        %4311 = vmatpush1.xpose.msra.mxu0 0.0
        %4312 = vmatprep.subr.mxu0 0.0
        %4313 = vmatpush1.xpose.msra.mxu0 0.0
        %4314 = vmatprep.subr.mxu0 0.0
        %4315 = vmatpush1.xpose.msra.mxu0 0.0
        %4316 = vmatprep.subr.mxu0 0.0
        %4317 = vmatpush1.xpose.msra.mxu0 0.0
        %4318 = vmatprep.subr.mxu0 0.0
        %4319 = vmatpush1.xpose.msra.mxu0 0.0
        %4320 = vmatprep.subr.mxu0 0.0
        %4321 = vmatpush1.xpose.msra.mxu0 0.0
        %4322 = vmatprep.subr.mxu0 0.0
        %4323 = vmatpush1.xpose.msra.mxu0 0.0
        %4324 = vmatprep.subr.mxu0 0.0
        %4325 = vmatpush1.xpose.msra.mxu0 0.0
        %4326 = vmatprep.subr.mxu0 0.0
        %4327 = vmatpush1.xpose.msra.mxu0 0.0
        %4328 = vmatprep.subr.mxu0 0.0
        %4329 = vmatpush1.xpose.msra.mxu0 0.0
        %4330 = vmatprep.subr.mxu0 0.0
        %4331 = vmatpush1.xpose.msra.mxu0 0.0
        %4332 = vmatprep.subr.mxu0 0.0
        %4333 = vmatpush1.xpose.msra.mxu0 0.0
        %4334 = vmatprep.subr.mxu0 0.0
        %4335 = vmatpush1.xpose.msra.mxu0 0.0
        %4336 = vmatprep.subr.mxu0 0.0
        %4337 = vmatpush1.xpose.msra.mxu0 0.0
        %4338 = vmatprep.subr.mxu0 0.0
        %4339 = vmatpush1.xpose.msra.mxu0 0.0
        %4340 = vmatprep.subr.mxu0 0.0
        %4341 = vmatpush1.xpose.msra.mxu0 0.0
        %4342 = vmatprep.subr.mxu0 0.0
        %4343 = vmatpush1.xpose.msra.mxu0 0.0
        %4344 = vmatprep.subr.mxu0 0.0
        %4345 = vmatpush1.xpose.msra.mxu0 0.0
        %4346 = vmatprep.subr.mxu0 0.0
        %4347 = vmatpush1.xpose.msra.mxu0 0.0
        %4348 = vmatprep.subr.mxu0 0.0
        %4349 = vmatpush1.xpose.msra.mxu0 0.0
        %4350 = vmatprep.subr.mxu0 0.0
        %4351 = vmatpush1.xpose.msra.mxu0 0.0
        %4352 = vmatprep.subr.mxu0 0.0
        %4353 = vmatpush1.xpose.msra.mxu0 0.0
        %4354 = vmatprep.subr.mxu0 0.0
        %4355 = vmatpush1.xpose.msra.mxu0 0.0
        %4356 = vmatprep.subr.mxu0 0.0
        %4357 = vmatpush1.xpose.msra.mxu0 0.0
        %4358 = vmatprep.subr.mxu0 0.0
        %4359 = vmatpush1.xpose.msra.mxu0 0.0
        %4360 = vmatprep.subr.mxu0 0.0
        %4361 = vmatpush1.xpose.msra.mxu0 0.0
        %4362 = vmatprep.subr.mxu0 0.0
        %4363 = vmatpush1.xpose.msra.mxu0 0.0
        %4364 = vmatprep.subr.mxu0 0.0
        %4365 = vmatpush1.xpose.msra.mxu0 0.0
        %4366 = vmatprep.mubr.f32.mxu0 0.0
        %4367 = vmatmul.mubr.f32.gmra.mrb[0].mxu0 %v4225
        %v4368 = vpop.f32.mrb[0].mxu0
        %v4369 = vadd.f32 0.0, %v4368
        %v4370 = vpop.f32.mrb[0].mxu0
        %4371 = vdwg.mxu0
        %v4372 = vmul.f32 %v4369, 0.35355338
        %v4373 = vsel %vm711, -2.3819763e+38, %v4297
        %v4374 = vsel %vm704, -2.3819763e+38, %v4372
        %v4375 = vsel %vm1122, %v4222, -inf
        %4376 = vmax.xlane.f32.xlu0 %v4375
        %v4377 = vpop.xlane.xlu0 %4376
        %v4378 = vsel %vm1122, %v4373, -inf
        %4379 = vmax.xlane.f32.xlu0 %v4378
        %v4380 = vpop.xlane.xlu0 %4379
        %v4381 = vsel %vm1122, %v4374, -inf
        %4382 = vmax.xlane.f32.xlu0 %v4381
        %v4383 = vpop.xlane.xlu0 %4382
        %v4384 = vmax.f32 %v4380, %v4383
        %v4385 = vmax.f32 %v4377, %v4384
        %v4386 = vsub.f32 %v4222, %v4385
        %v4387 = vmul.f32 %v4386, 1.442695
        %v4388 = vpow.pop %v4387
        %v4389 = vsub.f32 %v4373, %v4385
        %v4390 = vmul.f32 %v4389, 1.442695
        %v4391 = vpow.pop %v4390
        %v4392 = vsub.f32 %v4374, %v4385
        %v4393 = vmul.f32 %v4392, 1.442695
        %v4394 = vpow.pop %v4393
        %v4395 = vsel %vm1122, %v4388, 0.0
        %4396 = vadd.xlane.f32.xlu0 %v4395
        %v4397 = vpop.xlane.xlu0 %4396
        %v4398 = vsel %vm1122, %v4391, 0.0
        %4399 = vadd.xlane.f32.xlu0 %v4398
        %v4400 = vpop.xlane.xlu0 %4399
        %v4401 = vadd.f32 %v4397, %v4400
        %v4402 = vsel %vm1122, %v4394, 0.0
        %4403 = vadd.xlane.f32.xlu0 %v4402
        %v4404 = vpop.xlane.xlu0 %4403
        %v4405 = vadd.f32 %v4401, %v4404
        %v4406 = vrcp.pop %v4405
        %v4408 = vsel %vm1155, %v4391, 0
        %4410 = vmatprep.subr.mxu0 0.0
        %4411 = vmatpush1.msra.mxu0 %v4076
        %4412 = vmatprep.subr.mxu0 0.0
        %4413 = vmatpush1.msra.mxu0 0.0
        %4414 = vmatprep.subr.mxu0 0.0
        %4415 = vmatpush1.msra.mxu0 0.0
        %4416 = vmatprep.subr.mxu0 0.0
        %4417 = vmatpush1.msra.mxu0 0.0
        %4418 = vmatprep.subr.mxu0 0.0
        %4419 = vmatpush1.msra.mxu0 0.0
        %4420 = vmatprep.subr.mxu0 0.0
        %4421 = vmatpush1.msra.mxu0 0.0
        %4422 = vmatprep.subr.mxu0 0.0
        %4423 = vmatpush1.msra.mxu0 0.0
        %4424 = vmatprep.subr.mxu0 0.0
        %4425 = vmatpush1.msra.mxu0 0.0
        %4426 = vmatprep.subr.mxu0 0.0
        %4427 = vmatpush1.msra.mxu0 0.0
        %4428 = vmatprep.subr.mxu0 0.0
        %4429 = vmatpush1.msra.mxu0 0.0
        %4430 = vmatprep.subr.mxu0 0.0
        %4431 = vmatpush1.msra.mxu0 0.0
        %4432 = vmatprep.subr.mxu0 0.0
        %4433 = vmatpush1.msra.mxu0 0.0
        %4434 = vmatprep.subr.mxu0 0.0
        %4435 = vmatpush1.msra.mxu0 0.0
        %4436 = vmatprep.subr.mxu0 0.0
        %4437 = vmatpush1.msra.mxu0 0.0
        %4438 = vmatprep.subr.mxu0 0.0
        %4439 = vmatpush1.msra.mxu0 0.0
        %4440 = vmatprep.subr.mxu0 0.0
        %4441 = vmatpush1.msra.mxu0 0.0
        %4442 = vmatprep.subr.mxu0 0.0
        %4443 = vmatpush1.msra.mxu0 0.0
        %4444 = vmatprep.subr.mxu0 0.0
        %4445 = vmatpush1.msra.mxu0 0.0
        %4446 = vmatprep.subr.mxu0 0.0
        %4447 = vmatpush1.msra.mxu0 0.0
        %4448 = vmatprep.subr.mxu0 0.0
        %4449 = vmatpush1.msra.mxu0 0.0
        %4450 = vmatprep.subr.mxu0 0.0
        %4451 = vmatpush1.msra.mxu0 0.0
        %4452 = vmatprep.subr.mxu0 0.0
        %4453 = vmatpush1.msra.mxu0 0.0
        %4454 = vmatprep.subr.mxu0 0.0
        %4455 = vmatpush1.msra.mxu0 0.0
        %4456 = vmatprep.subr.mxu0 0.0
        %4457 = vmatpush1.msra.mxu0 0.0
        %4458 = vmatprep.subr.mxu0 0.0
        %4459 = vmatpush1.msra.mxu0 0.0
        %4460 = vmatprep.subr.mxu0 0.0
        %4461 = vmatpush1.msra.mxu0 0.0
        %4462 = vmatprep.subr.mxu0 0.0
        %4463 = vmatpush1.msra.mxu0 0.0
        %4464 = vmatprep.subr.mxu0 0.0
        %4465 = vmatpush1.msra.mxu0 0.0
        %4466 = vmatprep.subr.mxu0 0.0
        %4467 = vmatpush1.msra.mxu0 0.0
        %4468 = vmatprep.subr.mxu0 0.0
        %4469 = vmatpush1.msra.mxu0 0.0
        %4470 = vmatprep.subr.mxu0 0.0
        %4471 = vmatpush1.msra.mxu0 0.0
        %4472 = vmatprep.subr.mxu0 0.0
        %4473 = vmatpush1.msra.mxu0 0.0
        %4474 = vmatprep.mubr.f32.mxu0 0.0
        %4475 = vmatmul.mubr.f32.gmra.mrb[0].mxu0 %v4408
        %v4476 = vpop.f32.mrb[0].mxu0
        %v4477 = vadd.f32 0.0, %v4476
        %v4478 = vpop.f32.mrb[0].mxu0
        %4479 = vdwg.mxu0
        %v4481 = vsel %vm1155, %v4388, 0
        %v4483 = vsel %vm822, %v4069, 0
        %4485 = vmatprep.subr.mxu0 0.0
        %4486 = vmatpush1.msra.mxu0 %v4483
        %4487 = vmatprep.subr.mxu0 0.0
        %4488 = vmatpush1.msra.mxu0 0.0
        %4489 = vmatprep.subr.mxu0 0.0
        %4490 = vmatpush1.msra.mxu0 0.0
        %4491 = vmatprep.subr.mxu0 0.0
        %4492 = vmatpush1.msra.mxu0 0.0
        %4493 = vmatprep.subr.mxu0 0.0
        %4494 = vmatpush1.msra.mxu0 0.0
        %4495 = vmatprep.subr.mxu0 0.0
        %4496 = vmatpush1.msra.mxu0 0.0
        %4497 = vmatprep.subr.mxu0 0.0
        %4498 = vmatpush1.msra.mxu0 0.0
        %4499 = vmatprep.subr.mxu0 0.0
        %4500 = vmatpush1.msra.mxu0 0.0
        %4501 = vmatprep.subr.mxu0 0.0
        %4502 = vmatpush1.msra.mxu0 0.0
        %4503 = vmatprep.subr.mxu0 0.0
        %4504 = vmatpush1.msra.mxu0 0.0
        %4505 = vmatprep.subr.mxu0 0.0
        %4506 = vmatpush1.msra.mxu0 0.0
        %4507 = vmatprep.subr.mxu0 0.0
        %4508 = vmatpush1.msra.mxu0 0.0
        %4509 = vmatprep.subr.mxu0 0.0
        %4510 = vmatpush1.msra.mxu0 0.0
        %4511 = vmatprep.subr.mxu0 0.0
        %4512 = vmatpush1.msra.mxu0 0.0
        %4513 = vmatprep.subr.mxu0 0.0
        %4514 = vmatpush1.msra.mxu0 0.0
        %4515 = vmatprep.subr.mxu0 0.0
        %4516 = vmatpush1.msra.mxu0 0.0
        %4517 = vmatprep.subr.mxu0 0.0
        %4518 = vmatpush1.msra.mxu0 0.0
        %4519 = vmatprep.subr.mxu0 0.0
        %4520 = vmatpush1.msra.mxu0 0.0
        %4521 = vmatprep.subr.mxu0 0.0
        %4522 = vmatpush1.msra.mxu0 0.0
        %4523 = vmatprep.subr.mxu0 0.0
        %4524 = vmatpush1.msra.mxu0 0.0
        %4525 = vmatprep.subr.mxu0 0.0
        %4526 = vmatpush1.msra.mxu0 0.0
        %4527 = vmatprep.subr.mxu0 0.0
        %4528 = vmatpush1.msra.mxu0 0.0
        %4529 = vmatprep.subr.mxu0 0.0
        %4530 = vmatpush1.msra.mxu0 0.0
        %4531 = vmatprep.subr.mxu0 0.0
        %4532 = vmatpush1.msra.mxu0 0.0
        %4533 = vmatprep.subr.mxu0 0.0
        %4534 = vmatpush1.msra.mxu0 0.0
        %4535 = vmatprep.subr.mxu0 0.0
        %4536 = vmatpush1.msra.mxu0 0.0
        %4537 = vmatprep.subr.mxu0 0.0
        %4538 = vmatpush1.msra.mxu0 0.0
        %4539 = vmatprep.subr.mxu0 0.0
        %4540 = vmatpush1.msra.mxu0 0.0
        %4541 = vmatprep.subr.mxu0 0.0
        %4542 = vmatpush1.msra.mxu0 0.0
        %4543 = vmatprep.subr.mxu0 0.0
        %4544 = vmatpush1.msra.mxu0 0.0
        %4545 = vmatprep.subr.mxu0 0.0
        %4546 = vmatpush1.msra.mxu0 0.0
        %4547 = vmatprep.subr.mxu0 0.0
        %4548 = vmatpush1.msra.mxu0 0.0
        %4549 = vmatprep.mubr.f32.mxu0 0.0
        %4550 = vmatmul.mubr.f32.gmra.mrb[0].mxu0 %v4481
        %v4551 = vpop.f32.mrb[0].mxu0
        %v4552 = vadd.f32 %v4477, %v4551
        %v4553 = vpop.f32.mrb[0].mxu0
        %4554 = vdwg.mxu0
        %4555 = vrot.lane.b32.xlu0 %v1305, 104
        %v4556 = vpop.permute.xlu0 %4555
        %v4558 = vsel %vm1155, %v4394, 0
        %v4560 = vsel %vm822, %v4556, 0
        %4562 = vmatprep.subr.mxu0 0.0
        %4563 = vmatpush1.msra.mxu0 %v4560
        %4564 = vmatprep.subr.mxu0 0.0
        %4565 = vmatpush1.msra.mxu0 0.0
        %4566 = vmatprep.subr.mxu0 0.0
        %4567 = vmatpush1.msra.mxu0 0.0
        %4568 = vmatprep.subr.mxu0 0.0
        %4569 = vmatpush1.msra.mxu0 0.0
        %4570 = vmatprep.subr.mxu0 0.0
        %4571 = vmatpush1.msra.mxu0 0.0
        %4572 = vmatprep.subr.mxu0 0.0
        %4573 = vmatpush1.msra.mxu0 0.0
        %4574 = vmatprep.subr.mxu0 0.0
        %4575 = vmatpush1.msra.mxu0 0.0
        %4576 = vmatprep.subr.mxu0 0.0
        %4577 = vmatpush1.msra.mxu0 0.0
        %4578 = vmatprep.subr.mxu0 0.0
        %4579 = vmatpush1.msra.mxu0 0.0
        %4580 = vmatprep.subr.mxu0 0.0
        %4581 = vmatpush1.msra.mxu0 0.0
        %4582 = vmatprep.subr.mxu0 0.0
        %4583 = vmatpush1.msra.mxu0 0.0
        %4584 = vmatprep.subr.mxu0 0.0
        %4585 = vmatpush1.msra.mxu0 0.0
        %4586 = vmatprep.subr.mxu0 0.0
        %4587 = vmatpush1.msra.mxu0 0.0
        %4588 = vmatprep.subr.mxu0 0.0
        %4589 = vmatpush1.msra.mxu0 0.0
        %4590 = vmatprep.subr.mxu0 0.0
        %4591 = vmatpush1.msra.mxu0 0.0
        %4592 = vmatprep.subr.mxu0 0.0
        %4593 = vmatpush1.msra.mxu0 0.0
        %4594 = vmatprep.subr.mxu0 0.0
        %4595 = vmatpush1.msra.mxu0 0.0
        %4596 = vmatprep.subr.mxu0 0.0
        %4597 = vmatpush1.msra.mxu0 0.0
        %4598 = vmatprep.subr.mxu0 0.0
        %4599 = vmatpush1.msra.mxu0 0.0
        %4600 = vmatprep.subr.mxu0 0.0
        %4601 = vmatpush1.msra.mxu0 0.0
        %4602 = vmatprep.subr.mxu0 0.0
        %4603 = vmatpush1.msra.mxu0 0.0
        %4604 = vmatprep.subr.mxu0 0.0
        %4605 = vmatpush1.msra.mxu0 0.0
        %4606 = vmatprep.subr.mxu0 0.0
        %4607 = vmatpush1.msra.mxu0 0.0
        %4608 = vmatprep.subr.mxu0 0.0
        %4609 = vmatpush1.msra.mxu0 0.0
        %4610 = vmatprep.subr.mxu0 0.0
        %4611 = vmatpush1.msra.mxu0 0.0
        %4612 = vmatprep.subr.mxu0 0.0
        %4613 = vmatpush1.msra.mxu0 0.0
        %4614 = vmatprep.subr.mxu0 0.0
        %4615 = vmatpush1.msra.mxu0 0.0
        %4616 = vmatprep.subr.mxu0 0.0
        %4617 = vmatpush1.msra.mxu0 0.0
        %4618 = vmatprep.subr.mxu0 0.0
        %4619 = vmatpush1.msra.mxu0 0.0
        %4620 = vmatprep.subr.mxu0 0.0
        %4621 = vmatpush1.msra.mxu0 0.0
        %4622 = vmatprep.subr.mxu0 0.0
        %4623 = vmatpush1.msra.mxu0 0.0
        %4624 = vmatprep.subr.mxu0 0.0
        %4625 = vmatpush1.msra.mxu0 0.0
        %4626 = vmatprep.mubr.f32.mxu0 0.0
        %4627 = vmatmul.mubr.f32.gmra.mrb[0].mxu0 %v4558
        %v4628 = vpop.f32.mrb[0].mxu0
        %v4629 = vadd.f32 0.0, %v4628
        %v4630 = vpop.f32.mrb[0].mxu0
        %4631 = vdwg.mxu0
        %v4632 = vadd.f32 %v4552, %v4629
        %v4633 = vmul.f32 %v4632, %v4406
        %4634 = vrot.lane.b32.xlu0 %v720, 104
        %v4635 = vpop.permute.xlu0 %4634
        %v4636 = vsel %vm725, %v4635, 0
        %4638 = vmatprep.subr.mxu0 0.0
        %4639 = vmatpush1.xpose.msra.mxu0 %v4300
        %4640 = vmatprep.subr.mxu0 0.0
        %4641 = vmatpush1.xpose.msra.mxu0 0.0
        %4642 = vmatprep.subr.mxu0 0.0
        %4643 = vmatpush1.xpose.msra.mxu0 0.0
        %4644 = vmatprep.subr.mxu0 0.0
        %4645 = vmatpush1.xpose.msra.mxu0 0.0
        %4646 = vmatprep.subr.mxu0 0.0
        %4647 = vmatpush1.xpose.msra.mxu0 0.0
        %4648 = vmatprep.subr.mxu0 0.0
        %4649 = vmatpush1.xpose.msra.mxu0 0.0
        %4650 = vmatprep.subr.mxu0 0.0
        %4651 = vmatpush1.xpose.msra.mxu0 0.0
        %4652 = vmatprep.subr.mxu0 0.0
        %4653 = vmatpush1.xpose.msra.mxu0 0.0
        %4654 = vmatprep.subr.mxu0 0.0
        %4655 = vmatpush1.xpose.msra.mxu0 0.0
        %4656 = vmatprep.subr.mxu0 0.0
        %4657 = vmatpush1.xpose.msra.mxu0 0.0
        %4658 = vmatprep.subr.mxu0 0.0
        %4659 = vmatpush1.xpose.msra.mxu0 0.0
        %4660 = vmatprep.subr.mxu0 0.0
        %4661 = vmatpush1.xpose.msra.mxu0 0.0
        %4662 = vmatprep.subr.mxu0 0.0
        %4663 = vmatpush1.xpose.msra.mxu0 0.0
        %4664 = vmatprep.subr.mxu0 0.0
        %4665 = vmatpush1.xpose.msra.mxu0 0.0
        %4666 = vmatprep.subr.mxu0 0.0
        %4667 = vmatpush1.xpose.msra.mxu0 0.0
        %4668 = vmatprep.subr.mxu0 0.0
        %4669 = vmatpush1.xpose.msra.mxu0 0.0
        %4670 = vmatprep.subr.mxu0 0.0
        %4671 = vmatpush1.xpose.msra.mxu0 0.0
        %4672 = vmatprep.subr.mxu0 0.0
        %4673 = vmatpush1.xpose.msra.mxu0 0.0
        %4674 = vmatprep.subr.mxu0 0.0
        %4675 = vmatpush1.xpose.msra.mxu0 0.0
        %4676 = vmatprep.subr.mxu0 0.0
        %4677 = vmatpush1.xpose.msra.mxu0 0.0
        %4678 = vmatprep.subr.mxu0 0.0
        %4679 = vmatpush1.xpose.msra.mxu0 0.0
        %4680 = vmatprep.subr.mxu0 0.0
        %4681 = vmatpush1.xpose.msra.mxu0 0.0
        %4682 = vmatprep.subr.mxu0 0.0
        %4683 = vmatpush1.xpose.msra.mxu0 0.0
        %4684 = vmatprep.subr.mxu0 0.0
        %4685 = vmatpush1.xpose.msra.mxu0 0.0
        %4686 = vmatprep.subr.mxu0 0.0
        %4687 = vmatpush1.xpose.msra.mxu0 0.0
        %4688 = vmatprep.subr.mxu0 0.0
        %4689 = vmatpush1.xpose.msra.mxu0 0.0
        %4690 = vmatprep.subr.mxu0 0.0
        %4691 = vmatpush1.xpose.msra.mxu0 0.0
        %4692 = vmatprep.subr.mxu0 0.0
        %4693 = vmatpush1.xpose.msra.mxu0 0.0
        %4694 = vmatprep.subr.mxu0 0.0
        %4695 = vmatpush1.xpose.msra.mxu0 0.0
        %4696 = vmatprep.subr.mxu0 0.0
        %4697 = vmatpush1.xpose.msra.mxu0 0.0
        %4698 = vmatprep.subr.mxu0 0.0
        %4699 = vmatpush1.xpose.msra.mxu0 0.0
        %4700 = vmatprep.subr.mxu0 0.0
        %4701 = vmatpush1.xpose.msra.mxu0 0.0
        %4702 = vmatprep.mubr.f32.mxu0 0.0
        %4703 = vmatmul.mubr.f32.gmra.mrb[0].mxu0 %v4636
        %v4704 = vpop.f32.mrb[0].mxu0
        %v4705 = vadd.f32 0.0, %v4704
        %v4706 = vpop.f32.mrb[0].mxu0
        %4707 = vdwg.mxu0
        %v4708 = vmul.f32 %v4705, 0.35355338
        %4709 = vmatprep.subr.mxu0 0.0
        %4710 = vmatpush1.xpose.msra.mxu0 %v3984
        %4711 = vmatprep.subr.mxu0 0.0
        %4712 = vmatpush1.xpose.msra.mxu0 0.0
        %4713 = vmatprep.subr.mxu0 0.0
        %4714 = vmatpush1.xpose.msra.mxu0 0.0
        %4715 = vmatprep.subr.mxu0 0.0
        %4716 = vmatpush1.xpose.msra.mxu0 0.0
        %4717 = vmatprep.subr.mxu0 0.0
        %4718 = vmatpush1.xpose.msra.mxu0 0.0
        %4719 = vmatprep.subr.mxu0 0.0
        %4720 = vmatpush1.xpose.msra.mxu0 0.0
        %4721 = vmatprep.subr.mxu0 0.0
        %4722 = vmatpush1.xpose.msra.mxu0 0.0
        %4723 = vmatprep.subr.mxu0 0.0
        %4724 = vmatpush1.xpose.msra.mxu0 0.0
        %4725 = vmatprep.subr.mxu0 0.0
        %4726 = vmatpush1.xpose.msra.mxu0 0.0
        %4727 = vmatprep.subr.mxu0 0.0
        %4728 = vmatpush1.xpose.msra.mxu0 0.0
        %4729 = vmatprep.subr.mxu0 0.0
        %4730 = vmatpush1.xpose.msra.mxu0 0.0
        %4731 = vmatprep.subr.mxu0 0.0
        %4732 = vmatpush1.xpose.msra.mxu0 0.0
        %4733 = vmatprep.subr.mxu0 0.0
        %4734 = vmatpush1.xpose.msra.mxu0 0.0
        %4735 = vmatprep.subr.mxu0 0.0
        %4736 = vmatpush1.xpose.msra.mxu0 0.0
        %4737 = vmatprep.subr.mxu0 0.0
        %4738 = vmatpush1.xpose.msra.mxu0 0.0
        %4739 = vmatprep.subr.mxu0 0.0
        %4740 = vmatpush1.xpose.msra.mxu0 0.0
        %4741 = vmatprep.subr.mxu0 0.0
        %4742 = vmatpush1.xpose.msra.mxu0 0.0
        %4743 = vmatprep.subr.mxu0 0.0
        %4744 = vmatpush1.xpose.msra.mxu0 0.0
        %4745 = vmatprep.subr.mxu0 0.0
        %4746 = vmatpush1.xpose.msra.mxu0 0.0
        %4747 = vmatprep.subr.mxu0 0.0
        %4748 = vmatpush1.xpose.msra.mxu0 0.0
        %4749 = vmatprep.subr.mxu0 0.0
        %4750 = vmatpush1.xpose.msra.mxu0 0.0
        %4751 = vmatprep.subr.mxu0 0.0
        %4752 = vmatpush1.xpose.msra.mxu0 0.0
        %4753 = vmatprep.subr.mxu0 0.0
        %4754 = vmatpush1.xpose.msra.mxu0 0.0
        %4755 = vmatprep.subr.mxu0 0.0
        %4756 = vmatpush1.xpose.msra.mxu0 0.0
        %4757 = vmatprep.subr.mxu0 0.0
        %4758 = vmatpush1.xpose.msra.mxu0 0.0
        %4759 = vmatprep.subr.mxu0 0.0
        %4760 = vmatpush1.xpose.msra.mxu0 0.0
        %4761 = vmatprep.subr.mxu0 0.0
        %4762 = vmatpush1.xpose.msra.mxu0 0.0
        %4763 = vmatprep.subr.mxu0 0.0
        %4764 = vmatpush1.xpose.msra.mxu0 0.0
        %4765 = vmatprep.subr.mxu0 0.0
        %4766 = vmatpush1.xpose.msra.mxu0 0.0
        %4767 = vmatprep.subr.mxu0 0.0
        %4768 = vmatpush1.xpose.msra.mxu0 0.0
        %4769 = vmatprep.subr.mxu0 0.0
        %4770 = vmatpush1.xpose.msra.mxu0 0.0
        %4771 = vmatprep.subr.mxu0 0.0
        %4772 = vmatpush1.xpose.msra.mxu0 0.0
        %4773 = vmatprep.mubr.f32.mxu0 0.0
        %4774 = vmatmul.mubr.f32.gmra.mrb[0].mxu0 %v4636
        %v4775 = vpop.f32.mrb[0].mxu0
        %v4776 = vadd.f32 0.0, %v4775
        %v4777 = vpop.f32.mrb[0].mxu0
        %4778 = vdwg.mxu0
        %v4779 = vmul.f32 %v4776, 0.35355338
        %v4780 = vsel %vm718, -2.3819763e+38, %v4708
        %v4781 = vsel %vm717, -2.3819763e+38, %v4779
        %v4782 = vsel %vm1529, %v4222, -inf
        %4783 = vmax.xlane.f32.xlu0 %v4782
        %v4784 = vpop.xlane.xlu0 %4783
        %v4785 = vsel %vm1122, %v4780, -inf
        %4786 = vmax.xlane.f32.xlu0 %v4785
        %v4787 = vpop.xlane.xlu0 %4786
        %v4788 = vsel %vm1122, %v4781, -inf
        %4789 = vmax.xlane.f32.xlu0 %v4788
        %v4790 = vpop.xlane.xlu0 %4789
        %v4791 = vmax.f32 %v4787, %v4790
        %v4793 = vrot.slane %v4791, 4
        %v4795 = vmax.f32 %v4784, %v4793
        %4797 = vset.pattern.permute.xlu0 0
        %4798 = vperm.xlu0 %4797, %v4795
        %v4799 = vpop.permute.xlu0 %4798
        %v4801 = vsub.f32 %v4222, %v4799
        %v4802 = vmul.f32 %v4801, 1.442695
        %v4803 = vpow.pop %v4802
        %v4804 = vrot.slane %v4799, 4
        %v4806 = vsub.f32 %v4780, %v4804
        %v4807 = vmul.f32 %v4806, 1.442695
        %v4808 = vpow.pop %v4807
        %v4809 = vsub.f32 %v4781, %v4804
        %v4810 = vmul.f32 %v4809, 1.442695
        %v4811 = vpow.pop %v4810
        %v4812 = vsel %vm1529, %v4803, 0.0
        %4813 = vadd.xlane.f32.xlu0 %v4812
        %v4814 = vpop.xlane.xlu0 %4813
        %v4815 = vsel %vm1122, %v4808, 0.0
        %4816 = vadd.xlane.f32.xlu0 %v4815
        %v4817 = vpop.xlane.xlu0 %4816
        %v4819 = vrot.slane %v4817, 4
        %v4821 = vadd.f32 %v4814, %v4819
        %v4822 = vsel %vm1122, %v4811, 0.0
        %4823 = vadd.xlane.f32.xlu0 %v4822
        %v4824 = vpop.xlane.xlu0 %4823
        %v4826 = vrot.slane %v4824, 4
        %v4828 = vadd.f32 %v4821, %v4826
        %v4829 = vrcp.pop %v4828
        %v4831 = vsel %vm1155, %v4808, 0
        %4833 = vmatprep.subr.mxu0 0.0
        %4834 = vmatpush1.msra.mxu0 %v4560
        %4835 = vmatprep.subr.mxu0 0.0
        %4836 = vmatpush1.msra.mxu0 0.0
        %4837 = vmatprep.subr.mxu0 0.0
        %4838 = vmatpush1.msra.mxu0 0.0
        %4839 = vmatprep.subr.mxu0 0.0
        %4840 = vmatpush1.msra.mxu0 0.0
        %4841 = vmatprep.subr.mxu0 0.0
        %4842 = vmatpush1.msra.mxu0 0.0
        %4843 = vmatprep.subr.mxu0 0.0
        %4844 = vmatpush1.msra.mxu0 0.0
        %4845 = vmatprep.subr.mxu0 0.0
        %4846 = vmatpush1.msra.mxu0 0.0
        %4847 = vmatprep.subr.mxu0 0.0
        %4848 = vmatpush1.msra.mxu0 0.0
        %4849 = vmatprep.subr.mxu0 0.0
        %4850 = vmatpush1.msra.mxu0 0.0
        %4851 = vmatprep.subr.mxu0 0.0
        %4852 = vmatpush1.msra.mxu0 0.0
        %4853 = vmatprep.subr.mxu0 0.0
        %4854 = vmatpush1.msra.mxu0 0.0
        %4855 = vmatprep.subr.mxu0 0.0
        %4856 = vmatpush1.msra.mxu0 0.0
        %4857 = vmatprep.subr.mxu0 0.0
        %4858 = vmatpush1.msra.mxu0 0.0
        %4859 = vmatprep.subr.mxu0 0.0
        %4860 = vmatpush1.msra.mxu0 0.0
        %4861 = vmatprep.subr.mxu0 0.0
        %4862 = vmatpush1.msra.mxu0 0.0
        %4863 = vmatprep.subr.mxu0 0.0
        %4864 = vmatpush1.msra.mxu0 0.0
        %4865 = vmatprep.subr.mxu0 0.0
        %4866 = vmatpush1.msra.mxu0 0.0
        %4867 = vmatprep.subr.mxu0 0.0
        %4868 = vmatpush1.msra.mxu0 0.0
        %4869 = vmatprep.subr.mxu0 0.0
        %4870 = vmatpush1.msra.mxu0 0.0
        %4871 = vmatprep.subr.mxu0 0.0
        %4872 = vmatpush1.msra.mxu0 0.0
        %4873 = vmatprep.subr.mxu0 0.0
        %4874 = vmatpush1.msra.mxu0 0.0
        %4875 = vmatprep.subr.mxu0 0.0
        %4876 = vmatpush1.msra.mxu0 0.0
        %4877 = vmatprep.subr.mxu0 0.0
        %4878 = vmatpush1.msra.mxu0 0.0
        %4879 = vmatprep.subr.mxu0 0.0
        %4880 = vmatpush1.msra.mxu0 0.0
        %4881 = vmatprep.subr.mxu0 0.0
        %4882 = vmatpush1.msra.mxu0 0.0
        %4883 = vmatprep.subr.mxu0 0.0
        %4884 = vmatpush1.msra.mxu0 0.0
        %4885 = vmatprep.subr.mxu0 0.0
        %4886 = vmatpush1.msra.mxu0 0.0
        %4887 = vmatprep.subr.mxu0 0.0
        %4888 = vmatpush1.msra.mxu0 0.0
        %4889 = vmatprep.subr.mxu0 0.0
        %4890 = vmatpush1.msra.mxu0 0.0
        %4891 = vmatprep.subr.mxu0 0.0
        %4892 = vmatpush1.msra.mxu0 0.0
        %4893 = vmatprep.subr.mxu0 0.0
        %4894 = vmatpush1.msra.mxu0 0.0
        %4895 = vmatprep.subr.mxu0 0.0
        %4896 = vmatpush1.msra.mxu0 0.0
        %4897 = vmatprep.mubr.f32.mxu0 0.0
        %4898 = vmatmul.mubr.f32.gmra.mrb[0].mxu0 %v4831
        %v4899 = vpop.f32.mrb[0].mxu0
        %v4900 = vadd.f32 0.0, %v4899
        %v4901 = vpop.f32.mrb[0].mxu0
        %4902 = vdwg.mxu0
        %v4904 = vrot.slane %v4803, 4
        %v4905 = vsel %vm1155, %v4904, 0
        %4907 = vmatprep.subr.mxu0 0.0
        %4908 = vmatpush1.msra.mxu0 %v4483
        %4909 = vmatprep.subr.mxu0 0.0
        %4910 = vmatpush1.msra.mxu0 0.0
        %4911 = vmatprep.subr.mxu0 0.0
        %4912 = vmatpush1.msra.mxu0 0.0
        %4913 = vmatprep.subr.mxu0 0.0
        %4914 = vmatpush1.msra.mxu0 0.0
        %4915 = vmatprep.subr.mxu0 0.0
        %4916 = vmatpush1.msra.mxu0 0.0
        %4917 = vmatprep.subr.mxu0 0.0
        %4918 = vmatpush1.msra.mxu0 0.0
        %4919 = vmatprep.subr.mxu0 0.0
        %4920 = vmatpush1.msra.mxu0 0.0
        %4921 = vmatprep.subr.mxu0 0.0
        %4922 = vmatpush1.msra.mxu0 0.0
        %4923 = vmatprep.subr.mxu0 0.0
        %4924 = vmatpush1.msra.mxu0 0.0
        %4925 = vmatprep.subr.mxu0 0.0
        %4926 = vmatpush1.msra.mxu0 0.0
        %4927 = vmatprep.subr.mxu0 0.0
        %4928 = vmatpush1.msra.mxu0 0.0
        %4929 = vmatprep.subr.mxu0 0.0
        %4930 = vmatpush1.msra.mxu0 0.0
        %4931 = vmatprep.subr.mxu0 0.0
        %4932 = vmatpush1.msra.mxu0 0.0
        %4933 = vmatprep.subr.mxu0 0.0
        %4934 = vmatpush1.msra.mxu0 0.0
        %4935 = vmatprep.subr.mxu0 0.0
        %4936 = vmatpush1.msra.mxu0 0.0
        %4937 = vmatprep.subr.mxu0 0.0
        %4938 = vmatpush1.msra.mxu0 0.0
        %4939 = vmatprep.subr.mxu0 0.0
        %4940 = vmatpush1.msra.mxu0 0.0
        %4941 = vmatprep.subr.mxu0 0.0
        %4942 = vmatpush1.msra.mxu0 0.0
        %4943 = vmatprep.subr.mxu0 0.0
        %4944 = vmatpush1.msra.mxu0 0.0
        %4945 = vmatprep.subr.mxu0 0.0
        %4946 = vmatpush1.msra.mxu0 0.0
        %4947 = vmatprep.subr.mxu0 0.0
        %4948 = vmatpush1.msra.mxu0 0.0
        %4949 = vmatprep.subr.mxu0 0.0
        %4950 = vmatpush1.msra.mxu0 0.0
        %4951 = vmatprep.subr.mxu0 0.0
        %4952 = vmatpush1.msra.mxu0 0.0
        %4953 = vmatprep.subr.mxu0 0.0
        %4954 = vmatpush1.msra.mxu0 0.0
        %4955 = vmatprep.subr.mxu0 0.0
        %4956 = vmatpush1.msra.mxu0 0.0
        %4957 = vmatprep.subr.mxu0 0.0
        %4958 = vmatpush1.msra.mxu0 0.0
        %4959 = vmatprep.subr.mxu0 0.0
        %4960 = vmatpush1.msra.mxu0 0.0
        %4961 = vmatprep.subr.mxu0 0.0
        %4962 = vmatpush1.msra.mxu0 0.0
        %4963 = vmatprep.subr.mxu0 0.0
        %4964 = vmatpush1.msra.mxu0 0.0
        %4965 = vmatprep.subr.mxu0 0.0
        %4966 = vmatpush1.msra.mxu0 0.0
        %4967 = vmatprep.subr.mxu0 0.0
        %4968 = vmatpush1.msra.mxu0 0.0
        %4969 = vmatprep.subr.mxu0 0.0
        %4970 = vmatpush1.msra.mxu0 0.0
        %4971 = vmatprep.mubr.f32.mxu0 0.0
        %4972 = vmatmul.mubr.f32.gmra.mrb[0].mxu0 %v4905
        %v4973 = vpop.f32.mrb[0].mxu0
        %v4974 = vadd.f32 %v4900, %v4973
        %v4975 = vpop.f32.mrb[0].mxu0
        %4976 = vdwg.mxu0
        %v4978 = vsel %vm1155, %v4811, 0
        %4980 = vmatprep.subr.mxu0 0.0
        %4981 = vmatpush1.msra.mxu0 %v4076
        %4982 = vmatprep.subr.mxu0 0.0
        %4983 = vmatpush1.msra.mxu0 0.0
        %4984 = vmatprep.subr.mxu0 0.0
        %4985 = vmatpush1.msra.mxu0 0.0
        %4986 = vmatprep.subr.mxu0 0.0
        %4987 = vmatpush1.msra.mxu0 0.0
        %4988 = vmatprep.subr.mxu0 0.0
        %4989 = vmatpush1.msra.mxu0 0.0
        %4990 = vmatprep.subr.mxu0 0.0
        %4991 = vmatpush1.msra.mxu0 0.0
        %4992 = vmatprep.subr.mxu0 0.0
        %4993 = vmatpush1.msra.mxu0 0.0
        %4994 = vmatprep.subr.mxu0 0.0
        %4995 = vmatpush1.msra.mxu0 0.0
        %4996 = vmatprep.subr.mxu0 0.0
        %4997 = vmatpush1.msra.mxu0 0.0
        %4998 = vmatprep.subr.mxu0 0.0
        %4999 = vmatpush1.msra.mxu0 0.0
        %5000 = vmatprep.subr.mxu0 0.0
        %5001 = vmatpush1.msra.mxu0 0.0
        %5002 = vmatprep.subr.mxu0 0.0
        %5003 = vmatpush1.msra.mxu0 0.0
        %5004 = vmatprep.subr.mxu0 0.0
        %5005 = vmatpush1.msra.mxu0 0.0
        %5006 = vmatprep.subr.mxu0 0.0
        %5007 = vmatpush1.msra.mxu0 0.0
        %5008 = vmatprep.subr.mxu0 0.0
        %5009 = vmatpush1.msra.mxu0 0.0
        %5010 = vmatprep.subr.mxu0 0.0
        %5011 = vmatpush1.msra.mxu0 0.0
        %5012 = vmatprep.subr.mxu0 0.0
        %5013 = vmatpush1.msra.mxu0 0.0
        %5014 = vmatprep.subr.mxu0 0.0
        %5015 = vmatpush1.msra.mxu0 0.0
        %5016 = vmatprep.subr.mxu0 0.0
        %5017 = vmatpush1.msra.mxu0 0.0
        %5018 = vmatprep.subr.mxu0 0.0
        %5019 = vmatpush1.msra.mxu0 0.0
        %5020 = vmatprep.subr.mxu0 0.0
        %5021 = vmatpush1.msra.mxu0 0.0
        %5022 = vmatprep.subr.mxu0 0.0
        %5023 = vmatpush1.msra.mxu0 0.0
        %5024 = vmatprep.subr.mxu0 0.0
        %5025 = vmatpush1.msra.mxu0 0.0
        %5026 = vmatprep.subr.mxu0 0.0
        %5027 = vmatpush1.msra.mxu0 0.0
        %5028 = vmatprep.subr.mxu0 0.0
        %5029 = vmatpush1.msra.mxu0 0.0
        %5030 = vmatprep.subr.mxu0 0.0
        %5031 = vmatpush1.msra.mxu0 0.0
        %5032 = vmatprep.subr.mxu0 0.0
        %5033 = vmatpush1.msra.mxu0 0.0
        %5034 = vmatprep.subr.mxu0 0.0
        %5035 = vmatpush1.msra.mxu0 0.0
        %5036 = vmatprep.subr.mxu0 0.0
        %5037 = vmatpush1.msra.mxu0 0.0
        %5038 = vmatprep.subr.mxu0 0.0
        %5039 = vmatpush1.msra.mxu0 0.0
        %5040 = vmatprep.subr.mxu0 0.0
        %5041 = vmatpush1.msra.mxu0 0.0
        %5042 = vmatprep.subr.mxu0 0.0
        %5043 = vmatpush1.msra.mxu0 0.0
        %5044 = vmatprep.mubr.f32.mxu0 0.0
        %5045 = vmatmul.mubr.f32.gmra.mrb[0].mxu0 %v4978
        %v5046 = vpop.f32.mrb[0].mxu0
        %v5047 = vadd.f32 0.0, %v5046
        %v5048 = vpop.f32.mrb[0].mxu0
        %5049 = vdwg.mxu0
        %v5050 = vadd.f32 %v4974, %v5047
        %5052 = vset.pattern.permute.xlu0 0
        %5053 = vperm.xlu0 %5052, %v4829
        %v5054 = vpop.permute.xlu0 %5053
        %v5055 = vrot.slane %v5054, 4
        %v5057 = vmul.f32 %v5050, %v5055
        %5059 = vrot.lane.b32.xlu0 %v1977, 8
        %v5060 = vpop.permute.xlu0 %5059
        %5063 = vrot.lane.b32.xlu0 %v3061, 16
        %v5064 = vpop.permute.xlu0 %5063
        %5067 = vrot.lane.b32.xlu0 %v4145, 24
        %v5068 = vpop.permute.xlu0 %5067
        %v5070 = vsel %vm725, %v893, %v5060
        %vm5071 = vcmask 130048
        %v5072 = vsel %vm5071, %v5070, %v5064
        %vm5073 = vcmask 195584
        %v5074 = vsel %vm5073, %v5072, %v5068
        %5076 = vrot.lane.b32.xlu0 %v2465, 8
        %v5077 = vpop.permute.xlu0 %5076
        %5080 = vrot.lane.b32.xlu0 %v3549, 16
        %v5081 = vpop.permute.xlu0 %5080
        %5084 = vrot.lane.b32.xlu0 %v4633, 24
        %v5085 = vpop.permute.xlu0 %5084
        %v5087 = vsel %vm725, %v1382, %v5077
        %v5088 = vsel %vm5071, %v5087, %v5081
        %v5089 = vsel %vm5073, %v5088, %v5085
        %5091 = vrot.lane.b32.xlu0 %v2889, 8
        %v5092 = vpop.permute.xlu0 %5091
        %5095 = vrot.lane.b32.xlu0 %v3973, 16
        %v5096 = vpop.permute.xlu0 %5095
        %5099 = vrot.lane.b32.xlu0 %v5057, 24
        %v5100 = vpop.permute.xlu0 %5099
        %v5102 = vsel %vm725, %v1805, %v5092
        %v5103 = vsel %vm5071, %v5102, %v5096
        %v5104 = vsel %vm5073, %v5103, %v5100
        %v5106 = vrot.slane %v5089, 4
        %v5108 = vsel %vm822, %v5074, %v5106
        %5109 = vst.msk [vmem:[%s384] sm:$0xff] %vm398, %v5108
        %5110 = vst.msk [vmem:[%s384 + $0x8] sm:$0xf] %vm493, %v5104
        %p5111 = scmp.lt.s32.totalorder %s21, 1
        %s5112 = scalar_select %p5111, %s21, 1
        %s5113 = smul.addr %s5112, 2
        %s5114 = smul.addr %s5113, 8
        %s5115 = scalar_lea.vmem %s9, %s5114
        // Predicated region
        $region61: #{tpu_custom_call.1} parent=55 // pred_check
          %p5116 = pneg %p243
        $region62: #{tpu_custom_call.1} parent=55 // pred_check_branch
          %5118 = sbr.rel (%p5116) target = $region64
        $region63: #{tpu_custom_call.1} parent=55 // pred_region
          _
        $region64: #{tpu_custom_call.1} parent=55 // pred_fallthru
          _
      $region56: #{tpu_custom_call.1} parent=5 // pred_fallthru
        _
      %p5119 = scmp.le.s32.totalorder 2, %s16
      // Predicated region
      $region65: #{tpu_custom_call.1} parent=5 // pred_check
        %p5120 = pneg %p5119
      $region66: #{tpu_custom_call.1} parent=5 // pred_check_branch
        %5122 = sbr.rel (%p5120) target = $region68
      $region67: #{tpu_custom_call.1} parent=5 // pred_region
        %s5123 = ssub.s32 %s16, 2
        // Predicated region
        $region69: #{tpu_custom_call.1} parent=67 // pred_check
          %p5124 = pneg %p249
        $region70: #{tpu_custom_call.1} parent=67 // pred_check_branch
          %5126 = sbr.rel (%p5124) target = $region72
        $region71: #{tpu_custom_call.1} parent=67 // pred_region
          %p5127 = scmp.lt.s32.totalorder %s22, 1
          %s5128 = scalar_select %p5127, %s22, 1
          %s5129 = smul.addr %s5128, 2
          %s5130 = smul.addr %s5129, 8
          %s5131 = scalar_lea.vmem %s9, %s5130
        $region72: #{tpu_custom_call.1} parent=67 // pred_fallthru
          _
      $region68: #{tpu_custom_call.1} parent=5 // pred_fallthru
        _
    $region6: #{tpu_custom_call.1} parent=1 // loop_footer
      %s20 = sadd.s32 1, %s16
    $region7: #{tpu_custom_call.1} parent=1 // loop_footer_branch
      %15 = sbr.rel target = $region3
    $region8: #{tpu_custom_call.1} parent=1 // loop_exit
      _
    %5132 = vsyncpa [#allocation6], 1
    %s5133 = scalar_lea.sflag [#allocation6], 1
    %5134 = vsyncpa %s5133, 1

</llo_original>
